<compile_context>
chip_gen: v6e
topology: v6e:2x2x1
jax: 0.10.0
libtpu: 0.0.40
codegen_flags: <defaults>
</compile_context>

<pallas_src>
import jax
import jax.numpy as jnp
from jax.experimental import pallas as pl
from jax.experimental.pallas import tpu as pltpu

# ---------------------- synthetic size constants ------------------------------
BOARD_DATA, MAP_DATA, FLOW_DATA, TURN_DATA, TOTAL_POS = 48, 16, 32, 16, 32

S_BOARD_MAP = BOARD_DATA + MAP_DATA          # 64
S_FLOW = FLOW_DATA                           # 32
S_TURN = TURN_DATA                           # 16

BDL = [S_BOARD_MAP, S_BOARD_MAP * 16, S_BOARD_MAP * 8,
       S_BOARD_MAP * 4, S_BOARD_MAP * 2, TOTAL_POS]          # 64,1024,512,256,128,32
FDL = [S_FLOW + TOTAL_POS, 200, TOTAL_POS]                    # 64,200,32
TDL = [S_TURN + TOTAL_POS, 200, TOTAL_POS]                    # 48,200,32
SL  = [TOTAL_POS * 3, S_BOARD_MAP * 2, S_BOARD_MAP,
       S_BOARD_MAP // 2, S_BOARD_MAP // 5, TOTAL_POS]         # 96,128,64,32,12,32

IN_FEATURES = S_BOARD_MAP + S_FLOW + S_TURN  # 112
NEG_SLOPE = 0.01                             # torch.nn.LeakyReLU default

LAYER_NAMES = ("b0", "b1", "b2", "b3", "b4",
               "f0", "f1", "t0", "t1",
               "s0", "s1", "s2", "s3", "s4")

# ---------------------- packed-weight layout (static) -------------------------
FT_HID_PAD    = 256                # 200-wide f/t hidden padded to 256 (zeros)
FT_PACK_WIDTH = 2 * FT_HID_PAD     # f and t hidden packed side-by-side -> 512
S3_PAD        = 16                 # 12-wide s hidden padded to 16 (zeros)

# 512-lane slab: fused f/t input weights (row offsets multiple of 16 = bf16 tile)
_WFT_BLOCKS = (
    ("ft0_xb", TOTAL_POS),         # (32, 512)  xb -> [hf | ht]
    ("ft0_x",  IN_FEATURES),       # (112, 512) full x -> [hf | ht] (xf/xt rows)
)
WFT_LAYOUT, _off = {}, 0
for _n, _r in _WFT_BLOCKS:
    WFT_LAYOUT[_n] = (_off, _r)
    _off += _r
WFT_ROWS = _off                    # 144

# 128-lane slab: every remaining (<=128-col) layer, tile-aligned offsets.
_WSM_BLOCKS = (
    ("b3",     BDL[3],        BDL[4]),          # (256, 128)
    ("b4",     BDL[4],        BDL[5]),          # (128, 32)
    ("ft1",    FT_PACK_WIDTH, 2 * TOTAL_POS),   # (512, 64) block-diag [f1|t1]
    ("s0_xb",  TOTAL_POS,     SL[1]),           # (32, 128)
    ("s0_xft", 2 * TOTAL_POS, SL[1]),           # (64, 128)
    ("s1",     SL[1],         SL[2]),           # (128, 64)
    ("s2",     SL[2],         SL[3]),           # (64, 32)
    ("s3",     SL[3],         S3_PAD),          # (32, 16)
    ("s4",     S3_PAD,        SL[5]),           # (16, 32)
)
WSM_LAYOUT, _off = {}, 0
for _n, _r, _c in _WSM_BLOCKS:
    WSM_LAYOUT[_n] = (_off, _r, _c)
    _off += _r
WSM_ROWS = _off                    # 1232 (multiple of 16)


def _leaky(v):
    return jnp.where(v > 0, v, NEG_SLOPE * v)


# ----------------------------- Pallas kernel ----------------------------------
def pathogen_kernel(x_ref, wa_ref, wb_ref, wc_ref, wft_ref, wsm_ref,
                    bhi_ref, blo_ref, out_ref):
    def dot(a, w):                                 # bf16 MXU, f32 accumulation
        return jnp.dot(a.astype(jnp.bfloat16), w,
                       preferred_element_type=jnp.float32)

    def wsm(name):                                 # tile-aligned static slice
        off, rows, cols = WSM_LAYOUT[name]
        return wsm_ref[pl.ds(off, rows), :cols]

    def wft(name):
        off, rows = WFT_LAYOUT[name]
        return wft_ref[pl.ds(off, rows), :]

    def bhi(i, n):                                 # [1, n] f32
        return bhi_ref[pl.ds(i, 1), :n]

    def blo(i, n):
        return blo_ref[pl.ds(i, 1), :n]

    x = x_ref[...]                                 # [tb, 112] f32
    xb_in = x[:, :S_BOARD_MAP]                     # [tb, 64]

    # b_layers: Linear -> LeakyReLU -> Dropout(0.06); dropout is identity (eval).
    # TODO(synk): train-mode dropout would need pltpu.prng_seed/prng_random_bits masking.
    h  = _leaky(dot(xb_in, wa_ref[...]) + bhi(0, BDL[1]))    # [tb, 1024]
    h  = _leaky(dot(h, wb_ref[...]) + bhi(1, BDL[2]))        # [tb, 512]
    h  = _leaky(dot(h, wc_ref[...]) + blo(0, BDL[3]))        # [tb, 256]
    h  = _leaky(dot(h, wsm("b3")) + blo(1, BDL[4]))          # [tb, 128]
    xb = _leaky(dot(h, wsm("b4")) + blo(2, BDL[5]))          # [tb, 32]

    # f_layers / t_layers fused: concat(xb, xf) & concat(xb, xt) folded into
    # split / zero-padded weights packed side-by-side along lanes.
    hft = (dot(xb, wft("ft0_xb")) + dot(x, wft("ft0_x"))
           + blo(3, FT_PACK_WIDTH))                          # [tb, 512] = hf | ht
    yft = dot(hft, wsm("ft1")) + blo(4, 2 * TOTAL_POS)       # [tb, 64]  = yf | yt

    # s_layers on concat(xb, yf, yt): Linear -> LeakyReLU -> Dropout(0.02).
    hs = _leaky(dot(xb, wsm("s0_xb")) + dot(yft, wsm("s0_xft")) + blo(5, SL[1]))
    hs = _leaky(dot(hs, wsm("s1")) + blo(6, SL[2]))          # [tb, 64]
    hs = _leaky(dot(hs, wsm("s2")) + blo(7, SL[3]))          # [tb, 32]
    hs = _leaky(dot(hs, wsm("s3")) + blo(8, S3_PAD))         # [tb, 16] (12 real)
    hs = _leaky(dot(hs, wsm("s4")) + blo(9, SL[5]))          # [tb, 32]

    # softmax over dim 1 (exact normalization: f32 divide).
    m = jnp.max(hs, axis=1, keepdims=True)
    e = jnp.exp(hs - m)
    out_ref[...] = e / jnp.sum(e, axis=1, keepdims=True)


# ------------------------- one-time weight packing ----------------------------
def pack_params(params):
    """params: 14 (W[in,out], b[out]) f32 pairs in LAYER_NAMES order.
    Returns (wa bf16 [64,1024], wb bf16 [1024,512], wc bf16 [512,256],
             wft bf16 [144,512], wsm bf16 [1232,128],
             bhi f32 [2,1024], blo f32 [10,512])."""
    assert len(params) == len(LAYER_NAMES)
    w = {n: p[0] for n, p in zip(LAYER_NAMES, params)}
    b = {n: p[1] for n, p in zip(LAYER_NAMES, params)}

    wa = w["b0"].astype(jnp.bfloat16)                        # (64, 1024)
    wb = w["b1"].astype(jnp.bfloat16)                        # (1024, 512)
    wc = w["b2"].astype(jnp.bfloat16)                        # (512, 256)

    # 512-lane fused f/t input slab.
    wft = jnp.zeros((WFT_ROWS, FT_PACK_WIDTH), jnp.float32)
    o_xb = WFT_LAYOUT["ft0_xb"][0]
    o_x = WFT_LAYOUT["ft0_x"][0]
    wft = wft.at[o_xb:o_xb + TOTAL_POS, 0:FDL[1]].set(w["f0"][:TOTAL_POS])
    wft = wft.at[o_xb:o_xb + TOTAL_POS,
                 FT_HID_PAD:FT_HID_PAD + TDL[1]].set(w["t0"][:TOTAL_POS])
    wft = wft.at[o_x + S_BOARD_MAP:o_x + S_BOARD_MAP + S_FLOW,
                 0:FDL[1]].set(w["f0"][TOTAL_POS:])
    wft = wft.at[o_x + S_BOARD_MAP + S_FLOW:o_x + IN_FEATURES,
                 FT_HID_PAD:FT_HID_PAD + TDL[1]].set(w["t0"][TOTAL_POS:])
    wft = wft.astype(jnp.bfloat16)

    # 128-lane slab.
    wsm = jnp.zeros((WSM_ROWS, 128), jnp.float32)

    def put(buf, name, sub, r_off=0, c_off=0):
        o, rows, cols = WSM_LAYOUT[name]
        assert r_off + sub.shape[0] <= rows and c_off + sub.shape[1] <= cols, name
        return buf.at[o + r_off:o + r_off + sub.shape[0],
                      c_off:c_off + sub.shape[1]].set(sub)

    wsm = put(wsm, "b3", w["b3"])
    wsm = put(wsm, "b4", w["b4"])
    wsm = put(wsm, "ft1", w["f1"])                                    # rows 0:200, cols 0:32
    wsm = put(wsm, "ft1", w["t1"], r_off=FT_HID_PAD, c_off=TOTAL_POS) # rows 256:456, cols 32:64
    wsm = put(wsm, "s0_xb", w["s0"][:TOTAL_POS])
    wsm = put(wsm, "s0_xft", w["s0"][TOTAL_POS:])
    wsm = put(wsm, "s1", w["s1"])
    wsm = put(wsm, "s2", w["s2"])
    wsm = put(wsm, "s3", w["s3"])
    wsm = put(wsm, "s4", w["s4"])
    wsm = wsm.astype(jnp.bfloat16)

    # bias tables (f32): [2,1024] for the two wide b-layers, [10,512] for the rest.
    bhi = jnp.zeros((2, BDL[1]), jnp.float32)
    bhi = bhi.at[0, :BDL[1]].set(b["b0"])
    bhi = bhi.at[1, :BDL[2]].set(b["b1"])

    blo = jnp.zeros((10, FT_PACK_WIDTH), jnp.float32)
    blo = blo.at[0, :BDL[3]].set(b["b2"])
    blo = blo.at[1, :BDL[4]].set(b["b3"])
    blo = blo.at[2, :BDL[5]].set(b["b4"])
    blo = blo.at[3, 0:FDL[1]].set(b["f0"])
    blo = blo.at[3, FT_HID_PAD:FT_HID_PAD + TDL[1]].set(b["t0"])
    blo = blo.at[4, 0:FDL[2]].set(b["f1"])
    blo = blo.at[4, TOTAL_POS:2 * TOTAL_POS].set(b["t1"])
    blo = blo.at[5, :SL[1]].set(b["s0"])
    blo = blo.at[6, :SL[2]].set(b["s1"])
    blo = blo.at[7, :SL[3]].set(b["s2"])
    blo = blo.at[8, :SL[4]].set(b["s3"])
    blo = blo.at[9, :SL[5]].set(b["s4"])

    return wa, wb, wc, wft, wsm, bhi, blo


# ------------------------------ wrapper ----------------------------------------
def pathogen_forward(x, packed, *, tb=None):
    """Batch-gridded forward. Weight slabs are DMA'd once (constant index maps)
    and stay VMEM-resident; x / out stream in (tb, .) blocks."""
    weights = packed
    B = x.shape[0]
    if tb is None:
        # tb=256 keeps per-step activations small enough for v7x's 64 MiB VMEM;
        # on 128 MiB parts (v5e/v6e) a larger tb (512-2048) is also fine.
        tb = B if B <= 256 else 256
    n_blk = pl.cdiv(B, tb)
    Bp = n_blk * tb
    if Bp != B:
        x = jnp.pad(x, ((0, Bp - B), (0, 0)))

    # MACs per row (includes the padded f/t stage).
    macs = (S_BOARD_MAP * BDL[1] + BDL[1] * BDL[2] + BDL[2] * BDL[3]
            + BDL[3] * BDL[4] + BDL[4] * BDL[5]
            + (TOTAL_POS + IN_FEATURES) * FT_PACK_WIDTH
            + FT_PACK_WIDTH * 2 * TOTAL_POS
            + 3 * TOTAL_POS * SL[1]
            + SL[1] * SL[2] + SL[2] * SL[3] + SL[3] * S3_PAD + S3_PAD * SL[5])
    wbytes = sum(int(a.size) * a.dtype.itemsize for a in weights)
    cost = pl.CostEstimate(
        flops=2 * macs * Bp,
        transcendentals=TOTAL_POS * Bp,
        bytes_accessed=wbytes + int(x.size) * 4 + Bp * TOTAL_POS * 4)

    def const_spec(a):
        return pl.BlockSpec(a.shape, lambda i: (0, 0))

    out = pl.pallas_call(
        pathogen_kernel,
        out_shape=jax.ShapeDtypeStruct((Bp, TOTAL_POS), jnp.float32),
        grid=(n_blk,),
        in_specs=[pl.BlockSpec((tb, IN_FEATURES), lambda i: (i, 0))]
                 + [const_spec(a) for a in weights],
        out_specs=pl.BlockSpec((tb, TOTAL_POS), lambda i: (i, 0)),
        compiler_params=pltpu.CompilerParams(
            dimension_semantics=("parallel",),               # 2 TCs on v7x
            vmem_limit_bytes=48 * 1024 * 1024),              # <= v7x 64 MiB physical
        cost_estimate=cost,
    )(x, *weights)
    return out[:B] if Bp != B else out


# ------------------------- pure-JAX reference ----------------------------------
def reference_forward(x, params):
    """Straightforward (un-packed) forward with the same bf16-weight /
    f32-accumulate numerics, for correctness checking."""
    def lin(a, wb_pair):
        w, b = wb_pair
        return jnp.dot(a.astype(jnp.bfloat16), w.astype(jnp.bfloat16),
                       preferred_element_type=jnp.float32) + b

    p = list(params)
    xb = x[:, :S_BOARD_MAP]
    xf = x[:, S_BOARD_MAP:S_BOARD_MAP + S_FLOW]
    xt = x[:, S_BOARD_MAP + S_FLOW:IN_FEATURES]
    i = 0
    for _ in range(len(BDL) - 1):
        xb = _leaky(lin(xb, p[i])); i += 1
    xf = jnp.concatenate([xb, xf], axis=1)
    for _ in range(len(FDL) - 1):
        xf = lin(xf, p[i]); i += 1
    xt = jnp.concatenate([xb, xt], axis=1)
    for _ in range(len(TDL) - 1):
        xt = lin(xt, p[i]); i += 1
    xs = jnp.concatenate([xb, xf, xt], axis=1)
    for _ in range(len(SL) - 1):
        xs = _leaky(lin(xs, p[i])); i += 1
    return jax.nn.softmax(xs, axis=1)


# ------------------------- deterministic param init ----------------------------
def init_params(key):
    """torch.nn.Linear default init: U(-1/sqrt(fan_in), 1/sqrt(fan_in))."""
    params = []
    for dims in (BDL, FDL, TDL, SL):
        for i in range(len(dims) - 1):
            key, kw, kb = jax.random.split(key, 3)
            bound = dims[i] ** -0.5
            w = jax.random.uniform(kw, (dims[i], dims[i + 1]), jnp.float32, -bound, bound)
            b = jax.random.uniform(kb, (dims[i + 1],), jnp.float32, -bound, bound)
            params.append((w, b))
    return params


# ----------------------------------- main ---------------------------------------
if __name__ == "__main__":
    key = jax.random.PRNGKey(0)
    key, kx, kp = jax.random.split(key, 3)

    params = init_params(kp)
    packed = pack_params(params)          # one-time weight preprocessing

    # 1) small batch, single grid step
    batch = 2
    x = jax.random.normal(kx, (batch, IN_FEATURES), dtype=jnp.float32)
    out = jax.block_until_ready(pathogen_forward(x, packed))
    ref = jax.block_until_ready(reference_forward(x, params))
    assert out.shape == (batch, TOTAL_POS)
    assert bool(jnp.all(jnp.isfinite(out)))
    assert bool(jnp.allclose(jnp.sum(out, axis=1), 1.0, atol=1e-3))
    assert bool(jnp.allclose(out, ref, atol=3e-3, rtol=3e-2)), \
        float(jnp.max(jnp.abs(out - ref)))

    # 2) multi-step batch grid (weights VMEM-resident, x/out streamed),
    #    non-multiple batch to exercise the padding path.
    key, kx2 = jax.random.split(key)
    x2 = jax.random.normal(kx2, (40, IN_FEATURES), dtype=jnp.float32)
    out2 = jax.block_until_ready(pathogen_forward(x2, packed, tb=16))
    ref2 = jax.block_until_ready(reference_forward(x2, params))
    assert out2.shape == (40, TOTAL_POS)
    assert bool(jnp.all(jnp.isfinite(out2)))
    assert bool(jnp.allclose(jnp.sum(out2, axis=1), 1.0, atol=1e-3))
    assert bool(jnp.allclose(out2, ref2, atol=3e-3, rtol=3e-2)), \
        float(jnp.max(jnp.abs(out2 - ref2)))

    print("KERNEL_OK")
</pallas_src>

<mosaic_0001>
module attributes {stable_mosaic.version = 11 : i64} {
  func.func @pathogen_kernel(%arg0: i32, %arg1: memref<2x112xf32, #tpu.memory_space<vmem>>, %arg2: memref<64x1024xbf16, #tpu.memory_space<vmem>>, %arg3: memref<1024x512xbf16, #tpu.memory_space<vmem>>, %arg4: memref<512x256xbf16, #tpu.memory_space<vmem>>, %arg5: memref<144x512xbf16, #tpu.memory_space<vmem>>, %arg6: memref<1232x128xbf16, #tpu.memory_space<vmem>>, %arg7: memref<2x1024xf32, #tpu.memory_space<vmem>>, %arg8: memref<10x512xf32, #tpu.memory_space<vmem>>, %arg9: memref<2x32xf32, #tpu.memory_space<vmem>>) attributes {dimension_semantics = [#tpu.dimension_semantics<parallel>], iteration_bounds = array<i64: 1>, scalar_prefetch = 0 : i64, scratch_operands = 0 : i64, tpu.core_type = #tpu.core_type<tc>, window_params = [{transform_indices = @transform_0, window_bounds = array<i64: 2, 112>}, {pipeline_mode = #tpu.pipeline_mode<synchronous>, transform_indices = @transform_1, window_bounds = array<i64: 64, 1024>}, {pipeline_mode = #tpu.pipeline_mode<synchronous>, transform_indices = @transform_2, window_bounds = array<i64: 1024, 512>}, {pipeline_mode = #tpu.pipeline_mode<synchronous>, transform_indices = @transform_3, window_bounds = array<i64: 512, 256>}, {pipeline_mode = #tpu.pipeline_mode<synchronous>, transform_indices = @transform_4, window_bounds = array<i64: 144, 512>}, {pipeline_mode = #tpu.pipeline_mode<synchronous>, transform_indices = @transform_5, window_bounds = array<i64: 1232, 128>}, {pipeline_mode = #tpu.pipeline_mode<synchronous>, transform_indices = @transform_6, window_bounds = array<i64: 2, 1024>}, {pipeline_mode = #tpu.pipeline_mode<synchronous>, transform_indices = @transform_7, window_bounds = array<i64: 10, 512>}, {transform_indices = @transform_8, window_bounds = array<i64: 2, 32>}]} {
    %c0 = arith.constant 0 : index
    %c0_0 = arith.constant 0 : index
    %0 = vector.load %arg1[%c0, %c0_0] : memref<2x112xf32, #tpu.memory_space<vmem>>, vector<2x112xf32>
    %1 = vector.extract_strided_slice %0 {offsets = [0, 0], sizes = [2, 64], strides = [1, 1]} : vector<2x112xf32> to vector<2x64xf32>
    %c0_1 = arith.constant 0 : index
    %c0_2 = arith.constant 0 : index
    %2 = vector.load %arg2[%c0_1, %c0_2] : memref<64x1024xbf16, #tpu.memory_space<vmem>>, vector<64x1024xbf16>
    %3 = arith.truncf %1 : vector<2x64xf32> to vector<2x64xbf16>
    %cst = arith.constant dense<0.000000e+00> : vector<2x1024xf32>
    %4 = tpu.matmul %3, %2, %cst {dimension_numbers = #tpu.dot_dimension_numbers<[1], [0], [0], [1], [0, 0, 1, 1], [], []>} : vector<2x64xbf16>, vector<64x1024xbf16>, vector<2x1024xf32> -> vector<2x1024xf32>
    %c0_3 = arith.constant 0 : index
    %c0_4 = arith.constant 0 : index
    %5 = vector.load %arg7[%c0_3, %c0_4] : memref<2x1024xf32, #tpu.memory_space<vmem>>, vector<1x1024xf32>
    %6 = vector.broadcast %5 : vector<1x1024xf32> to vector<2x1024xf32>
    %7 = arith.addf %4, %6 : vector<2x1024xf32>
    %cst_5 = arith.constant 0.000000e+00 : f32
    %8 = vector.broadcast %cst_5 : f32 to vector<2x1024xf32>
    %9 = arith.cmpf ogt, %7, %8 : vector<2x1024xf32>
    %cst_6 = arith.constant 0.00999999977 : f32
    %10 = vector.broadcast %cst_6 : f32 to vector<2x1024xf32>
    %11 = arith.mulf %10, %7 : vector<2x1024xf32>
    %12 = arith.select %9, %7, %11 : vector<2x1024xi1>, vector<2x1024xf32>
    %c0_7 = arith.constant 0 : index
    %c0_8 = arith.constant 0 : index
    %13 = vector.load %arg3[%c0_7, %c0_8] : memref<1024x512xbf16, #tpu.memory_space<vmem>>, vector<1024x512xbf16>
    %14 = arith.truncf %12 : vector<2x1024xf32> to vector<2x1024xbf16>
    %cst_9 = arith.constant dense<0.000000e+00> : vector<2x512xf32>
    %15 = tpu.matmul %14, %13, %cst_9 {dimension_numbers = #tpu.dot_dimension_numbers<[1], [0], [0], [1], [0, 0, 1, 1], [], []>} : vector<2x1024xbf16>, vector<1024x512xbf16>, vector<2x512xf32> -> vector<2x512xf32>
    %c1 = arith.constant 1 : index
    %c0_10 = arith.constant 0 : index
    %16 = vector.load %arg7[%c1, %c0_10] : memref<2x1024xf32, #tpu.memory_space<vmem>>, vector<1x512xf32>
    %17 = vector.broadcast %16 : vector<1x512xf32> to vector<2x512xf32>
    %18 = arith.addf %15, %17 : vector<2x512xf32>
    %cst_11 = arith.constant 0.000000e+00 : f32
    %19 = vector.broadcast %cst_11 : f32 to vector<2x512xf32>
    %20 = arith.cmpf ogt, %18, %19 : vector<2x512xf32>
    %cst_12 = arith.constant 0.00999999977 : f32
    %21 = vector.broadcast %cst_12 : f32 to vector<2x512xf32>
    %22 = arith.mulf %21, %18 : vector<2x512xf32>
    %23 = arith.select %20, %18, %22 : vector<2x512xi1>, vector<2x512xf32>
    %c0_13 = arith.constant 0 : index
    %c0_14 = arith.constant 0 : index
    %24 = vector.load %arg4[%c0_13, %c0_14] : memref<512x256xbf16, #tpu.memory_space<vmem>>, vector<512x256xbf16>
    %25 = arith.truncf %23 : vector<2x512xf32> to vector<2x512xbf16>
    %cst_15 = arith.constant dense<0.000000e+00> : vector<2x256xf32>
    %26 = tpu.matmul %25, %24, %cst_15 {dimension_numbers = #tpu.dot_dimension_numbers<[1], [0], [0], [1], [0, 0, 1, 1], [], []>} : vector<2x512xbf16>, vector<512x256xbf16>, vector<2x256xf32> -> vector<2x256xf32>
    %c0_16 = arith.constant 0 : index
    %c0_17 = arith.constant 0 : index
    %27 = vector.load %arg8[%c0_16, %c0_17] : memref<10x512xf32, #tpu.memory_space<vmem>>, vector<1x256xf32>
    %28 = vector.broadcast %27 : vector<1x256xf32> to vector<2x256xf32>
    %29 = arith.addf %26, %28 : vector<2x256xf32>
    %cst_18 = arith.constant 0.000000e+00 : f32
    %30 = vector.broadcast %cst_18 : f32 to vector<2x256xf32>
    %31 = arith.cmpf ogt, %29, %30 : vector<2x256xf32>
    %cst_19 = arith.constant 0.00999999977 : f32
    %32 = vector.broadcast %cst_19 : f32 to vector<2x256xf32>
    %33 = arith.mulf %32, %29 : vector<2x256xf32>
    %34 = arith.select %31, %29, %33 : vector<2x256xi1>, vector<2x256xf32>
    %c0_20 = arith.constant 0 : index
    %c0_21 = arith.constant 0 : index
    %35 = vector.load %arg6[%c0_20, %c0_21] : memref<1232x128xbf16, #tpu.memory_space<vmem>>, vector<256x128xbf16>
    %36 = arith.truncf %34 : vector<2x256xf32> to vector<2x256xbf16>
    %cst_22 = arith.constant dense<0.000000e+00> : vector<2x128xf32>
    %37 = tpu.matmul %36, %35, %cst_22 {dimension_numbers = #tpu.dot_dimension_numbers<[1], [0], [0], [1], [0, 0, 1, 1], [], []>} : vector<2x256xbf16>, vector<256x128xbf16>, vector<2x128xf32> -> vector<2x128xf32>
    %c1_23 = arith.constant 1 : index
    %c0_24 = arith.constant 0 : index
    %38 = vector.load %arg8[%c1_23, %c0_24] : memref<10x512xf32, #tpu.memory_space<vmem>>, vector<1x128xf32>
    %39 = vector.broadcast %38 : vector<1x128xf32> to vector<2x128xf32>
    %40 = arith.addf %37, %39 : vector<2x128xf32>
    %cst_25 = arith.constant 0.000000e+00 : f32
    %41 = vector.broadcast %cst_25 : f32 to vector<2x128xf32>
    %42 = arith.cmpf ogt, %40, %41 : vector<2x128xf32>
    %cst_26 = arith.constant 0.00999999977 : f32
    %43 = vector.broadcast %cst_26 : f32 to vector<2x128xf32>
    %44 = arith.mulf %43, %40 : vector<2x128xf32>
    %45 = arith.select %42, %40, %44 : vector<2x128xi1>, vector<2x128xf32>
    %c256 = arith.constant 256 : index
    %c0_27 = arith.constant 0 : index
    %46 = vector.load %arg6[%c256, %c0_27] : memref<1232x128xbf16, #tpu.memory_space<vmem>>, vector<128x32xbf16>
    %47 = arith.truncf %45 : vector<2x128xf32> to vector<2x128xbf16>
    %cst_28 = arith.constant dense<0.000000e+00> : vector<2x32xf32>
    %48 = tpu.matmul %47, %46, %cst_28 {dimension_numbers = #tpu.dot_dimension_numbers<[1], [0], [0], [1], [0, 0, 1, 1], [], []>} : vector<2x128xbf16>, vector<128x32xbf16>, vector<2x32xf32> -> vector<2x32xf32>
    %c2 = arith.constant 2 : index
    %c0_29 = arith.constant 0 : index
    %49 = vector.load %arg8[%c2, %c0_29] : memref<10x512xf32, #tpu.memory_space<vmem>>, vector<1x32xf32>
    %50 = vector.broadcast %49 : vector<1x32xf32> to vector<2x32xf32>
    %51 = arith.addf %48, %50 : vector<2x32xf32>
    %cst_30 = arith.constant 0.000000e+00 : f32
    %52 = vector.broadcast %cst_30 : f32 to vector<2x32xf32>
    %53 = arith.cmpf ogt, %51, %52 : vector<2x32xf32>
    %cst_31 = arith.constant 0.00999999977 : f32
    %54 = vector.broadcast %cst_31 : f32 to vector<2x32xf32>
    %55 = arith.mulf %54, %51 : vector<2x32xf32>
    %56 = arith.select %53, %51, %55 : vector<2x32xi1>, vector<2x32xf32>
    %c0_32 = arith.constant 0 : index
    %c0_33 = arith.constant 0 : index
    %57 = vector.load %arg5[%c0_32, %c0_33] : memref<144x512xbf16, #tpu.memory_space<vmem>>, vector<32x512xbf16>
    %58 = arith.truncf %56 : vector<2x32xf32> to vector<2x32xbf16>
    %cst_34 = arith.constant dense<0.000000e+00> : vector<2x512xf32>
    %59 = tpu.matmul %58, %57, %cst_34 {dimension_numbers = #tpu.dot_dimension_numbers<[1], [0], [0], [1], [0, 0, 1, 1], [], []>} : vector<2x32xbf16>, vector<32x512xbf16>, vector<2x512xf32> -> vector<2x512xf32>
    %c32 = arith.constant 32 : index
    %c0_35 = arith.constant 0 : index
    %60 = vector.load %arg5[%c32, %c0_35] : memref<144x512xbf16, #tpu.memory_space<vmem>>, vector<112x512xbf16>
    %61 = arith.truncf %0 : vector<2x112xf32> to vector<2x112xbf16>
    %cst_36 = arith.constant dense<0.000000e+00> : vector<2x512xf32>
    %62 = tpu.matmul %61, %60, %cst_36 {dimension_numbers = #tpu.dot_dimension_numbers<[1], [0], [0], [1], [0, 0, 1, 1], [], []>} : vector<2x112xbf16>, vector<112x512xbf16>, vector<2x512xf32> -> vector<2x512xf32>
    %63 = arith.addf %59, %62 : vector<2x512xf32>
    %c3 = arith.constant 3 : index
    %c0_37 = arith.constant 0 : index
    %64 = vector.load %arg8[%c3, %c0_37] : memref<10x512xf32, #tpu.memory_space<vmem>>, vector<1x512xf32>
    %65 = vector.broadcast %64 : vector<1x512xf32> to vector<2x512xf32>
    %66 = arith.addf %63, %65 : vector<2x512xf32>
    %c384 = arith.constant 384 : index
    %c0_38 = arith.constant 0 : index
    %67 = vector.load %arg6[%c384, %c0_38] : memref<1232x128xbf16, #tpu.memory_space<vmem>>, vector<512x64xbf16>
    %68 = arith.truncf %66 : vector<2x512xf32> to vector<2x512xbf16>
    %cst_39 = arith.constant dense<0.000000e+00> : vector<2x64xf32>
    %69 = tpu.matmul %68, %67, %cst_39 {dimension_numbers = #tpu.dot_dimension_numbers<[1], [0], [0], [1], [0, 0, 1, 1], [], []>} : vector<2x512xbf16>, vector<512x64xbf16>, vector<2x64xf32> -> vector<2x64xf32>
    %c4 = arith.constant 4 : index
    %c0_40 = arith.constant 0 : index
    %70 = vector.load %arg8[%c4, %c0_40] : memref<10x512xf32, #tpu.memory_space<vmem>>, vector<1x64xf32>
    %71 = vector.broadcast %70 : vector<1x64xf32> to vector<2x64xf32>
    %72 = arith.addf %69, %71 : vector<2x64xf32>
    %c896 = arith.constant 896 : index
    %c0_41 = arith.constant 0 : index
    %73 = vector.load %arg6[%c896, %c0_41] : memref<1232x128xbf16, #tpu.memory_space<vmem>>, vector<32x128xbf16>
    %74 = arith.truncf %56 : vector<2x32xf32> to vector<2x32xbf16>
    %cst_42 = arith.constant dense<0.000000e+00> : vector<2x128xf32>
    %75 = tpu.matmul %74, %73, %cst_42 {dimension_numbers = #tpu.dot_dimension_numbers<[1], [0], [0], [1], [0, 0, 1, 1], [], []>} : vector<2x32xbf16>, vector<32x128xbf16>, vector<2x128xf32> -> vector<2x128xf32>
    %c928 = arith.constant 928 : index
    %c0_43 = arith.constant 0 : index
    %76 = vector.load %arg6[%c928, %c0_43] : memref<1232x128xbf16, #tpu.memory_space<vmem>>, vector<64x128xbf16>
    %77 = arith.truncf %72 : vector<2x64xf32> to vector<2x64xbf16>
    %cst_44 = arith.constant dense<0.000000e+00> : vector<2x128xf32>
    %78 = tpu.matmul %77, %76, %cst_44 {dimension_numbers = #tpu.dot_dimension_numbers<[1], [0], [0], [1], [0, 0, 1, 1], [], []>} : vector<2x64xbf16>, vector<64x128xbf16>, vector<2x128xf32> -> vector<2x128xf32>
    %79 = arith.addf %75, %78 : vector<2x128xf32>
    %c5 = arith.constant 5 : index
    %c0_45 = arith.constant 0 : index
    %80 = vector.load %arg8[%c5, %c0_45] : memref<10x512xf32, #tpu.memory_space<vmem>>, vector<1x128xf32>
    %81 = vector.broadcast %80 : vector<1x128xf32> to vector<2x128xf32>
    %82 = arith.addf %79, %81 : vector<2x128xf32>
    %cst_46 = arith.constant 0.000000e+00 : f32
    %83 = vector.broadcast %cst_46 : f32 to vector<2x128xf32>
    %84 = arith.cmpf ogt, %82, %83 : vector<2x128xf32>
    %cst_47 = arith.constant 0.00999999977 : f32
    %85 = vector.broadcast %cst_47 : f32 to vector<2x128xf32>
    %86 = arith.mulf %85, %82 : vector<2x128xf32>
    %87 = arith.select %84, %82, %86 : vector<2x128xi1>, vector<2x128xf32>
    %c992 = arith.constant 992 : index
    %c0_48 = arith.constant 0 : index
    %88 = vector.load %arg6[%c992, %c0_48] : memref<1232x128xbf16, #tpu.memory_space<vmem>>, vector<128x64xbf16>
    %89 = arith.truncf %87 : vector<2x128xf32> to vector<2x128xbf16>
    %cst_49 = arith.constant dense<0.000000e+00> : vector<2x64xf32>
    %90 = tpu.matmul %89, %88, %cst_49 {dimension_numbers = #tpu.dot_dimension_numbers<[1], [0], [0], [1], [0, 0, 1, 1], [], []>} : vector<2x128xbf16>, vector<128x64xbf16>, vector<2x64xf32> -> vector<2x64xf32>
    %c6 = arith.constant 6 : index
    %c0_50 = arith.constant 0 : index
    %91 = vector.load %arg8[%c6, %c0_50] : memref<10x512xf32, #tpu.memory_space<vmem>>, vector<1x64xf32>
    %92 = vector.broadcast %91 : vector<1x64xf32> to vector<2x64xf32>
    %93 = arith.addf %90, %92 : vector<2x64xf32>
    %cst_51 = arith.constant 0.000000e+00 : f32
    %94 = vector.broadcast %cst_51 : f32 to vector<2x64xf32>
    %95 = arith.cmpf ogt, %93, %94 : vector<2x64xf32>
    %cst_52 = arith.constant 0.00999999977 : f32
    %96 = vector.broadcast %cst_52 : f32 to vector<2x64xf32>
    %97 = arith.mulf %96, %93 : vector<2x64xf32>
    %98 = arith.select %95, %93, %97 : vector<2x64xi1>, vector<2x64xf32>
    %c1120 = arith.constant 1120 : index
    %c0_53 = arith.constant 0 : index
    %99 = vector.load %arg6[%c1120, %c0_53] : memref<1232x128xbf16, #tpu.memory_space<vmem>>, vector<64x32xbf16>
    %100 = arith.truncf %98 : vector<2x64xf32> to vector<2x64xbf16>
    %cst_54 = arith.constant dense<0.000000e+00> : vector<2x32xf32>
    %101 = tpu.matmul %100, %99, %cst_54 {dimension_numbers = #tpu.dot_dimension_numbers<[1], [0], [0], [1], [0, 0, 1, 1], [], []>} : vector<2x64xbf16>, vector<64x32xbf16>, vector<2x32xf32> -> vector<2x32xf32>
    %c7 = arith.constant 7 : index
    %c0_55 = arith.constant 0 : index
    %102 = vector.load %arg8[%c7, %c0_55] : memref<10x512xf32, #tpu.memory_space<vmem>>, vector<1x32xf32>
    %103 = vector.broadcast %102 : vector<1x32xf32> to vector<2x32xf32>
    %104 = arith.addf %101, %103 : vector<2x32xf32>
    %cst_56 = arith.constant 0.000000e+00 : f32
    %105 = vector.broadcast %cst_56 : f32 to vector<2x32xf32>
    %106 = arith.cmpf ogt, %104, %105 : vector<2x32xf32>
    %cst_57 = arith.constant 0.00999999977 : f32
    %107 = vector.broadcast %cst_57 : f32 to vector<2x32xf32>
    %108 = arith.mulf %107, %104 : vector<2x32xf32>
    %109 = arith.select %106, %104, %108 : vector<2x32xi1>, vector<2x32xf32>
    %c1184 = arith.constant 1184 : index
    %c0_58 = arith.constant 0 : index
    %110 = vector.load %arg6[%c1184, %c0_58] : memref<1232x128xbf16, #tpu.memory_space<vmem>>, vector<32x16xbf16>
    %111 = arith.truncf %109 : vector<2x32xf32> to vector<2x32xbf16>
    %cst_59 = arith.constant dense<0.000000e+00> : vector<2x16xf32>
    %112 = tpu.matmul %111, %110, %cst_59 {dimension_numbers = #tpu.dot_dimension_numbers<[1], [0], [0], [1], [0, 0, 1, 1], [], []>} : vector<2x32xbf16>, vector<32x16xbf16>, vector<2x16xf32> -> vector<2x16xf32>
    %c8 = arith.constant 8 : index
    %c0_60 = arith.constant 0 : index
    %113 = vector.load %arg8[%c8, %c0_60] : memref<10x512xf32, #tpu.memory_space<vmem>>, vector<1x16xf32>
    %114 = vector.broadcast %113 : vector<1x16xf32> to vector<2x16xf32>
    %115 = arith.addf %112, %114 : vector<2x16xf32>
    %cst_61 = arith.constant 0.000000e+00 : f32
    %116 = vector.broadcast %cst_61 : f32 to vector<2x16xf32>
    %117 = arith.cmpf ogt, %115, %116 : vector<2x16xf32>
    %cst_62 = arith.constant 0.00999999977 : f32
    %118 = vector.broadcast %cst_62 : f32 to vector<2x16xf32>
    %119 = arith.mulf %118, %115 : vector<2x16xf32>
    %120 = arith.select %117, %115, %119 : vector<2x16xi1>, vector<2x16xf32>
    %c1216 = arith.constant 1216 : index
    %c0_63 = arith.constant 0 : index
    %121 = vector.load %arg6[%c1216, %c0_63] : memref<1232x128xbf16, #tpu.memory_space<vmem>>, vector<16x32xbf16>
    %122 = arith.truncf %120 : vector<2x16xf32> to vector<2x16xbf16>
    %cst_64 = arith.constant dense<0.000000e+00> : vector<2x32xf32>
    %123 = tpu.matmul %122, %121, %cst_64 {dimension_numbers = #tpu.dot_dimension_numbers<[1], [0], [0], [1], [0, 0, 1, 1], [], []>} : vector<2x16xbf16>, vector<16x32xbf16>, vector<2x32xf32> -> vector<2x32xf32>
    %c9 = arith.constant 9 : index
    %c0_65 = arith.constant 0 : index
    %124 = vector.load %arg8[%c9, %c0_65] : memref<10x512xf32, #tpu.memory_space<vmem>>, vector<1x32xf32>
    %125 = vector.broadcast %124 : vector<1x32xf32> to vector<2x32xf32>
    %126 = arith.addf %123, %125 : vector<2x32xf32>
    %cst_66 = arith.constant 0.000000e+00 : f32
    %127 = vector.broadcast %cst_66 : f32 to vector<2x32xf32>
    %128 = arith.cmpf ogt, %126, %127 : vector<2x32xf32>
    %cst_67 = arith.constant 0.00999999977 : f32
    %129 = vector.broadcast %cst_67 : f32 to vector<2x32xf32>
    %130 = arith.mulf %129, %126 : vector<2x32xf32>
    %131 = arith.select %128, %126, %130 : vector<2x32xi1>, vector<2x32xf32>
    %cst_68 = arith.constant dense<0xFF800000> : vector<2xf32>
    %132 = vector.multi_reduction <maximumf>, %131, %cst_68 [1] : vector<2x32xf32> to vector<2xf32>
    %133 = vector.shape_cast %132 : vector<2xf32> to vector<2x1xf32>
    %134 = vector.broadcast %133 : vector<2x1xf32> to vector<2x32xf32>
    %135 = arith.subf %131, %134 : vector<2x32xf32>
    %136 = math.exp %135 : vector<2x32xf32>
    %cst_69 = arith.constant dense<0.000000e+00> : vector<2xf32>
    %137 = vector.multi_reduction <add>, %136, %cst_69 [1] : vector<2x32xf32> to vector<2xf32>
    %138 = vector.shape_cast %137 : vector<2xf32> to vector<2x1xf32>
    %139 = vector.broadcast %138 : vector<2x1xf32> to vector<2x32xf32>
    %140 = arith.divf %136, %139 : vector<2x32xf32>
    %c0_70 = arith.constant 0 : index
    %c0_71 = arith.constant 0 : index
    %141 = vector.load %arg9[%c0_70, %c0_71] : memref<2x32xf32, #tpu.memory_space<vmem>>, vector<2x32xf32>
    tpu.vector_store %arg9[%c0_70, %c0_71], %140 {strides = array<i32>} : memref<2x32xf32, #tpu.memory_space<vmem>>, vector<2x32xf32>,
    return
  }
  func.func @transform_0(%arg0: i32) -> (i32, i32) {
    %c0_i32 = arith.constant 0 : i32
    %c0_i32_0 = arith.constant 0 : i32
    return %arg0, %c0_i32 : i32, i32
  }
  func.func @transform_1(%arg0: i32) -> (i32, i32) {
    %c0_i32 = arith.constant 0 : i32
    %c0_i32_0 = arith.constant 0 : i32
    %c0_i32_1 = arith.constant 0 : i32
    return %c0_i32, %c0_i32_0 : i32, i32
  }
  func.func @transform_2(%arg0: i32) -> (i32, i32) {
    %c0_i32 = arith.constant 0 : i32
    %c0_i32_0 = arith.constant 0 : i32
    %c0_i32_1 = arith.constant 0 : i32
    return %c0_i32, %c0_i32_0 : i32, i32
  }
  func.func @transform_3(%arg0: i32) -> (i32, i32) {
    %c0_i32 = arith.constant 0 : i32
    %c0_i32_0 = arith.constant 0 : i32
    %c0_i32_1 = arith.constant 0 : i32
    return %c0_i32, %c0_i32_0 : i32, i32
  }
  func.func @transform_4(%arg0: i32) -> (i32, i32) {
    %c0_i32 = arith.constant 0 : i32
    %c0_i32_0 = arith.constant 0 : i32
    %c0_i32_1 = arith.constant 0 : i32
    return %c0_i32, %c0_i32_0 : i32, i32
  }
  func.func @transform_5(%arg0: i32) -> (i32, i32) {
    %c0_i32 = arith.constant 0 : i32
    %c0_i32_0 = arith.constant 0 : i32
    %c0_i32_1 = arith.constant 0 : i32
    return %c0_i32, %c0_i32_0 : i32, i32
  }
  func.func @transform_6(%arg0: i32) -> (i32, i32) {
    %c0_i32 = arith.constant 0 : i32
    %c0_i32_0 = arith.constant 0 : i32
    %c0_i32_1 = arith.constant 0 : i32
    return %c0_i32, %c0_i32_0 : i32, i32
  }
  func.func @transform_7(%arg0: i32) -> (i32, i32) {
    %c0_i32 = arith.constant 0 : i32
    %c0_i32_0 = arith.constant 0 : i32
    %c0_i32_1 = arith.constant 0 : i32
    return %c0_i32, %c0_i32_0 : i32, i32
  }
  func.func @transform_8(%arg0: i32) -> (i32, i32) {
    %c0_i32 = arith.constant 0 : i32
    %c0_i32_0 = arith.constant 0 : i32
    return %arg0, %c0_i32 : i32, i32
  }
}

</mosaic_0001>

<llo_original>
// kernel: tpu_custom_call.1
$region0: #{tpu_custom_call.1}
  #allocation0 [shape = 'u32[]', space=smem, size = 0x4, offset = 0x4, fixed_abs, tag = 'smem constant byte address 0x4 - core index']
  #allocation1 [shape = 'u32[144,128]{1,0:T(1,128)}', space=vmem, size = 0x12000, scoped, tag = 'internal scratch']
  %s0 = inlined_call_operand.hbm [shape: f32[2,112], index: 0, kind: input, shape index: {}]
  %s1 = inlined_call_operand.hbm [shape: bf16[64,1024], index: 1, kind: input, shape index: {}]
  %s2 = inlined_call_operand.hbm [shape: bf16[1024,512], index: 2, kind: input, shape index: {}]
  %s3 = inlined_call_operand.hbm [shape: bf16[512,256], index: 3, kind: input, shape index: {}]
  %s4 = inlined_call_operand.hbm [shape: bf16[144,512], index: 4, kind: input, shape index: {}]
  %s5 = inlined_call_operand.hbm [shape: bf16[1232,128], index: 5, kind: input, shape index: {}]
  %s6 = inlined_call_operand.hbm [shape: f32[2,1024], index: 6, kind: input, shape index: {}]
  %s7 = inlined_call_operand.hbm [shape: f32[10,512], index: 7, kind: input, shape index: {}]
  %s8 = inlined_call_operand.hbm [shape: f32[2,32], index: 8, kind: output, shape index: {}]
  %s9 = sld [smem:[#allocation0]]
  $region74: #{tpu_custom_call.1} parent=0
    _
  %s11 = ssub.s32 1, %s9
  %s12 = scalar_select 0, %s11, %s9
  $region1: #{tpu_custom_call.1} parent=0
    #allocation2 [shape = 'u8[1024]{0}', space=vmem, size = 0x400, scoped, tag = 'input window, operand 0, single buffered']
    #allocation3 [shape = 's32[1]{0}', space=sflag, size = 0x4, scoped, tag = 'scoped memory for tpu_custom_call.1']
    #allocation4 [shape = 's32[1]{0}', space=sflag, size = 0x4, scoped, tag = 'scoped memory for tpu_custom_call.1']
    #allocation5 [shape = 'u8[131072]{0}', space=vmem, size = 0x20000, scoped, tag = 'input window, operand 1, single buffered']
    #allocation6 [shape = 's32[1]{0}', space=sflag, size = 0x4, scoped, tag = 'scoped memory for tpu_custom_call.1']
    #allocation7 [shape = 'u8[1048576]{0}', space=vmem, size = 0x100000, scoped, tag = 'input window, operand 2, single buffered']
    #allocation8 [shape = 'u8[262144]{0}', space=vmem, size = 0x40000, scoped, tag = 'input window, operand 3, single buffered']
    #allocation9 [shape = 's32[1]{0}', space=sflag, size = 0x4, scoped, tag = 'scoped memory for tpu_custom_call.1']
    #allocation10 [shape = 'u8[147456]{0}', space=vmem, size = 0x24000, scoped, tag = 'input window, operand 4, single buffered']
    #allocation11 [shape = 'u8[315392]{0}', space=vmem, size = 0x4d000, scoped, tag = 'input window, operand 5, single buffered']
    #allocation12 [shape = 's32[1]{0}', space=sflag, size = 0x4, scoped, tag = 'scoped memory for tpu_custom_call.1']
    #allocation13 [shape = 'u8[8192]{0}', space=vmem, size = 0x2000, scoped, tag = 'input window, operand 6, single buffered']
    #allocation14 [shape = 'u8[32768]{0}', space=vmem, size = 0x8000, scoped, tag = 'input window, operand 7, single buffered']
    #allocation15 [shape = 's32[1]{0}', space=sflag, size = 0x4, scoped, tag = 'scoped memory for tpu_custom_call.1']
    #allocation16 [shape = 'u8[1024]{0}', space=vmem, size = 0x400, scoped, tag = 'output window, operand 0, single buffered']
    %13 = vsyncpa [#allocation3], 0
    %14 = vsyncpa [#allocation6], 0
    %15 = vsyncpa [#allocation9], 0
    %16 = vsyncpa [#allocation12], 0
    %17 = vsyncpa [#allocation15], 0
    %18 = vsyncpa [#allocation4], 0
    // Predicated region
    $region2: #{tpu_custom_call.1} parent=1 // pred_check
      _
    $region3: #{tpu_custom_call.1} parent=1 // pred_check_branch
      %20 = sbr.rel (0) target = $region5
    $region4: #{tpu_custom_call.1} parent=1 // pred_region
      %s22 = ssub.s32 32, 32
      %23 = vsyncadd [#allocation3], %s22
      %s25 = sshll.u32 [#allocation2], 4
      %s26 = int_to_ptr.vmem [resolvable:$true] %s25
      %28 = dma.hbm_to_vmem [thread:$0]  %s0, 32, %s26, [#allocation3]
    $region5: #{tpu_custom_call.1} parent=1 // pred_fallthru
      _
    // Predicated region
    $region6: #{tpu_custom_call.1} parent=1 // pred_check
      _
    $region7: #{tpu_custom_call.1} parent=1 // pred_check_branch
      %30 = sbr.rel (0) target = $region9
    $region8: #{tpu_custom_call.1} parent=1 // pred_region
      %s32 = ssub.s32 4096, 4096
      %33 = vsyncadd [#allocation6], %s32
      %s34 = sshll.u32 [#allocation5], 4
      %s35 = int_to_ptr.vmem [resolvable:$true] %s34
      %40 = dma.hbm_to_vmem [thread:$0]  %s1, 4096, %s35, [#allocation6], 512, 512, 32
    $region9: #{tpu_custom_call.1} parent=1 // pred_fallthru
      _
    // Predicated region
    $region10: #{tpu_custom_call.1} parent=1 // pred_check
      _
    $region11: #{tpu_custom_call.1} parent=1 // pred_check_branch
      %42 = sbr.rel (0) target = $region13
    $region12: #{tpu_custom_call.1} parent=1 // pred_region
      %s44 = ssub.s32 32768, 32768
      %45 = vsyncadd [#allocation6], %s44
      %s46 = sshll.u32 [#allocation7], 4
      %s47 = int_to_ptr.vmem [resolvable:$true] %s46
      %52 = dma.hbm_to_vmem [thread:$0]  %s2, 32768, %s47, [#allocation6], 256, 256, 16
    $region13: #{tpu_custom_call.1} parent=1 // pred_fallthru
      _
    // Predicated region
    $region14: #{tpu_custom_call.1} parent=1 // pred_check
      _
    $region15: #{tpu_custom_call.1} parent=1 // pred_check_branch
      %54 = sbr.rel (0) target = $region17
    $region16: #{tpu_custom_call.1} parent=1 // pred_region
      %s56 = ssub.s32 8192, 8192
      %57 = vsyncadd [#allocation9], %s56
      %s58 = sshll.u32 [#allocation8], 4
      %s59 = int_to_ptr.vmem [resolvable:$true] %s58
      %64 = dma.hbm_to_vmem [thread:$0]  %s3, 8192, %s59, [#allocation9], 128, 128, 8
    $region17: #{tpu_custom_call.1} parent=1 // pred_fallthru
      _
    // Predicated region
    $region18: #{tpu_custom_call.1} parent=1 // pred_check
      _
    $region19: #{tpu_custom_call.1} parent=1 // pred_check_branch
      %66 = sbr.rel (0) target = $region21
    $region20: #{tpu_custom_call.1} parent=1 // pred_region
      %s68 = ssub.s32 4608, 4608
      %69 = vsyncadd [#allocation9], %s68
      %s70 = sshll.u32 [#allocation10], 4
      %s71 = int_to_ptr.vmem [resolvable:$true] %s70
      %76 = dma.hbm_to_vmem [thread:$0]  %s4, 4608, %s71, [#allocation9], 256, 256, 16
    $region21: #{tpu_custom_call.1} parent=1 // pred_fallthru
      _
    // Predicated region
    $region22: #{tpu_custom_call.1} parent=1 // pred_check
      _
    $region23: #{tpu_custom_call.1} parent=1 // pred_check_branch
      %78 = sbr.rel (0) target = $region25
    $region24: #{tpu_custom_call.1} parent=1 // pred_region
      %s80 = ssub.s32 9856, 9856
      %81 = vsyncadd [#allocation12], %s80
      %s82 = sshll.u32 [#allocation11], 4
      %s83 = int_to_ptr.vmem [resolvable:$true] %s82
      %88 = dma.hbm_to_vmem [thread:$0]  %s5, 9856, %s83, [#allocation12], 64, 64, 4
    $region25: #{tpu_custom_call.1} parent=1 // pred_fallthru
      _
    // Predicated region
    $region26: #{tpu_custom_call.1} parent=1 // pred_check
      _
    $region27: #{tpu_custom_call.1} parent=1 // pred_check_branch
      %90 = sbr.rel (0) target = $region29
    $region28: #{tpu_custom_call.1} parent=1 // pred_region
      %s92 = ssub.s32 256, 256
      %93 = vsyncadd [#allocation12], %s92
      %s95 = sshll.u32 [#allocation13], 4
      %s96 = int_to_ptr.vmem [resolvable:$true] %s95
      %98 = dma.hbm_to_vmem [thread:$0]  %s6, 256, %s96, [#allocation12]
    $region29: #{tpu_custom_call.1} parent=1 // pred_fallthru
      _
    // Predicated region
    $region30: #{tpu_custom_call.1} parent=1 // pred_check
      _
    $region31: #{tpu_custom_call.1} parent=1 // pred_check_branch
      %100 = sbr.rel (0) target = $region33
    $region32: #{tpu_custom_call.1} parent=1 // pred_region
      %s102 = ssub.s32 1024, 1024
      %103 = vsyncadd [#allocation15], %s102
      %s104 = sshll.u32 [#allocation14], 4
      %s105 = int_to_ptr.vmem [resolvable:$true] %s104
      %110 = dma.hbm_to_vmem [thread:$0]  %s7, 1024, %s105, [#allocation15], 512, 512, 32
    $region33: #{tpu_custom_call.1} parent=1 // pred_fallthru
      _
    // Predicated region
    $region34: #{tpu_custom_call.1} parent=1 // pred_check
      _
    $region35: #{tpu_custom_call.1} parent=1 // pred_check_branch
      %112 = sbr.rel (0) target = $region37
    $region36: #{tpu_custom_call.1} parent=1 // pred_region
      %113 = dma.done [#allocation3], 32
    $region37: #{tpu_custom_call.1} parent=1 // pred_fallthru
      _
    // Predicated region
    $region38: #{tpu_custom_call.1} parent=1 // pred_check
      _
    $region39: #{tpu_custom_call.1} parent=1 // pred_check_branch
      %115 = sbr.rel (0) target = $region41
    $region40: #{tpu_custom_call.1} parent=1 // pred_region
      %116 = dma.done [#allocation6], 4096
    $region41: #{tpu_custom_call.1} parent=1 // pred_fallthru
      _
    // Predicated region
    $region42: #{tpu_custom_call.1} parent=1 // pred_check
      _
    $region43: #{tpu_custom_call.1} parent=1 // pred_check_branch
      %118 = sbr.rel (0) target = $region45
    $region44: #{tpu_custom_call.1} parent=1 // pred_region
      %119 = dma.done [#allocation6], 32768
    $region45: #{tpu_custom_call.1} parent=1 // pred_fallthru
      _
    // Predicated region
    $region46: #{tpu_custom_call.1} parent=1 // pred_check
      _
    $region47: #{tpu_custom_call.1} parent=1 // pred_check_branch
      %121 = sbr.rel (0) target = $region49
    $region48: #{tpu_custom_call.1} parent=1 // pred_region
      %122 = dma.done [#allocation9], 8192
    $region49: #{tpu_custom_call.1} parent=1 // pred_fallthru
      _
    // Predicated region
    $region50: #{tpu_custom_call.1} parent=1 // pred_check
      _
    $region51: #{tpu_custom_call.1} parent=1 // pred_check_branch
      %124 = sbr.rel (0) target = $region53
    $region52: #{tpu_custom_call.1} parent=1 // pred_region
      %125 = dma.done [#allocation9], 4608
    $region53: #{tpu_custom_call.1} parent=1 // pred_fallthru
      _
    // Predicated region
    $region54: #{tpu_custom_call.1} parent=1 // pred_check
      _
    $region55: #{tpu_custom_call.1} parent=1 // pred_check_branch
      %127 = sbr.rel (0) target = $region57
    $region56: #{tpu_custom_call.1} parent=1 // pred_region
      %128 = dma.done [#allocation12], 9856
    $region57: #{tpu_custom_call.1} parent=1 // pred_fallthru
      _
    // Predicated region
    $region58: #{tpu_custom_call.1} parent=1 // pred_check
      _
    $region59: #{tpu_custom_call.1} parent=1 // pred_check_branch
      %130 = sbr.rel (0) target = $region61
    $region60: #{tpu_custom_call.1} parent=1 // pred_region
      %131 = dma.done [#allocation12], 256
    $region61: #{tpu_custom_call.1} parent=1 // pred_fallthru
      _
    // Predicated region
    $region62: #{tpu_custom_call.1} parent=1 // pred_check
      _
    $region63: #{tpu_custom_call.1} parent=1 // pred_check_branch
      %133 = sbr.rel (0) target = $region65
    $region64: #{tpu_custom_call.1} parent=1 // pred_region
      %134 = dma.done [#allocation15], 1024
    $region65: #{tpu_custom_call.1} parent=1 // pred_fallthru
      _
    %v136 = vld [vmem:[#allocation2] sm:$0x3]
    %v137 = vld [vmem:[#allocation5] sm:$0xff]
    %v138 = vld [vmem:[#allocation5 + $0x8] sm:$0xff]
    %v139 = vld [vmem:[#allocation5 + $0x10] sm:$0xff]
    %v140 = vld [vmem:[#allocation5 + $0x18] sm:$0xff]
    %v141 = vld [vmem:[#allocation5 + $0x20] sm:$0xff]
    %v142 = vld [vmem:[#allocation5 + $0x28] sm:$0xff]
    %v143 = vld [vmem:[#allocation5 + $0x30] sm:$0xff]
    %v144 = vld [vmem:[#allocation5 + $0x38] sm:$0xff]
    %v145 = vld [vmem:[#allocation5 + $0x40] sm:$0xff]
    %v146 = vld [vmem:[#allocation5 + $0x48] sm:$0xff]
    %v147 = vld [vmem:[#allocation5 + $0x50] sm:$0xff]
    %v148 = vld [vmem:[#allocation5 + $0x58] sm:$0xff]
    %v149 = vld [vmem:[#allocation5 + $0x60] sm:$0xff]
    %v150 = vld [vmem:[#allocation5 + $0x68] sm:$0xff]
    %v151 = vld [vmem:[#allocation5 + $0x70] sm:$0xff]
    %v152 = vld [vmem:[#allocation5 + $0x78] sm:$0xff]
    %v153 = vld [vmem:[#allocation5 + $0x80] sm:$0xff]
    %v154 = vld [vmem:[#allocation5 + $0x88] sm:$0xff]
    %v155 = vld [vmem:[#allocation5 + $0x90] sm:$0xff]
    %v156 = vld [vmem:[#allocation5 + $0x98] sm:$0xff]
    %v157 = vld [vmem:[#allocation5 + $0xa0] sm:$0xff]
    %v158 = vld [vmem:[#allocation5 + $0xa8] sm:$0xff]
    %v159 = vld [vmem:[#allocation5 + $0xb0] sm:$0xff]
    %v160 = vld [vmem:[#allocation5 + $0xb8] sm:$0xff]
    %v161 = vld [vmem:[#allocation5 + $0xc0] sm:$0xff]
    %v162 = vld [vmem:[#allocation5 + $0xc8] sm:$0xff]
    %v163 = vld [vmem:[#allocation5 + $0xd0] sm:$0xff]
    %v164 = vld [vmem:[#allocation5 + $0xd8] sm:$0xff]
    %v165 = vld [vmem:[#allocation5 + $0xe0] sm:$0xff]
    %v166 = vld [vmem:[#allocation5 + $0xe8] sm:$0xff]
    %v167 = vld [vmem:[#allocation5 + $0xf0] sm:$0xff]
    %v168 = vld [vmem:[#allocation5 + $0xf8] sm:$0xff]
    %v169 = vpack.c.bf16 %v136, %v136
    %v170 = vld [vmem:[#allocation13] ss:$2 sm:$0xff]
    %v172 = vlaneseq
    %v173 = vshrl.u32 %v172, 7
    %v174 = vsub.s32 0, %v173
    %v175 = vrot.slane %v170, %v174
    %v176 = vlaneseq
    %v177 = vshrl.u32 %v176, 7
    %v178 = vsub.s32 1, %v177
    %v179 = vrot.slane %v170, %v178
    %v180 = vlaneseq
    %v181 = vshrl.u32 %v180, 7
    %v182 = vsub.s32 2, %v181
    %v183 = vrot.slane %v170, %v182
    %v184 = vlaneseq
    %v185 = vshrl.u32 %v184, 7
    %v186 = vsub.s32 3, %v185
    %v187 = vrot.slane %v170, %v186
    %v188 = vlaneseq
    %v189 = vshrl.u32 %v188, 7
    %v190 = vsub.s32 4, %v189
    %v191 = vrot.slane %v170, %v190
    %v192 = vlaneseq
    %v193 = vshrl.u32 %v192, 7
    %v194 = vsub.s32 5, %v193
    %v195 = vrot.slane %v170, %v194
    %v196 = vlaneseq
    %v197 = vshrl.u32 %v196, 7
    %v198 = vsub.s32 6, %v197
    %v199 = vrot.slane %v170, %v198
    %v200 = vlaneseq
    %v201 = vshrl.u32 %v200, 7
    %v202 = vsub.s32 7, %v201
    %v203 = vrot.slane %v170, %v202
    %v244 = vunpack.c.l.b16 %v137
    %v245 = vunpack.c.h.b16 %v137
    %v246 = vunpack.c.l.b16 %v138
    %v247 = vunpack.c.h.b16 %v138
    %v248 = vunpack.c.l.b16 %v139
    %v249 = vunpack.c.h.b16 %v139
    %v250 = vunpack.c.l.b16 %v140
    %v251 = vunpack.c.h.b16 %v140
    %v252 = vunpack.c.l.b16 %v141
    %v253 = vunpack.c.h.b16 %v141
    %v254 = vunpack.c.l.b16 %v142
    %v255 = vunpack.c.h.b16 %v142
    %v256 = vunpack.c.l.b16 %v143
    %v257 = vunpack.c.h.b16 %v143
    %v258 = vunpack.c.l.b16 %v144
    %v259 = vunpack.c.h.b16 %v144
    %v260 = vunpack.c.l.b16 %v145
    %v261 = vunpack.c.h.b16 %v145
    %v262 = vunpack.c.l.b16 %v146
    %v263 = vunpack.c.h.b16 %v146
    %v264 = vunpack.c.l.b16 %v147
    %v265 = vunpack.c.h.b16 %v147
    %v266 = vunpack.c.l.b16 %v148
    %v267 = vunpack.c.h.b16 %v148
    %v268 = vunpack.c.l.b16 %v149
    %v269 = vunpack.c.h.b16 %v149
    %v270 = vunpack.c.l.b16 %v150
    %v271 = vunpack.c.h.b16 %v150
    %v272 = vunpack.c.l.b16 %v151
    %v273 = vunpack.c.h.b16 %v151
    %v274 = vunpack.c.l.b16 %v152
    %v275 = vunpack.c.h.b16 %v152
    %v276 = vunpack.c.l.b16 %v153
    %v277 = vunpack.c.h.b16 %v153
    %v278 = vunpack.c.l.b16 %v154
    %v279 = vunpack.c.h.b16 %v154
    %v280 = vunpack.c.l.b16 %v155
    %v281 = vunpack.c.h.b16 %v155
    %v282 = vunpack.c.l.b16 %v156
    %v283 = vunpack.c.h.b16 %v156
    %v284 = vunpack.c.l.b16 %v157
    %v285 = vunpack.c.h.b16 %v157
    %v286 = vunpack.c.l.b16 %v158
    %v287 = vunpack.c.h.b16 %v158
    %v288 = vunpack.c.l.b16 %v159
    %v289 = vunpack.c.h.b16 %v159
    %v290 = vunpack.c.l.b16 %v160
    %v291 = vunpack.c.h.b16 %v160
    %v292 = vunpack.c.l.b16 %v161
    %v293 = vunpack.c.h.b16 %v161
    %v294 = vunpack.c.l.b16 %v162
    %v295 = vunpack.c.h.b16 %v162
    %v296 = vunpack.c.l.b16 %v163
    %v297 = vunpack.c.h.b16 %v163
    %v298 = vunpack.c.l.b16 %v164
    %v299 = vunpack.c.h.b16 %v164
    %v300 = vunpack.c.l.b16 %v165
    %v301 = vunpack.c.h.b16 %v165
    %v302 = vunpack.c.l.b16 %v166
    %v303 = vunpack.c.h.b16 %v166
    %v304 = vunpack.c.l.b16 %v167
    %v305 = vunpack.c.h.b16 %v167
    %v306 = vunpack.c.l.b16 %v168
    %v307 = vunpack.c.h.b16 %v168
    %v308 = vpack.c.b16 %v252, %v244
    %v309 = vpack.c.b16 %v253, %v245
    %v310 = vpack.c.b16 %v254, %v246
    %v311 = vpack.c.b16 %v255, %v247
    %v312 = vpack.c.b16 %v256, %v248
    %v313 = vpack.c.b16 %v257, %v249
    %v314 = vpack.c.b16 %v258, %v250
    %v315 = vpack.c.b16 %v259, %v251
    %v316 = vpack.c.b16 %v268, %v260
    %v317 = vpack.c.b16 %v269, %v261
    %v318 = vpack.c.b16 %v270, %v262
    %v319 = vpack.c.b16 %v271, %v263
    %v320 = vpack.c.b16 %v272, %v264
    %v321 = vpack.c.b16 %v273, %v265
    %v322 = vpack.c.b16 %v274, %v266
    %v323 = vpack.c.b16 %v275, %v267
    %v324 = vpack.c.b16 %v284, %v276
    %v325 = vpack.c.b16 %v285, %v277
    %v326 = vpack.c.b16 %v286, %v278
    %v327 = vpack.c.b16 %v287, %v279
    %v328 = vpack.c.b16 %v288, %v280
    %v329 = vpack.c.b16 %v289, %v281
    %v330 = vpack.c.b16 %v290, %v282
    %v331 = vpack.c.b16 %v291, %v283
    %v332 = vpack.c.b16 %v300, %v292
    %v333 = vpack.c.b16 %v301, %v293
    %v334 = vpack.c.b16 %v302, %v294
    %v335 = vpack.c.b16 %v303, %v295
    %v336 = vpack.c.b16 %v304, %v296
    %v337 = vpack.c.b16 %v305, %v297
    %v338 = vpack.c.b16 %v306, %v298
    %v339 = vpack.c.b16 %v307, %v299
    %vm372 = vcmask 523264
    %v374 = vsel %vm372, %v169, 0
    %376 = vmatprep.subr.bf16.mxu0 0
    %377 = vmatpush1.bf16.msra.mxu0 0
    %378 = vmatprep.subr.bf16.mxu0 0
    %379 = vmatpush1.bf16.msra.mxu0 0
    %380 = vmatprep.subr.bf16.mxu0 0
    %381 = vmatpush1.bf16.msra.mxu0 0
    %382 = vmatprep.subr.bf16.mxu0 0
    %383 = vmatpush1.bf16.msra.mxu0 0
    %384 = vmatprep.subr.bf16.mxu0 %v333
    %385 = vmatpush1.bf16.msra.mxu0 %v332
    %386 = vmatprep.subr.bf16.mxu0 %v325
    %387 = vmatpush1.bf16.msra.mxu0 %v324
    %388 = vmatprep.subr.bf16.mxu0 %v317
    %389 = vmatpush1.bf16.msra.mxu0 %v316
    %390 = vmatprep.subr.bf16.mxu0 %v309
    %391 = vmatpush1.bf16.msra.mxu0 %v308
    %392 = vmatprep.subr.bf16.mxu0 0
    %393 = vmatpush2.bf16.msra.mxu0 0
    %394 = vmatprep.subr.bf16.mxu0 0
    %395 = vmatpush2.bf16.msra.mxu0 0
    %396 = vmatprep.subr.bf16.mxu0 0
    %397 = vmatpush2.bf16.msra.mxu0 0
    %398 = vmatprep.subr.bf16.mxu0 0
    %399 = vmatpush2.bf16.msra.mxu0 0
    %400 = vmatprep.subr.bf16.mxu0 0
    %401 = vmatpush2.bf16.msra.mxu0 0
    %402 = vmatprep.subr.bf16.mxu0 0
    %403 = vmatpush2.bf16.msra.mxu0 0
    %404 = vmatprep.subr.bf16.mxu0 0
    %405 = vmatpush2.bf16.msra.mxu0 0
    %406 = vmatprep.subr.bf16.mxu0 0
    %407 = vmatpush2.bf16.msra.mxu0 0
    %408 = vmatprep.mubr.bf16.mxu0 0
    %409 = vmatmul.mubr.bf16.gmra.mxu0 %v374
    %v410 = vpop.f32.mrf.mxu0
    %v411 = vadd.f32 %v175, %v410
    %v412 = vpop.f32.mrf.mxu0
    %v413 = vadd.f32 %v179, %v412
    %v414 = vpop.f32.mrf.mxu0
    %v415 = vpop.f32.mrf.mxu0
    %416 = vdwg.mxu0
    %417 = vmatprep.subr.bf16.mxu0 0
    %418 = vmatpush1.bf16.msra.mxu0 0
    %419 = vmatprep.subr.bf16.mxu0 0
    %420 = vmatpush1.bf16.msra.mxu0 0
    %421 = vmatprep.subr.bf16.mxu0 0
    %422 = vmatpush1.bf16.msra.mxu0 0
    %423 = vmatprep.subr.bf16.mxu0 0
    %424 = vmatpush1.bf16.msra.mxu0 0
    %425 = vmatprep.subr.bf16.mxu0 %v335
    %426 = vmatpush1.bf16.msra.mxu0 %v334
    %427 = vmatprep.subr.bf16.mxu0 %v327
    %428 = vmatpush1.bf16.msra.mxu0 %v326
    %429 = vmatprep.subr.bf16.mxu0 %v319
    %430 = vmatpush1.bf16.msra.mxu0 %v318
    %431 = vmatprep.subr.bf16.mxu0 %v311
    %432 = vmatpush1.bf16.msra.mxu0 %v310
    %433 = vmatprep.subr.bf16.mxu0 0
    %434 = vmatpush2.bf16.msra.mxu0 0
    %435 = vmatprep.subr.bf16.mxu0 0
    %436 = vmatpush2.bf16.msra.mxu0 0
    %437 = vmatprep.subr.bf16.mxu0 0
    %438 = vmatpush2.bf16.msra.mxu0 0
    %439 = vmatprep.subr.bf16.mxu0 0
    %440 = vmatpush2.bf16.msra.mxu0 0
    %441 = vmatprep.subr.bf16.mxu0 0
    %442 = vmatpush2.bf16.msra.mxu0 0
    %443 = vmatprep.subr.bf16.mxu0 0
    %444 = vmatpush2.bf16.msra.mxu0 0
    %445 = vmatprep.subr.bf16.mxu0 0
    %446 = vmatpush2.bf16.msra.mxu0 0
    %447 = vmatprep.subr.bf16.mxu0 0
    %448 = vmatpush2.bf16.msra.mxu0 0
    %449 = vmatprep.mubr.bf16.mxu0 0
    %450 = vmatmul.mubr.bf16.gmra.mxu0 %v374
    %v451 = vpop.f32.mrf.mxu0
    %v452 = vadd.f32 %v183, %v451
    %v453 = vpop.f32.mrf.mxu0
    %v454 = vadd.f32 %v187, %v453
    %v455 = vpop.f32.mrf.mxu0
    %v456 = vpop.f32.mrf.mxu0
    %457 = vdwg.mxu0
    %458 = vmatprep.subr.bf16.mxu0 0
    %459 = vmatpush1.bf16.msra.mxu0 0
    %460 = vmatprep.subr.bf16.mxu0 0
    %461 = vmatpush1.bf16.msra.mxu0 0
    %462 = vmatprep.subr.bf16.mxu0 0
    %463 = vmatpush1.bf16.msra.mxu0 0
    %464 = vmatprep.subr.bf16.mxu0 0
    %465 = vmatpush1.bf16.msra.mxu0 0
    %466 = vmatprep.subr.bf16.mxu0 %v337
    %467 = vmatpush1.bf16.msra.mxu0 %v336
    %468 = vmatprep.subr.bf16.mxu0 %v329
    %469 = vmatpush1.bf16.msra.mxu0 %v328
    %470 = vmatprep.subr.bf16.mxu0 %v321
    %471 = vmatpush1.bf16.msra.mxu0 %v320
    %472 = vmatprep.subr.bf16.mxu0 %v313
    %473 = vmatpush1.bf16.msra.mxu0 %v312
    %474 = vmatprep.subr.bf16.mxu0 0
    %475 = vmatpush2.bf16.msra.mxu0 0
    %476 = vmatprep.subr.bf16.mxu0 0
    %477 = vmatpush2.bf16.msra.mxu0 0
    %478 = vmatprep.subr.bf16.mxu0 0
    %479 = vmatpush2.bf16.msra.mxu0 0
    %480 = vmatprep.subr.bf16.mxu0 0
    %481 = vmatpush2.bf16.msra.mxu0 0
    %482 = vmatprep.subr.bf16.mxu0 0
    %483 = vmatpush2.bf16.msra.mxu0 0
    %484 = vmatprep.subr.bf16.mxu0 0
    %485 = vmatpush2.bf16.msra.mxu0 0
    %486 = vmatprep.subr.bf16.mxu0 0
    %487 = vmatpush2.bf16.msra.mxu0 0
    %488 = vmatprep.subr.bf16.mxu0 0
    %489 = vmatpush2.bf16.msra.mxu0 0
    %490 = vmatprep.mubr.bf16.mxu0 0
    %491 = vmatmul.mubr.bf16.gmra.mxu0 %v374
    %v492 = vpop.f32.mrf.mxu0
    %v493 = vadd.f32 %v191, %v492
    %v494 = vpop.f32.mrf.mxu0
    %v495 = vadd.f32 %v195, %v494
    %v496 = vpop.f32.mrf.mxu0
    %v497 = vpop.f32.mrf.mxu0
    %498 = vdwg.mxu0
    %499 = vmatprep.subr.bf16.mxu0 0
    %500 = vmatpush1.bf16.msra.mxu0 0
    %501 = vmatprep.subr.bf16.mxu0 0
    %502 = vmatpush1.bf16.msra.mxu0 0
    %503 = vmatprep.subr.bf16.mxu0 0
    %504 = vmatpush1.bf16.msra.mxu0 0
    %505 = vmatprep.subr.bf16.mxu0 0
    %506 = vmatpush1.bf16.msra.mxu0 0
    %507 = vmatprep.subr.bf16.mxu0 %v339
    %508 = vmatpush1.bf16.msra.mxu0 %v338
    %509 = vmatprep.subr.bf16.mxu0 %v331
    %510 = vmatpush1.bf16.msra.mxu0 %v330
    %511 = vmatprep.subr.bf16.mxu0 %v323
    %512 = vmatpush1.bf16.msra.mxu0 %v322
    %513 = vmatprep.subr.bf16.mxu0 %v315
    %514 = vmatpush1.bf16.msra.mxu0 %v314
    %515 = vmatprep.subr.bf16.mxu0 0
    %516 = vmatpush2.bf16.msra.mxu0 0
    %517 = vmatprep.subr.bf16.mxu0 0
    %518 = vmatpush2.bf16.msra.mxu0 0
    %519 = vmatprep.subr.bf16.mxu0 0
    %520 = vmatpush2.bf16.msra.mxu0 0
    %521 = vmatprep.subr.bf16.mxu0 0
    %522 = vmatpush2.bf16.msra.mxu0 0
    %523 = vmatprep.subr.bf16.mxu0 0
    %524 = vmatpush2.bf16.msra.mxu0 0
    %525 = vmatprep.subr.bf16.mxu0 0
    %526 = vmatpush2.bf16.msra.mxu0 0
    %527 = vmatprep.subr.bf16.mxu0 0
    %528 = vmatpush2.bf16.msra.mxu0 0
    %529 = vmatprep.subr.bf16.mxu0 0
    %530 = vmatpush2.bf16.msra.mxu0 0
    %531 = vmatprep.mubr.bf16.mxu0 0
    %532 = vmatmul.mubr.bf16.gmra.mxu0 %v374
    %v533 = vpop.f32.mrf.mxu0
    %v534 = vadd.f32 %v199, %v533
    %v535 = vpop.f32.mrf.mxu0
    %v536 = vadd.f32 %v203, %v535
    %v537 = vpop.f32.mrf.mxu0
    %v538 = vpop.f32.mrf.mxu0
    %539 = vdwg.mxu0
    %vm540 = vcmp.gt.f32.partialorder %v411, 0.0
    %vm541 = vcmp.gt.f32.partialorder %v413, 0.0
    %vm542 = vcmp.gt.f32.partialorder %v452, 0.0
    %vm543 = vcmp.gt.f32.partialorder %v454, 0.0
    %vm544 = vcmp.gt.f32.partialorder %v493, 0.0
    %vm545 = vcmp.gt.f32.partialorder %v495, 0.0
    %vm546 = vcmp.gt.f32.partialorder %v534, 0.0
    %vm547 = vcmp.gt.f32.partialorder %v536, 0.0
    %v548 = vmul.f32 %v411, 0.01
    %v549 = vmul.f32 %v413, 0.01
    %v550 = vmul.f32 %v452, 0.01
    %v551 = vmul.f32 %v454, 0.01
    %v552 = vmul.f32 %v493, 0.01
    %v553 = vmul.f32 %v495, 0.01
    %v554 = vmul.f32 %v534, 0.01
    %v555 = vmul.f32 %v536, 0.01
    %v556 = vsel %vm540, %v411, %v548
    %v557 = vsel %vm541, %v413, %v549
    %v558 = vsel %vm542, %v452, %v550
    %v559 = vsel %vm543, %v454, %v551
    %v560 = vsel %vm544, %v493, %v552
    %v561 = vsel %vm545, %v495, %v553
    %v562 = vsel %vm546, %v534, %v554
    %v563 = vsel %vm547, %v536, %v555
    %v564 = vld [vmem:[#allocation7] sm:$0xff]
    %v565 = vld [vmem:[#allocation7 + $0x8] sm:$0xff]
    %v566 = vld [vmem:[#allocation7 + $0x10] sm:$0xff]
    %v567 = vld [vmem:[#allocation7 + $0x18] sm:$0xff]
    %v568 = vld [vmem:[#allocation7 + $0x20] sm:$0xff]
    %v569 = vld [vmem:[#allocation7 + $0x28] sm:$0xff]
    %v570 = vld [vmem:[#allocation7 + $0x30] sm:$0xff]
    %v571 = vld [vmem:[#allocation7 + $0x38] sm:$0xff]
    %v572 = vld [vmem:[#allocation7 + $0x40] sm:$0xff]
    %v573 = vld [vmem:[#allocation7 + $0x48] sm:$0xff]
    %v574 = vld [vmem:[#allocation7 + $0x50] sm:$0xff]
    %v575 = vld [vmem:[#allocation7 + $0x58] sm:$0xff]
    %v576 = vld [vmem:[#allocation7 + $0x60] sm:$0xff]
    %v577 = vld [vmem:[#allocation7 + $0x68] sm:$0xff]
    %v578 = vld [vmem:[#allocation7 + $0x70] sm:$0xff]
    %v579 = vld [vmem:[#allocation7 + $0x78] sm:$0xff]
    %v580 = vld [vmem:[#allocation7 + $0x80] sm:$0xff]
    %v581 = vld [vmem:[#allocation7 + $0x88] sm:$0xff]
    %v582 = vld [vmem:[#allocation7 + $0x90] sm:$0xff]
    %v583 = vld [vmem:[#allocation7 + $0x98] sm:$0xff]
    %v584 = vld [vmem:[#allocation7 + $0xa0] sm:$0xff]
    %v585 = vld [vmem:[#allocation7 + $0xa8] sm:$0xff]
    %v586 = vld [vmem:[#allocation7 + $0xb0] sm:$0xff]
    %v587 = vld [vmem:[#allocation7 + $0xb8] sm:$0xff]
    %v588 = vld [vmem:[#allocation7 + $0xc0] sm:$0xff]
    %v589 = vld [vmem:[#allocation7 + $0xc8] sm:$0xff]
    %v590 = vld [vmem:[#allocation7 + $0xd0] sm:$0xff]
    %v591 = vld [vmem:[#allocation7 + $0xd8] sm:$0xff]
    %v592 = vld [vmem:[#allocation7 + $0xe0] sm:$0xff]
    %v593 = vld [vmem:[#allocation7 + $0xe8] sm:$0xff]
    %v594 = vld [vmem:[#allocation7 + $0xf0] sm:$0xff]
    %v595 = vld [vmem:[#allocation7 + $0xf8] sm:$0xff]
    %v596 = vld [vmem:[#allocation7 + $0x100] sm:$0xff]
    %v597 = vld [vmem:[#allocation7 + $0x108] sm:$0xff]
    %v598 = vld [vmem:[#allocation7 + $0x110] sm:$0xff]
    %v599 = vld [vmem:[#allocation7 + $0x118] sm:$0xff]
    %v600 = vld [vmem:[#allocation7 + $0x120] sm:$0xff]
    %v601 = vld [vmem:[#allocation7 + $0x128] sm:$0xff]
    %v602 = vld [vmem:[#allocation7 + $0x130] sm:$0xff]
    %v603 = vld [vmem:[#allocation7 + $0x138] sm:$0xff]
    %v604 = vld [vmem:[#allocation7 + $0x140] sm:$0xff]
    %v605 = vld [vmem:[#allocation7 + $0x148] sm:$0xff]
    %v606 = vld [vmem:[#allocation7 + $0x150] sm:$0xff]
    %v607 = vld [vmem:[#allocation7 + $0x158] sm:$0xff]
    %v608 = vld [vmem:[#allocation7 + $0x160] sm:$0xff]
    %v609 = vld [vmem:[#allocation7 + $0x168] sm:$0xff]
    %v610 = vld [vmem:[#allocation7 + $0x170] sm:$0xff]
    %v611 = vld [vmem:[#allocation7 + $0x178] sm:$0xff]
    %v612 = vld [vmem:[#allocation7 + $0x180] sm:$0xff]
    %v613 = vld [vmem:[#allocation7 + $0x188] sm:$0xff]
    %v614 = vld [vmem:[#allocation7 + $0x190] sm:$0xff]
    %v615 = vld [vmem:[#allocation7 + $0x198] sm:$0xff]
    %v616 = vld [vmem:[#allocation7 + $0x1a0] sm:$0xff]
    %v617 = vld [vmem:[#allocation7 + $0x1a8] sm:$0xff]
    %v618 = vld [vmem:[#allocation7 + $0x1b0] sm:$0xff]
    %v619 = vld [vmem:[#allocation7 + $0x1b8] sm:$0xff]
    %v620 = vld [vmem:[#allocation7 + $0x1c0] sm:$0xff]
    %v621 = vld [vmem:[#allocation7 + $0x1c8] sm:$0xff]
    %v622 = vld [vmem:[#allocation7 + $0x1d0] sm:$0xff]
    %v623 = vld [vmem:[#allocation7 + $0x1d8] sm:$0xff]
    %v624 = vld [vmem:[#allocation7 + $0x1e0] sm:$0xff]
    %v625 = vld [vmem:[#allocation7 + $0x1e8] sm:$0xff]
    %v626 = vld [vmem:[#allocation7 + $0x1f0] sm:$0xff]
    %v627 = vld [vmem:[#allocation7 + $0x1f8] sm:$0xff]
    %v628 = vld [vmem:[#allocation7 + $0x200] sm:$0xff]
    %v629 = vld [vmem:[#allocation7 + $0x208] sm:$0xff]
    %v630 = vld [vmem:[#allocation7 + $0x210] sm:$0xff]
    %v631 = vld [vmem:[#allocation7 + $0x218] sm:$0xff]
    %v632 = vld [vmem:[#allocation7 + $0x220] sm:$0xff]
    %v633 = vld [vmem:[#allocation7 + $0x228] sm:$0xff]
    %v634 = vld [vmem:[#allocation7 + $0x230] sm:$0xff]
    %v635 = vld [vmem:[#allocation7 + $0x238] sm:$0xff]
    %v636 = vld [vmem:[#allocation7 + $0x240] sm:$0xff]
    %v637 = vld [vmem:[#allocation7 + $0x248] sm:$0xff]
    %v638 = vld [vmem:[#allocation7 + $0x250] sm:$0xff]
    %v639 = vld [vmem:[#allocation7 + $0x258] sm:$0xff]
    %v640 = vld [vmem:[#allocation7 + $0x260] sm:$0xff]
    %v641 = vld [vmem:[#allocation7 + $0x268] sm:$0xff]
    %v642 = vld [vmem:[#allocation7 + $0x270] sm:$0xff]
    %v643 = vld [vmem:[#allocation7 + $0x278] sm:$0xff]
    %v644 = vld [vmem:[#allocation7 + $0x280] sm:$0xff]
    %v645 = vld [vmem:[#allocation7 + $0x288] sm:$0xff]
    %v646 = vld [vmem:[#allocation7 + $0x290] sm:$0xff]
    %v647 = vld [vmem:[#allocation7 + $0x298] sm:$0xff]
    %v648 = vld [vmem:[#allocation7 + $0x2a0] sm:$0xff]
    %v649 = vld [vmem:[#allocation7 + $0x2a8] sm:$0xff]
    %v650 = vld [vmem:[#allocation7 + $0x2b0] sm:$0xff]
    %v651 = vld [vmem:[#allocation7 + $0x2b8] sm:$0xff]
    %v652 = vld [vmem:[#allocation7 + $0x2c0] sm:$0xff]
    %v653 = vld [vmem:[#allocation7 + $0x2c8] sm:$0xff]
    %v654 = vld [vmem:[#allocation7 + $0x2d0] sm:$0xff]
    %v655 = vld [vmem:[#allocation7 + $0x2d8] sm:$0xff]
    %v656 = vld [vmem:[#allocation7 + $0x2e0] sm:$0xff]
    %v657 = vld [vmem:[#allocation7 + $0x2e8] sm:$0xff]
    %v658 = vld [vmem:[#allocation7 + $0x2f0] sm:$0xff]
    %v659 = vld [vmem:[#allocation7 + $0x2f8] sm:$0xff]
    %v660 = vld [vmem:[#allocation7 + $0x300] sm:$0xff]
    %v661 = vld [vmem:[#allocation7 + $0x308] sm:$0xff]
    %v662 = vld [vmem:[#allocation7 + $0x310] sm:$0xff]
    %v663 = vld [vmem:[#allocation7 + $0x318] sm:$0xff]
    %v664 = vld [vmem:[#allocation7 + $0x320] sm:$0xff]
    %v665 = vld [vmem:[#allocation7 + $0x328] sm:$0xff]
    %v666 = vld [vmem:[#allocation7 + $0x330] sm:$0xff]
    %v667 = vld [vmem:[#allocation7 + $0x338] sm:$0xff]
    %v668 = vld [vmem:[#allocation7 + $0x340] sm:$0xff]
    %v669 = vld [vmem:[#allocation7 + $0x348] sm:$0xff]
    %v670 = vld [vmem:[#allocation7 + $0x350] sm:$0xff]
    %v671 = vld [vmem:[#allocation7 + $0x358] sm:$0xff]
    %v672 = vld [vmem:[#allocation7 + $0x360] sm:$0xff]
    %v673 = vld [vmem:[#allocation7 + $0x368] sm:$0xff]
    %v674 = vld [vmem:[#allocation7 + $0x370] sm:$0xff]
    %v675 = vld [vmem:[#allocation7 + $0x378] sm:$0xff]
    %v676 = vld [vmem:[#allocation7 + $0x380] sm:$0xff]
    %v677 = vld [vmem:[#allocation7 + $0x388] sm:$0xff]
    %v678 = vld [vmem:[#allocation7 + $0x390] sm:$0xff]
    %v679 = vld [vmem:[#allocation7 + $0x398] sm:$0xff]
    %v680 = vld [vmem:[#allocation7 + $0x3a0] sm:$0xff]
    %v681 = vld [vmem:[#allocation7 + $0x3a8] sm:$0xff]
    %v682 = vld [vmem:[#allocation7 + $0x3b0] sm:$0xff]
    %v683 = vld [vmem:[#allocation7 + $0x3b8] sm:$0xff]
    %v684 = vld [vmem:[#allocation7 + $0x3c0] sm:$0xff]
    %v685 = vld [vmem:[#allocation7 + $0x3c8] sm:$0xff]
    %v686 = vld [vmem:[#allocation7 + $0x3d0] sm:$0xff]
    %v687 = vld [vmem:[#allocation7 + $0x3d8] sm:$0xff]
    %v688 = vld [vmem:[#allocation7 + $0x3e0] sm:$0xff]
    %v689 = vld [vmem:[#allocation7 + $0x3e8] sm:$0xff]
    %v690 = vld [vmem:[#allocation7 + $0x3f0] sm:$0xff]
    %v691 = vld [vmem:[#allocation7 + $0x3f8] sm:$0xff]
    %v692 = vld [vmem:[#allocation7 + $0x400] sm:$0xff]
    %v693 = vld [vmem:[#allocation7 + $0x408] sm:$0xff]
    %v694 = vld [vmem:[#allocation7 + $0x410] sm:$0xff]
    %v695 = vld [vmem:[#allocation7 + $0x418] sm:$0xff]
    %v696 = vld [vmem:[#allocation7 + $0x420] sm:$0xff]
    %v697 = vld [vmem:[#allocation7 + $0x428] sm:$0xff]
    %v698 = vld [vmem:[#allocation7 + $0x430] sm:$0xff]
    %v699 = vld [vmem:[#allocation7 + $0x438] sm:$0xff]
    %v700 = vld [vmem:[#allocation7 + $0x440] sm:$0xff]
    %v701 = vld [vmem:[#allocation7 + $0x448] sm:$0xff]
    %v702 = vld [vmem:[#allocation7 + $0x450] sm:$0xff]
    %v703 = vld [vmem:[#allocation7 + $0x458] sm:$0xff]
    %v704 = vld [vmem:[#allocation7 + $0x460] sm:$0xff]
    %v705 = vld [vmem:[#allocation7 + $0x468] sm:$0xff]
    %v706 = vld [vmem:[#allocation7 + $0x470] sm:$0xff]
    %v707 = vld [vmem:[#allocation7 + $0x478] sm:$0xff]
    %v708 = vld [vmem:[#allocation7 + $0x480] sm:$0xff]
    %v709 = vld [vmem:[#allocation7 + $0x488] sm:$0xff]
    %v710 = vld [vmem:[#allocation7 + $0x490] sm:$0xff]
    %v711 = vld [vmem:[#allocation7 + $0x498] sm:$0xff]
    %v712 = vld [vmem:[#allocation7 + $0x4a0] sm:$0xff]
    %v713 = vld [vmem:[#allocation7 + $0x4a8] sm:$0xff]
    %v714 = vld [vmem:[#allocation7 + $0x4b0] sm:$0xff]
    %v715 = vld [vmem:[#allocation7 + $0x4b8] sm:$0xff]
    %v716 = vld [vmem:[#allocation7 + $0x4c0] sm:$0xff]
    %v717 = vld [vmem:[#allocation7 + $0x4c8] sm:$0xff]
    %v718 = vld [vmem:[#allocation7 + $0x4d0] sm:$0xff]
    %v719 = vld [vmem:[#allocation7 + $0x4d8] sm:$0xff]
    %v720 = vld [vmem:[#allocation7 + $0x4e0] sm:$0xff]
    %v721 = vld [vmem:[#allocation7 + $0x4e8] sm:$0xff]
    %v722 = vld [vmem:[#allocation7 + $0x4f0] sm:$0xff]
    %v723 = vld [vmem:[#allocation7 + $0x4f8] sm:$0xff]
    %v724 = vld [vmem:[#allocation7 + $0x500] sm:$0xff]
    %v725 = vld [vmem:[#allocation7 + $0x508] sm:$0xff]
    %v726 = vld [vmem:[#allocation7 + $0x510] sm:$0xff]
    %v727 = vld [vmem:[#allocation7 + $0x518] sm:$0xff]
    %v728 = vld [vmem:[#allocation7 + $0x520] sm:$0xff]
    %v729 = vld [vmem:[#allocation7 + $0x528] sm:$0xff]
    %v730 = vld [vmem:[#allocation7 + $0x530] sm:$0xff]
    %v731 = vld [vmem:[#allocation7 + $0x538] sm:$0xff]
    %v732 = vld [vmem:[#allocation7 + $0x540] sm:$0xff]
    %v733 = vld [vmem:[#allocation7 + $0x548] sm:$0xff]
    %v734 = vld [vmem:[#allocation7 + $0x550] sm:$0xff]
    %v735 = vld [vmem:[#allocation7 + $0x558] sm:$0xff]
    %v736 = vld [vmem:[#allocation7 + $0x560] sm:$0xff]
    %v737 = vld [vmem:[#allocation7 + $0x568] sm:$0xff]
    %v738 = vld [vmem:[#allocation7 + $0x570] sm:$0xff]
    %v739 = vld [vmem:[#allocation7 + $0x578] sm:$0xff]
    %v740 = vld [vmem:[#allocation7 + $0x580] sm:$0xff]
    %v741 = vld [vmem:[#allocation7 + $0x588] sm:$0xff]
    %v742 = vld [vmem:[#allocation7 + $0x590] sm:$0xff]
    %v743 = vld [vmem:[#allocation7 + $0x598] sm:$0xff]
    %v744 = vld [vmem:[#allocation7 + $0x5a0] sm:$0xff]
    %v745 = vld [vmem:[#allocation7 + $0x5a8] sm:$0xff]
    %v746 = vld [vmem:[#allocation7 + $0x5b0] sm:$0xff]
    %v747 = vld [vmem:[#allocation7 + $0x5b8] sm:$0xff]
    %v748 = vld [vmem:[#allocation7 + $0x5c0] sm:$0xff]
    %v749 = vld [vmem:[#allocation7 + $0x5c8] sm:$0xff]
    %v750 = vld [vmem:[#allocation7 + $0x5d0] sm:$0xff]
    %v751 = vld [vmem:[#allocation7 + $0x5d8] sm:$0xff]
    %v752 = vld [vmem:[#allocation7 + $0x5e0] sm:$0xff]
    %v753 = vld [vmem:[#allocation7 + $0x5e8] sm:$0xff]
    %v754 = vld [vmem:[#allocation7 + $0x5f0] sm:$0xff]
    %v755 = vld [vmem:[#allocation7 + $0x5f8] sm:$0xff]
    %v756 = vld [vmem:[#allocation7 + $0x600] sm:$0xff]
    %v757 = vld [vmem:[#allocation7 + $0x608] sm:$0xff]
    %v758 = vld [vmem:[#allocation7 + $0x610] sm:$0xff]
    %v759 = vld [vmem:[#allocation7 + $0x618] sm:$0xff]
    %v760 = vld [vmem:[#allocation7 + $0x620] sm:$0xff]
    %v761 = vld [vmem:[#allocation7 + $0x628] sm:$0xff]
    %v762 = vld [vmem:[#allocation7 + $0x630] sm:$0xff]
    %v763 = vld [vmem:[#allocation7 + $0x638] sm:$0xff]
    %v764 = vld [vmem:[#allocation7 + $0x640] sm:$0xff]
    %v765 = vld [vmem:[#allocation7 + $0x648] sm:$0xff]
    %v766 = vld [vmem:[#allocation7 + $0x650] sm:$0xff]
    %v767 = vld [vmem:[#allocation7 + $0x658] sm:$0xff]
    %v768 = vld [vmem:[#allocation7 + $0x660] sm:$0xff]
    %v769 = vld [vmem:[#allocation7 + $0x668] sm:$0xff]
    %v770 = vld [vmem:[#allocation7 + $0x670] sm:$0xff]
    %v771 = vld [vmem:[#allocation7 + $0x678] sm:$0xff]
    %v772 = vld [vmem:[#allocation7 + $0x680] sm:$0xff]
    %v773 = vld [vmem:[#allocation7 + $0x688] sm:$0xff]
    %v774 = vld [vmem:[#allocation7 + $0x690] sm:$0xff]
    %v775 = vld [vmem:[#allocation7 + $0x698] sm:$0xff]
    %v776 = vld [vmem:[#allocation7 + $0x6a0] sm:$0xff]
    %v777 = vld [vmem:[#allocation7 + $0x6a8] sm:$0xff]
    %v778 = vld [vmem:[#allocation7 + $0x6b0] sm:$0xff]
    %v779 = vld [vmem:[#allocation7 + $0x6b8] sm:$0xff]
    %v780 = vld [vmem:[#allocation7 + $0x6c0] sm:$0xff]
    %v781 = vld [vmem:[#allocation7 + $0x6c8] sm:$0xff]
    %v782 = vld [vmem:[#allocation7 + $0x6d0] sm:$0xff]
    %v783 = vld [vmem:[#allocation7 + $0x6d8] sm:$0xff]
    %v784 = vld [vmem:[#allocation7 + $0x6e0] sm:$0xff]
    %v785 = vld [vmem:[#allocation7 + $0x6e8] sm:$0xff]
    %v786 = vld [vmem:[#allocation7 + $0x6f0] sm:$0xff]
    %v787 = vld [vmem:[#allocation7 + $0x6f8] sm:$0xff]
    %v788 = vld [vmem:[#allocation7 + $0x700] sm:$0xff]
    %v789 = vld [vmem:[#allocation7 + $0x708] sm:$0xff]
    %v790 = vld [vmem:[#allocation7 + $0x710] sm:$0xff]
    %v791 = vld [vmem:[#allocation7 + $0x718] sm:$0xff]
    %v792 = vld [vmem:[#allocation7 + $0x720] sm:$0xff]
    %v793 = vld [vmem:[#allocation7 + $0x728] sm:$0xff]
    %v794 = vld [vmem:[#allocation7 + $0x730] sm:$0xff]
    %v795 = vld [vmem:[#allocation7 + $0x738] sm:$0xff]
    %v796 = vld [vmem:[#allocation7 + $0x740] sm:$0xff]
    %v797 = vld [vmem:[#allocation7 + $0x748] sm:$0xff]
    %v798 = vld [vmem:[#allocation7 + $0x750] sm:$0xff]
    %v799 = vld [vmem:[#allocation7 + $0x758] sm:$0xff]
    %v800 = vld [vmem:[#allocation7 + $0x760] sm:$0xff]
    %v801 = vld [vmem:[#allocation7 + $0x768] sm:$0xff]
    %v802 = vld [vmem:[#allocation7 + $0x770] sm:$0xff]
    %v803 = vld [vmem:[#allocation7 + $0x778] sm:$0xff]
    %v804 = vld [vmem:[#allocation7 + $0x780] sm:$0xff]
    %v805 = vld [vmem:[#allocation7 + $0x788] sm:$0xff]
    %v806 = vld [vmem:[#allocation7 + $0x790] sm:$0xff]
    %v807 = vld [vmem:[#allocation7 + $0x798] sm:$0xff]
    %v808 = vld [vmem:[#allocation7 + $0x7a0] sm:$0xff]
    %v809 = vld [vmem:[#allocation7 + $0x7a8] sm:$0xff]
    %v810 = vld [vmem:[#allocation7 + $0x7b0] sm:$0xff]
    %v811 = vld [vmem:[#allocation7 + $0x7b8] sm:$0xff]
    %v812 = vld [vmem:[#allocation7 + $0x7c0] sm:$0xff]
    %v813 = vld [vmem:[#allocation7 + $0x7c8] sm:$0xff]
    %v814 = vld [vmem:[#allocation7 + $0x7d0] sm:$0xff]
    %v815 = vld [vmem:[#allocation7 + $0x7d8] sm:$0xff]
    %v816 = vld [vmem:[#allocation7 + $0x7e0] sm:$0xff]
    %v817 = vld [vmem:[#allocation7 + $0x7e8] sm:$0xff]
    %v818 = vld [vmem:[#allocation7 + $0x7f0] sm:$0xff]
    %v819 = vld [vmem:[#allocation7 + $0x7f8] sm:$0xff]
    %v820 = vpack.c.bf16 %v556, %v556
    %v821 = vpack.c.bf16 %v557, %v557
    %v822 = vpack.c.bf16 %v558, %v558
    %v823 = vpack.c.bf16 %v559, %v559
    %v824 = vpack.c.bf16 %v560, %v560
    %v825 = vpack.c.bf16 %v561, %v561
    %v826 = vpack.c.bf16 %v562, %v562
    %v827 = vpack.c.bf16 %v563, %v563
    %s828 = scalar_lea.vmem [#allocation13], 1
    %v829 = vld [vmem:[%s828] ss:$2 sm:$0xf]
    %v831 = vlaneseq
    %v832 = vshrl.u32 %v831, 7
    %v833 = vsub.s32 0, %v832
    %v834 = vrot.slane %v829, %v833
    %v835 = vlaneseq
    %v836 = vshrl.u32 %v835, 7
    %v837 = vsub.s32 1, %v836
    %v838 = vrot.slane %v829, %v837
    %v839 = vlaneseq
    %v840 = vshrl.u32 %v839, 7
    %v841 = vsub.s32 2, %v840
    %v842 = vrot.slane %v829, %v841
    %v843 = vlaneseq
    %v844 = vshrl.u32 %v843, 7
    %v845 = vsub.s32 3, %v844
    %v846 = vrot.slane %v829, %v845
    %v1107 = vunpack.c.l.b16 %v564
    %v1108 = vunpack.c.h.b16 %v564
    %v1109 = vunpack.c.l.b16 %v565
    %v1110 = vunpack.c.h.b16 %v565
    %v1111 = vunpack.c.l.b16 %v566
    %v1112 = vunpack.c.h.b16 %v566
    %v1113 = vunpack.c.l.b16 %v567
    %v1114 = vunpack.c.h.b16 %v567
    %v1115 = vunpack.c.l.b16 %v568
    %v1116 = vunpack.c.h.b16 %v568
    %v1117 = vunpack.c.l.b16 %v569
    %v1118 = vunpack.c.h.b16 %v569
    %v1119 = vunpack.c.l.b16 %v570
    %v1120 = vunpack.c.h.b16 %v570
    %v1121 = vunpack.c.l.b16 %v571
    %v1122 = vunpack.c.h.b16 %v571
    %v1123 = vunpack.c.l.b16 %v572
    %v1124 = vunpack.c.h.b16 %v572
    %v1125 = vunpack.c.l.b16 %v573
    %v1126 = vunpack.c.h.b16 %v573
    %v1127 = vunpack.c.l.b16 %v574
    %v1128 = vunpack.c.h.b16 %v574
    %v1129 = vunpack.c.l.b16 %v575
    %v1130 = vunpack.c.h.b16 %v575
    %v1131 = vunpack.c.l.b16 %v576
    %v1132 = vunpack.c.h.b16 %v576
    %v1133 = vunpack.c.l.b16 %v577
    %v1134 = vunpack.c.h.b16 %v577
    %v1135 = vunpack.c.l.b16 %v578
    %v1136 = vunpack.c.h.b16 %v578
    %v1137 = vunpack.c.l.b16 %v579
    %v1138 = vunpack.c.h.b16 %v579
    %v1139 = vunpack.c.l.b16 %v580
    %v1140 = vunpack.c.h.b16 %v580
    %v1141 = vunpack.c.l.b16 %v581
    %v1142 = vunpack.c.h.b16 %v581
    %v1143 = vunpack.c.l.b16 %v582
    %v1144 = vunpack.c.h.b16 %v582
    %v1145 = vunpack.c.l.b16 %v583
    %v1146 = vunpack.c.h.b16 %v583
    %v1147 = vunpack.c.l.b16 %v584
    %v1148 = vunpack.c.h.b16 %v584
    %v1149 = vunpack.c.l.b16 %v585
    %v1150 = vunpack.c.h.b16 %v585
    %v1151 = vunpack.c.l.b16 %v586
    %v1152 = vunpack.c.h.b16 %v586
    %v1153 = vunpack.c.l.b16 %v587
    %v1154 = vunpack.c.h.b16 %v587
    %v1155 = vunpack.c.l.b16 %v588
    %v1156 = vunpack.c.h.b16 %v588
    %v1157 = vunpack.c.l.b16 %v589
    %v1158 = vunpack.c.h.b16 %v589
    %v1159 = vunpack.c.l.b16 %v590
    %v1160 = vunpack.c.h.b16 %v590
    %v1161 = vunpack.c.l.b16 %v591
    %v1162 = vunpack.c.h.b16 %v591
    %v1163 = vunpack.c.l.b16 %v592
    %v1164 = vunpack.c.h.b16 %v592
    %v1165 = vunpack.c.l.b16 %v593
    %v1166 = vunpack.c.h.b16 %v593
    %v1167 = vunpack.c.l.b16 %v594
    %v1168 = vunpack.c.h.b16 %v594
    %v1169 = vunpack.c.l.b16 %v595
    %v1170 = vunpack.c.h.b16 %v595
    %v1171 = vunpack.c.l.b16 %v596
    %v1172 = vunpack.c.h.b16 %v596
    %v1173 = vunpack.c.l.b16 %v597
    %v1174 = vunpack.c.h.b16 %v597
    %v1175 = vunpack.c.l.b16 %v598
    %v1176 = vunpack.c.h.b16 %v598
    %v1177 = vunpack.c.l.b16 %v599
    %v1178 = vunpack.c.h.b16 %v599
    %v1179 = vunpack.c.l.b16 %v600
    %v1180 = vunpack.c.h.b16 %v600
    %v1181 = vunpack.c.l.b16 %v601
    %v1182 = vunpack.c.h.b16 %v601
    %v1183 = vunpack.c.l.b16 %v602
    %v1184 = vunpack.c.h.b16 %v602
    %v1185 = vunpack.c.l.b16 %v603
    %v1186 = vunpack.c.h.b16 %v603
    %v1187 = vunpack.c.l.b16 %v604
    %v1188 = vunpack.c.h.b16 %v604
    %v1189 = vunpack.c.l.b16 %v605
    %v1190 = vunpack.c.h.b16 %v605
    %v1191 = vunpack.c.l.b16 %v606
    %v1192 = vunpack.c.h.b16 %v606
    %v1193 = vunpack.c.l.b16 %v607
    %v1194 = vunpack.c.h.b16 %v607
    %v1195 = vunpack.c.l.b16 %v608
    %v1196 = vunpack.c.h.b16 %v608
    %v1197 = vunpack.c.l.b16 %v609
    %v1198 = vunpack.c.h.b16 %v609
    %v1199 = vunpack.c.l.b16 %v610
    %v1200 = vunpack.c.h.b16 %v610
    %v1201 = vunpack.c.l.b16 %v611
    %v1202 = vunpack.c.h.b16 %v611
    %v1203 = vunpack.c.l.b16 %v612
    %v1204 = vunpack.c.h.b16 %v612
    %v1205 = vunpack.c.l.b16 %v613
    %v1206 = vunpack.c.h.b16 %v613
    %v1207 = vunpack.c.l.b16 %v614
    %v1208 = vunpack.c.h.b16 %v614
    %v1209 = vunpack.c.l.b16 %v615
    %v1210 = vunpack.c.h.b16 %v615
    %v1211 = vunpack.c.l.b16 %v616
    %v1212 = vunpack.c.h.b16 %v616
    %v1213 = vunpack.c.l.b16 %v617
    %v1214 = vunpack.c.h.b16 %v617
    %v1215 = vunpack.c.l.b16 %v618
    %v1216 = vunpack.c.h.b16 %v618
    %v1217 = vunpack.c.l.b16 %v619
    %v1218 = vunpack.c.h.b16 %v619
    %v1219 = vunpack.c.l.b16 %v620
    %v1220 = vunpack.c.h.b16 %v620
    %v1221 = vunpack.c.l.b16 %v621
    %v1222 = vunpack.c.h.b16 %v621
    %v1223 = vunpack.c.l.b16 %v622
    %v1224 = vunpack.c.h.b16 %v622
    %v1225 = vunpack.c.l.b16 %v623
    %v1226 = vunpack.c.h.b16 %v623
    %v1227 = vunpack.c.l.b16 %v624
    %v1228 = vunpack.c.h.b16 %v624
    %v1229 = vunpack.c.l.b16 %v625
    %v1230 = vunpack.c.h.b16 %v625
    %v1231 = vunpack.c.l.b16 %v626
    %v1232 = vunpack.c.h.b16 %v626
    %v1233 = vunpack.c.l.b16 %v627
    %v1234 = vunpack.c.h.b16 %v627
    %v1235 = vunpack.c.l.b16 %v628
    %v1236 = vunpack.c.h.b16 %v628
    %v1237 = vunpack.c.l.b16 %v629
    %v1238 = vunpack.c.h.b16 %v629
    %v1239 = vunpack.c.l.b16 %v630
    %v1240 = vunpack.c.h.b16 %v630
    %v1241 = vunpack.c.l.b16 %v631
    %v1242 = vunpack.c.h.b16 %v631
    %v1243 = vunpack.c.l.b16 %v632
    %v1244 = vunpack.c.h.b16 %v632
    %v1245 = vunpack.c.l.b16 %v633
    %v1246 = vunpack.c.h.b16 %v633
    %v1247 = vunpack.c.l.b16 %v634
    %v1248 = vunpack.c.h.b16 %v634
    %v1249 = vunpack.c.l.b16 %v635
    %v1250 = vunpack.c.h.b16 %v635
    %v1251 = vunpack.c.l.b16 %v636
    %v1252 = vunpack.c.h.b16 %v636
    %v1253 = vunpack.c.l.b16 %v637
    %v1254 = vunpack.c.h.b16 %v637
    %v1255 = vunpack.c.l.b16 %v638
    %v1256 = vunpack.c.h.b16 %v638
    %v1257 = vunpack.c.l.b16 %v639
    %v1258 = vunpack.c.h.b16 %v639
    %v1259 = vunpack.c.l.b16 %v640
    %v1260 = vunpack.c.h.b16 %v640
    %v1261 = vunpack.c.l.b16 %v641
    %v1262 = vunpack.c.h.b16 %v641
    %v1263 = vunpack.c.l.b16 %v642
    %v1264 = vunpack.c.h.b16 %v642
    %v1265 = vunpack.c.l.b16 %v643
    %v1266 = vunpack.c.h.b16 %v643
    %v1267 = vunpack.c.l.b16 %v644
    %v1268 = vunpack.c.h.b16 %v644
    %v1269 = vunpack.c.l.b16 %v645
    %v1270 = vunpack.c.h.b16 %v645
    %v1271 = vunpack.c.l.b16 %v646
    %v1272 = vunpack.c.h.b16 %v646
    %v1273 = vunpack.c.l.b16 %v647
    %v1274 = vunpack.c.h.b16 %v647
    %v1275 = vunpack.c.l.b16 %v648
    %v1276 = vunpack.c.h.b16 %v648
    %v1277 = vunpack.c.l.b16 %v649
    %v1278 = vunpack.c.h.b16 %v649
    %v1279 = vunpack.c.l.b16 %v650
    %v1280 = vunpack.c.h.b16 %v650
    %v1281 = vunpack.c.l.b16 %v651
    %v1282 = vunpack.c.h.b16 %v651
    %v1283 = vunpack.c.l.b16 %v652
    %v1284 = vunpack.c.h.b16 %v652
    %v1285 = vunpack.c.l.b16 %v653
    %v1286 = vunpack.c.h.b16 %v653
    %v1287 = vunpack.c.l.b16 %v654
    %v1288 = vunpack.c.h.b16 %v654
    %v1289 = vunpack.c.l.b16 %v655
    %v1290 = vunpack.c.h.b16 %v655
    %v1291 = vunpack.c.l.b16 %v656
    %v1292 = vunpack.c.h.b16 %v656
    %v1293 = vunpack.c.l.b16 %v657
    %v1294 = vunpack.c.h.b16 %v657
    %v1295 = vunpack.c.l.b16 %v658
    %v1296 = vunpack.c.h.b16 %v658
    %v1297 = vunpack.c.l.b16 %v659
    %v1298 = vunpack.c.h.b16 %v659
    %v1299 = vunpack.c.l.b16 %v660
    %v1300 = vunpack.c.h.b16 %v660
    %v1301 = vunpack.c.l.b16 %v661
    %v1302 = vunpack.c.h.b16 %v661
    %v1303 = vunpack.c.l.b16 %v662
    %v1304 = vunpack.c.h.b16 %v662
    %v1305 = vunpack.c.l.b16 %v663
    %v1306 = vunpack.c.h.b16 %v663
    %v1307 = vunpack.c.l.b16 %v664
    %v1308 = vunpack.c.h.b16 %v664
    %v1309 = vunpack.c.l.b16 %v665
    %v1310 = vunpack.c.h.b16 %v665
    %v1311 = vunpack.c.l.b16 %v666
    %v1312 = vunpack.c.h.b16 %v666
    %v1313 = vunpack.c.l.b16 %v667
    %v1314 = vunpack.c.h.b16 %v667
    %v1315 = vunpack.c.l.b16 %v668
    %v1316 = vunpack.c.h.b16 %v668
    %v1317 = vunpack.c.l.b16 %v669
    %v1318 = vunpack.c.h.b16 %v669
    %v1319 = vunpack.c.l.b16 %v670
    %v1320 = vunpack.c.h.b16 %v670
    %v1321 = vunpack.c.l.b16 %v671
    %v1322 = vunpack.c.h.b16 %v671
    %v1323 = vunpack.c.l.b16 %v672
    %v1324 = vunpack.c.h.b16 %v672
    %v1325 = vunpack.c.l.b16 %v673
    %v1326 = vunpack.c.h.b16 %v673
    %v1327 = vunpack.c.l.b16 %v674
    %v1328 = vunpack.c.h.b16 %v674
    %v1329 = vunpack.c.l.b16 %v675
    %v1330 = vunpack.c.h.b16 %v675
    %v1331 = vunpack.c.l.b16 %v676
    %v1332 = vunpack.c.h.b16 %v676
    %v1333 = vunpack.c.l.b16 %v677
    %v1334 = vunpack.c.h.b16 %v677
    %v1335 = vunpack.c.l.b16 %v678
    %v1336 = vunpack.c.h.b16 %v678
    %v1337 = vunpack.c.l.b16 %v679
    %v1338 = vunpack.c.h.b16 %v679
    %v1339 = vunpack.c.l.b16 %v680
    %v1340 = vunpack.c.h.b16 %v680
    %v1341 = vunpack.c.l.b16 %v681
    %v1342 = vunpack.c.h.b16 %v681
    %v1343 = vunpack.c.l.b16 %v682
    %v1344 = vunpack.c.h.b16 %v682
    %v1345 = vunpack.c.l.b16 %v683
    %v1346 = vunpack.c.h.b16 %v683
    %v1347 = vunpack.c.l.b16 %v684
    %v1348 = vunpack.c.h.b16 %v684
    %v1349 = vunpack.c.l.b16 %v685
    %v1350 = vunpack.c.h.b16 %v685
    %v1351 = vunpack.c.l.b16 %v686
    %v1352 = vunpack.c.h.b16 %v686
    %v1353 = vunpack.c.l.b16 %v687
    %v1354 = vunpack.c.h.b16 %v687
    %v1355 = vunpack.c.l.b16 %v688
    %v1356 = vunpack.c.h.b16 %v688
    %v1357 = vunpack.c.l.b16 %v689
    %v1358 = vunpack.c.h.b16 %v689
    %v1359 = vunpack.c.l.b16 %v690
    %v1360 = vunpack.c.h.b16 %v690
    %v1361 = vunpack.c.l.b16 %v691
    %v1362 = vunpack.c.h.b16 %v691
    %v1363 = vunpack.c.l.b16 %v692
    %v1364 = vunpack.c.h.b16 %v692
    %v1365 = vunpack.c.l.b16 %v693
    %v1366 = vunpack.c.h.b16 %v693
    %v1367 = vunpack.c.l.b16 %v694
    %v1368 = vunpack.c.h.b16 %v694
    %v1369 = vunpack.c.l.b16 %v695
    %v1370 = vunpack.c.h.b16 %v695
    %v1371 = vunpack.c.l.b16 %v696
    %v1372 = vunpack.c.h.b16 %v696
    %v1373 = vunpack.c.l.b16 %v697
    %v1374 = vunpack.c.h.b16 %v697
    %v1375 = vunpack.c.l.b16 %v698
    %v1376 = vunpack.c.h.b16 %v698
    %v1377 = vunpack.c.l.b16 %v699
    %v1378 = vunpack.c.h.b16 %v699
    %v1379 = vunpack.c.l.b16 %v700
    %v1380 = vunpack.c.h.b16 %v700
    %v1381 = vunpack.c.l.b16 %v701
    %v1382 = vunpack.c.h.b16 %v701
    %v1383 = vunpack.c.l.b16 %v702
    %v1384 = vunpack.c.h.b16 %v702
    %v1385 = vunpack.c.l.b16 %v703
    %v1386 = vunpack.c.h.b16 %v703
    %v1387 = vunpack.c.l.b16 %v704
    %v1388 = vunpack.c.h.b16 %v704
    %v1389 = vunpack.c.l.b16 %v705
    %v1390 = vunpack.c.h.b16 %v705
    %v1391 = vunpack.c.l.b16 %v706
    %v1392 = vunpack.c.h.b16 %v706
    %v1393 = vunpack.c.l.b16 %v707
    %v1394 = vunpack.c.h.b16 %v707
    %v1395 = vunpack.c.l.b16 %v708
    %v1396 = vunpack.c.h.b16 %v708
    %v1397 = vunpack.c.l.b16 %v709
    %v1398 = vunpack.c.h.b16 %v709
    %v1399 = vunpack.c.l.b16 %v710
    %v1400 = vunpack.c.h.b16 %v710
    %v1401 = vunpack.c.l.b16 %v711
    %v1402 = vunpack.c.h.b16 %v711
    %v1403 = vunpack.c.l.b16 %v712
    %v1404 = vunpack.c.h.b16 %v712
    %v1405 = vunpack.c.l.b16 %v713
    %v1406 = vunpack.c.h.b16 %v713
    %v1407 = vunpack.c.l.b16 %v714
    %v1408 = vunpack.c.h.b16 %v714
    %v1409 = vunpack.c.l.b16 %v715
    %v1410 = vunpack.c.h.b16 %v715
    %v1411 = vunpack.c.l.b16 %v716
    %v1412 = vunpack.c.h.b16 %v716
    %v1413 = vunpack.c.l.b16 %v717
    %v1414 = vunpack.c.h.b16 %v717
    %v1415 = vunpack.c.l.b16 %v718
    %v1416 = vunpack.c.h.b16 %v718
    %v1417 = vunpack.c.l.b16 %v719
    %v1418 = vunpack.c.h.b16 %v719
    %v1419 = vunpack.c.l.b16 %v720
    %v1420 = vunpack.c.h.b16 %v720
    %v1421 = vunpack.c.l.b16 %v721
    %v1422 = vunpack.c.h.b16 %v721
    %v1423 = vunpack.c.l.b16 %v722
    %v1424 = vunpack.c.h.b16 %v722
    %v1425 = vunpack.c.l.b16 %v723
    %v1426 = vunpack.c.h.b16 %v723
    %v1427 = vunpack.c.l.b16 %v724
    %v1428 = vunpack.c.h.b16 %v724
    %v1429 = vunpack.c.l.b16 %v725
    %v1430 = vunpack.c.h.b16 %v725
    %v1431 = vunpack.c.l.b16 %v726
    %v1432 = vunpack.c.h.b16 %v726
    %v1433 = vunpack.c.l.b16 %v727
    %v1434 = vunpack.c.h.b16 %v727
    %v1435 = vunpack.c.l.b16 %v728
    %v1436 = vunpack.c.h.b16 %v728
    %v1437 = vunpack.c.l.b16 %v729
    %v1438 = vunpack.c.h.b16 %v729
    %v1439 = vunpack.c.l.b16 %v730
    %v1440 = vunpack.c.h.b16 %v730
    %v1441 = vunpack.c.l.b16 %v731
    %v1442 = vunpack.c.h.b16 %v731
    %v1443 = vunpack.c.l.b16 %v732
    %v1444 = vunpack.c.h.b16 %v732
    %v1445 = vunpack.c.l.b16 %v733
    %v1446 = vunpack.c.h.b16 %v733
    %v1447 = vunpack.c.l.b16 %v734
    %v1448 = vunpack.c.h.b16 %v734
    %v1449 = vunpack.c.l.b16 %v735
    %v1450 = vunpack.c.h.b16 %v735
    %v1451 = vunpack.c.l.b16 %v736
    %v1452 = vunpack.c.h.b16 %v736
    %v1453 = vunpack.c.l.b16 %v737
    %v1454 = vunpack.c.h.b16 %v737
    %v1455 = vunpack.c.l.b16 %v738
    %v1456 = vunpack.c.h.b16 %v738
    %v1457 = vunpack.c.l.b16 %v739
    %v1458 = vunpack.c.h.b16 %v739
    %v1459 = vunpack.c.l.b16 %v740
    %v1460 = vunpack.c.h.b16 %v740
    %v1461 = vunpack.c.l.b16 %v741
    %v1462 = vunpack.c.h.b16 %v741
    %v1463 = vunpack.c.l.b16 %v742
    %v1464 = vunpack.c.h.b16 %v742
    %v1465 = vunpack.c.l.b16 %v743
    %v1466 = vunpack.c.h.b16 %v743
    %v1467 = vunpack.c.l.b16 %v744
    %v1468 = vunpack.c.h.b16 %v744
    %v1469 = vunpack.c.l.b16 %v745
    %v1470 = vunpack.c.h.b16 %v745
    %v1471 = vunpack.c.l.b16 %v746
    %v1472 = vunpack.c.h.b16 %v746
    %v1473 = vunpack.c.l.b16 %v747
    %v1474 = vunpack.c.h.b16 %v747
    %v1475 = vunpack.c.l.b16 %v748
    %v1476 = vunpack.c.h.b16 %v748
    %v1477 = vunpack.c.l.b16 %v749
    %v1478 = vunpack.c.h.b16 %v749
    %v1479 = vunpack.c.l.b16 %v750
    %v1480 = vunpack.c.h.b16 %v750
    %v1481 = vunpack.c.l.b16 %v751
    %v1482 = vunpack.c.h.b16 %v751
    %v1483 = vunpack.c.l.b16 %v752
    %v1484 = vunpack.c.h.b16 %v752
    %v1485 = vunpack.c.l.b16 %v753
    %v1486 = vunpack.c.h.b16 %v753
    %v1487 = vunpack.c.l.b16 %v754
    %v1488 = vunpack.c.h.b16 %v754
    %v1489 = vunpack.c.l.b16 %v755
    %v1490 = vunpack.c.h.b16 %v755
    %v1491 = vunpack.c.l.b16 %v756
    %v1492 = vunpack.c.h.b16 %v756
    %v1493 = vunpack.c.l.b16 %v757
    %v1494 = vunpack.c.h.b16 %v757
    %v1495 = vunpack.c.l.b16 %v758
    %v1496 = vunpack.c.h.b16 %v758
    %v1497 = vunpack.c.l.b16 %v759
    %v1498 = vunpack.c.h.b16 %v759
    %v1499 = vunpack.c.l.b16 %v760
    %v1500 = vunpack.c.h.b16 %v760
    %v1501 = vunpack.c.l.b16 %v761
    %v1502 = vunpack.c.h.b16 %v761
    %v1503 = vunpack.c.l.b16 %v762
    %v1504 = vunpack.c.h.b16 %v762
    %v1505 = vunpack.c.l.b16 %v763
    %v1506 = vunpack.c.h.b16 %v763
    %v1507 = vunpack.c.l.b16 %v764
    %v1508 = vunpack.c.h.b16 %v764
    %v1509 = vunpack.c.l.b16 %v765
    %v1510 = vunpack.c.h.b16 %v765
    %v1511 = vunpack.c.l.b16 %v766
    %v1512 = vunpack.c.h.b16 %v766
    %v1513 = vunpack.c.l.b16 %v767
    %v1514 = vunpack.c.h.b16 %v767
    %v1515 = vunpack.c.l.b16 %v768
    %v1516 = vunpack.c.h.b16 %v768
    %v1517 = vunpack.c.l.b16 %v769
    %v1518 = vunpack.c.h.b16 %v769
    %v1519 = vunpack.c.l.b16 %v770
    %v1520 = vunpack.c.h.b16 %v770
    %v1521 = vunpack.c.l.b16 %v771
    %v1522 = vunpack.c.h.b16 %v771
    %v1523 = vunpack.c.l.b16 %v772
    %v1524 = vunpack.c.h.b16 %v772
    %v1525 = vunpack.c.l.b16 %v773
    %v1526 = vunpack.c.h.b16 %v773
    %v1527 = vunpack.c.l.b16 %v774
    %v1528 = vunpack.c.h.b16 %v774
    %v1529 = vunpack.c.l.b16 %v775
    %v1530 = vunpack.c.h.b16 %v775
    %v1531 = vunpack.c.l.b16 %v776
    %v1532 = vunpack.c.h.b16 %v776
    %v1533 = vunpack.c.l.b16 %v777
    %v1534 = vunpack.c.h.b16 %v777
    %v1535 = vunpack.c.l.b16 %v778
    %v1536 = vunpack.c.h.b16 %v778
    %v1537 = vunpack.c.l.b16 %v779
    %v1538 = vunpack.c.h.b16 %v779
    %v1539 = vunpack.c.l.b16 %v780
    %v1540 = vunpack.c.h.b16 %v780
    %v1541 = vunpack.c.l.b16 %v781
    %v1542 = vunpack.c.h.b16 %v781
    %v1543 = vunpack.c.l.b16 %v782
    %v1544 = vunpack.c.h.b16 %v782
    %v1545 = vunpack.c.l.b16 %v783
    %v1546 = vunpack.c.h.b16 %v783
    %v1547 = vunpack.c.l.b16 %v784
    %v1548 = vunpack.c.h.b16 %v784
    %v1549 = vunpack.c.l.b16 %v785
    %v1550 = vunpack.c.h.b16 %v785
    %v1551 = vunpack.c.l.b16 %v786
    %v1552 = vunpack.c.h.b16 %v786
    %v1553 = vunpack.c.l.b16 %v787
    %v1554 = vunpack.c.h.b16 %v787
    %v1555 = vunpack.c.l.b16 %v788
    %v1556 = vunpack.c.h.b16 %v788
    %v1557 = vunpack.c.l.b16 %v789
    %v1558 = vunpack.c.h.b16 %v789
    %v1559 = vunpack.c.l.b16 %v790
    %v1560 = vunpack.c.h.b16 %v790
    %v1561 = vunpack.c.l.b16 %v791
    %v1562 = vunpack.c.h.b16 %v791
    %v1563 = vunpack.c.l.b16 %v792
    %v1564 = vunpack.c.h.b16 %v792
    %v1565 = vunpack.c.l.b16 %v793
    %v1566 = vunpack.c.h.b16 %v793
    %v1567 = vunpack.c.l.b16 %v794
    %v1568 = vunpack.c.h.b16 %v794
    %v1569 = vunpack.c.l.b16 %v795
    %v1570 = vunpack.c.h.b16 %v795
    %v1571 = vunpack.c.l.b16 %v796
    %v1572 = vunpack.c.h.b16 %v796
    %v1573 = vunpack.c.l.b16 %v797
    %v1574 = vunpack.c.h.b16 %v797
    %v1575 = vunpack.c.l.b16 %v798
    %v1576 = vunpack.c.h.b16 %v798
    %v1577 = vunpack.c.l.b16 %v799
    %v1578 = vunpack.c.h.b16 %v799
    %v1579 = vunpack.c.l.b16 %v800
    %v1580 = vunpack.c.h.b16 %v800
    %v1581 = vunpack.c.l.b16 %v801
    %v1582 = vunpack.c.h.b16 %v801
    %v1583 = vunpack.c.l.b16 %v802
    %v1584 = vunpack.c.h.b16 %v802
    %v1585 = vunpack.c.l.b16 %v803
    %v1586 = vunpack.c.h.b16 %v803
    %v1587 = vunpack.c.l.b16 %v804
    %v1588 = vunpack.c.h.b16 %v804
    %v1589 = vunpack.c.l.b16 %v805
    %v1590 = vunpack.c.h.b16 %v805
    %v1591 = vunpack.c.l.b16 %v806
    %v1592 = vunpack.c.h.b16 %v806
    %v1593 = vunpack.c.l.b16 %v807
    %v1594 = vunpack.c.h.b16 %v807
    %v1595 = vunpack.c.l.b16 %v808
    %v1596 = vunpack.c.h.b16 %v808
    %v1597 = vunpack.c.l.b16 %v809
    %v1598 = vunpack.c.h.b16 %v809
    %v1599 = vunpack.c.l.b16 %v810
    %v1600 = vunpack.c.h.b16 %v810
    %v1601 = vunpack.c.l.b16 %v811
    %v1602 = vunpack.c.h.b16 %v811
    %v1603 = vunpack.c.l.b16 %v812
    %v1604 = vunpack.c.h.b16 %v812
    %v1605 = vunpack.c.l.b16 %v813
    %v1606 = vunpack.c.h.b16 %v813
    %v1607 = vunpack.c.l.b16 %v814
    %v1608 = vunpack.c.h.b16 %v814
    %v1609 = vunpack.c.l.b16 %v815
    %v1610 = vunpack.c.h.b16 %v815
    %v1611 = vunpack.c.l.b16 %v816
    %v1612 = vunpack.c.h.b16 %v816
    %v1613 = vunpack.c.l.b16 %v817
    %v1614 = vunpack.c.h.b16 %v817
    %v1615 = vunpack.c.l.b16 %v818
    %v1616 = vunpack.c.h.b16 %v818
    %v1617 = vunpack.c.l.b16 %v819
    %v1618 = vunpack.c.h.b16 %v819
    %v1619 = vpack.c.b16 %v1111, %v1107
    %v1620 = vpack.c.b16 %v1112, %v1108
    %v1621 = vpack.c.b16 %v1113, %v1109
    %v1622 = vpack.c.b16 %v1114, %v1110
    %v1623 = vpack.c.b16 %v1119, %v1115
    %v1624 = vpack.c.b16 %v1120, %v1116
    %v1625 = vpack.c.b16 %v1121, %v1117
    %v1626 = vpack.c.b16 %v1122, %v1118
    %v1627 = vpack.c.b16 %v1127, %v1123
    %v1628 = vpack.c.b16 %v1128, %v1124
    %v1629 = vpack.c.b16 %v1129, %v1125
    %v1630 = vpack.c.b16 %v1130, %v1126
    %v1631 = vpack.c.b16 %v1135, %v1131
    %v1632 = vpack.c.b16 %v1136, %v1132
    %v1633 = vpack.c.b16 %v1137, %v1133
    %v1634 = vpack.c.b16 %v1138, %v1134
    %v1635 = vpack.c.b16 %v1143, %v1139
    %v1636 = vpack.c.b16 %v1144, %v1140
    %v1637 = vpack.c.b16 %v1145, %v1141
    %v1638 = vpack.c.b16 %v1146, %v1142
    %v1639 = vpack.c.b16 %v1151, %v1147
    %v1640 = vpack.c.b16 %v1152, %v1148
    %v1641 = vpack.c.b16 %v1153, %v1149
    %v1642 = vpack.c.b16 %v1154, %v1150
    %v1643 = vpack.c.b16 %v1159, %v1155
    %v1644 = vpack.c.b16 %v1160, %v1156
    %v1645 = vpack.c.b16 %v1161, %v1157
    %v1646 = vpack.c.b16 %v1162, %v1158
    %v1647 = vpack.c.b16 %v1167, %v1163
    %v1648 = vpack.c.b16 %v1168, %v1164
    %v1649 = vpack.c.b16 %v1169, %v1165
    %v1650 = vpack.c.b16 %v1170, %v1166
    %v1651 = vpack.c.b16 %v1175, %v1171
    %v1652 = vpack.c.b16 %v1176, %v1172
    %v1653 = vpack.c.b16 %v1177, %v1173
    %v1654 = vpack.c.b16 %v1178, %v1174
    %v1655 = vpack.c.b16 %v1183, %v1179
    %v1656 = vpack.c.b16 %v1184, %v1180
    %v1657 = vpack.c.b16 %v1185, %v1181
    %v1658 = vpack.c.b16 %v1186, %v1182
    %v1659 = vpack.c.b16 %v1191, %v1187
    %v1660 = vpack.c.b16 %v1192, %v1188
    %v1661 = vpack.c.b16 %v1193, %v1189
    %v1662 = vpack.c.b16 %v1194, %v1190
    %v1663 = vpack.c.b16 %v1199, %v1195
    %v1664 = vpack.c.b16 %v1200, %v1196
    %v1665 = vpack.c.b16 %v1201, %v1197
    %v1666 = vpack.c.b16 %v1202, %v1198
    %v1667 = vpack.c.b16 %v1207, %v1203
    %v1668 = vpack.c.b16 %v1208, %v1204
    %v1669 = vpack.c.b16 %v1209, %v1205
    %v1670 = vpack.c.b16 %v1210, %v1206
    %v1671 = vpack.c.b16 %v1215, %v1211
    %v1672 = vpack.c.b16 %v1216, %v1212
    %v1673 = vpack.c.b16 %v1217, %v1213
    %v1674 = vpack.c.b16 %v1218, %v1214
    %v1675 = vpack.c.b16 %v1223, %v1219
    %v1676 = vpack.c.b16 %v1224, %v1220
    %v1677 = vpack.c.b16 %v1225, %v1221
    %v1678 = vpack.c.b16 %v1226, %v1222
    %v1679 = vpack.c.b16 %v1231, %v1227
    %v1680 = vpack.c.b16 %v1232, %v1228
    %v1681 = vpack.c.b16 %v1233, %v1229
    %v1682 = vpack.c.b16 %v1234, %v1230
    %v1683 = vpack.c.b16 %v1239, %v1235
    %v1684 = vpack.c.b16 %v1240, %v1236
    %v1685 = vpack.c.b16 %v1241, %v1237
    %v1686 = vpack.c.b16 %v1242, %v1238
    %v1687 = vpack.c.b16 %v1247, %v1243
    %v1688 = vpack.c.b16 %v1248, %v1244
    %v1689 = vpack.c.b16 %v1249, %v1245
    %v1690 = vpack.c.b16 %v1250, %v1246
    %v1691 = vpack.c.b16 %v1255, %v1251
    %v1692 = vpack.c.b16 %v1256, %v1252
    %v1693 = vpack.c.b16 %v1257, %v1253
    %v1694 = vpack.c.b16 %v1258, %v1254
    %v1695 = vpack.c.b16 %v1263, %v1259
    %v1696 = vpack.c.b16 %v1264, %v1260
    %v1697 = vpack.c.b16 %v1265, %v1261
    %v1698 = vpack.c.b16 %v1266, %v1262
    %v1699 = vpack.c.b16 %v1271, %v1267
    %v1700 = vpack.c.b16 %v1272, %v1268
    %v1701 = vpack.c.b16 %v1273, %v1269
    %v1702 = vpack.c.b16 %v1274, %v1270
    %v1703 = vpack.c.b16 %v1279, %v1275
    %v1704 = vpack.c.b16 %v1280, %v1276
    %v1705 = vpack.c.b16 %v1281, %v1277
    %v1706 = vpack.c.b16 %v1282, %v1278
    %v1707 = vpack.c.b16 %v1287, %v1283
    %v1708 = vpack.c.b16 %v1288, %v1284
    %v1709 = vpack.c.b16 %v1289, %v1285
    %v1710 = vpack.c.b16 %v1290, %v1286
    %v1711 = vpack.c.b16 %v1295, %v1291
    %v1712 = vpack.c.b16 %v1296, %v1292
    %v1713 = vpack.c.b16 %v1297, %v1293
    %v1714 = vpack.c.b16 %v1298, %v1294
    %v1715 = vpack.c.b16 %v1303, %v1299
    %v1716 = vpack.c.b16 %v1304, %v1300
    %v1717 = vpack.c.b16 %v1305, %v1301
    %v1718 = vpack.c.b16 %v1306, %v1302
    %v1719 = vpack.c.b16 %v1311, %v1307
    %v1720 = vpack.c.b16 %v1312, %v1308
    %v1721 = vpack.c.b16 %v1313, %v1309
    %v1722 = vpack.c.b16 %v1314, %v1310
    %v1723 = vpack.c.b16 %v1319, %v1315
    %v1724 = vpack.c.b16 %v1320, %v1316
    %v1725 = vpack.c.b16 %v1321, %v1317
    %v1726 = vpack.c.b16 %v1322, %v1318
    %v1727 = vpack.c.b16 %v1327, %v1323
    %v1728 = vpack.c.b16 %v1328, %v1324
    %v1729 = vpack.c.b16 %v1329, %v1325
    %v1730 = vpack.c.b16 %v1330, %v1326
    %v1731 = vpack.c.b16 %v1335, %v1331
    %v1732 = vpack.c.b16 %v1336, %v1332
    %v1733 = vpack.c.b16 %v1337, %v1333
    %v1734 = vpack.c.b16 %v1338, %v1334
    %v1735 = vpack.c.b16 %v1343, %v1339
    %v1736 = vpack.c.b16 %v1344, %v1340
    %v1737 = vpack.c.b16 %v1345, %v1341
    %v1738 = vpack.c.b16 %v1346, %v1342
    %v1739 = vpack.c.b16 %v1351, %v1347
    %v1740 = vpack.c.b16 %v1352, %v1348
    %v1741 = vpack.c.b16 %v1353, %v1349
    %v1742 = vpack.c.b16 %v1354, %v1350
    %v1743 = vpack.c.b16 %v1359, %v1355
    %v1744 = vpack.c.b16 %v1360, %v1356
    %v1745 = vpack.c.b16 %v1361, %v1357
    %v1746 = vpack.c.b16 %v1362, %v1358
    %v1747 = vpack.c.b16 %v1367, %v1363
    %v1748 = vpack.c.b16 %v1368, %v1364
    %v1749 = vpack.c.b16 %v1369, %v1365
    %v1750 = vpack.c.b16 %v1370, %v1366
    %v1751 = vpack.c.b16 %v1375, %v1371
    %v1752 = vpack.c.b16 %v1376, %v1372
    %v1753 = vpack.c.b16 %v1377, %v1373
    %v1754 = vpack.c.b16 %v1378, %v1374
    %v1755 = vpack.c.b16 %v1383, %v1379
    %v1756 = vpack.c.b16 %v1384, %v1380
    %v1757 = vpack.c.b16 %v1385, %v1381
    %v1758 = vpack.c.b16 %v1386, %v1382
    %v1759 = vpack.c.b16 %v1391, %v1387
    %v1760 = vpack.c.b16 %v1392, %v1388
    %v1761 = vpack.c.b16 %v1393, %v1389
    %v1762 = vpack.c.b16 %v1394, %v1390
    %v1763 = vpack.c.b16 %v1399, %v1395
    %v1764 = vpack.c.b16 %v1400, %v1396
    %v1765 = vpack.c.b16 %v1401, %v1397
    %v1766 = vpack.c.b16 %v1402, %v1398
    %v1767 = vpack.c.b16 %v1407, %v1403
    %v1768 = vpack.c.b16 %v1408, %v1404
    %v1769 = vpack.c.b16 %v1409, %v1405
    %v1770 = vpack.c.b16 %v1410, %v1406
    %v1771 = vpack.c.b16 %v1415, %v1411
    %v1772 = vpack.c.b16 %v1416, %v1412
    %v1773 = vpack.c.b16 %v1417, %v1413
    %v1774 = vpack.c.b16 %v1418, %v1414
    %v1775 = vpack.c.b16 %v1423, %v1419
    %v1776 = vpack.c.b16 %v1424, %v1420
    %v1777 = vpack.c.b16 %v1425, %v1421
    %v1778 = vpack.c.b16 %v1426, %v1422
    %v1779 = vpack.c.b16 %v1431, %v1427
    %v1780 = vpack.c.b16 %v1432, %v1428
    %v1781 = vpack.c.b16 %v1433, %v1429
    %v1782 = vpack.c.b16 %v1434, %v1430
    %v1783 = vpack.c.b16 %v1439, %v1435
    %v1784 = vpack.c.b16 %v1440, %v1436
    %v1785 = vpack.c.b16 %v1441, %v1437
    %v1786 = vpack.c.b16 %v1442, %v1438
    %v1787 = vpack.c.b16 %v1447, %v1443
    %v1788 = vpack.c.b16 %v1448, %v1444
    %v1789 = vpack.c.b16 %v1449, %v1445
    %v1790 = vpack.c.b16 %v1450, %v1446
    %v1791 = vpack.c.b16 %v1455, %v1451
    %v1792 = vpack.c.b16 %v1456, %v1452
    %v1793 = vpack.c.b16 %v1457, %v1453
    %v1794 = vpack.c.b16 %v1458, %v1454
    %v1795 = vpack.c.b16 %v1463, %v1459
    %v1796 = vpack.c.b16 %v1464, %v1460
    %v1797 = vpack.c.b16 %v1465, %v1461
    %v1798 = vpack.c.b16 %v1466, %v1462
    %v1799 = vpack.c.b16 %v1471, %v1467
    %v1800 = vpack.c.b16 %v1472, %v1468
    %v1801 = vpack.c.b16 %v1473, %v1469
    %v1802 = vpack.c.b16 %v1474, %v1470
    %v1803 = vpack.c.b16 %v1479, %v1475
    %v1804 = vpack.c.b16 %v1480, %v1476
    %v1805 = vpack.c.b16 %v1481, %v1477
    %v1806 = vpack.c.b16 %v1482, %v1478
    %v1807 = vpack.c.b16 %v1487, %v1483
    %v1808 = vpack.c.b16 %v1488, %v1484
    %v1809 = vpack.c.b16 %v1489, %v1485
    %v1810 = vpack.c.b16 %v1490, %v1486
    %v1811 = vpack.c.b16 %v1495, %v1491
    %v1812 = vpack.c.b16 %v1496, %v1492
    %v1813 = vpack.c.b16 %v1497, %v1493
    %v1814 = vpack.c.b16 %v1498, %v1494
    %v1815 = vpack.c.b16 %v1503, %v1499
    %v1816 = vpack.c.b16 %v1504, %v1500
    %v1817 = vpack.c.b16 %v1505, %v1501
    %v1818 = vpack.c.b16 %v1506, %v1502
    %v1819 = vpack.c.b16 %v1511, %v1507
    %v1820 = vpack.c.b16 %v1512, %v1508
    %v1821 = vpack.c.b16 %v1513, %v1509
    %v1822 = vpack.c.b16 %v1514, %v1510
    %v1823 = vpack.c.b16 %v1519, %v1515
    %v1824 = vpack.c.b16 %v1520, %v1516
    %v1825 = vpack.c.b16 %v1521, %v1517
    %v1826 = vpack.c.b16 %v1522, %v1518
    %v1827 = vpack.c.b16 %v1527, %v1523
    %v1828 = vpack.c.b16 %v1528, %v1524
    %v1829 = vpack.c.b16 %v1529, %v1525
    %v1830 = vpack.c.b16 %v1530, %v1526
    %v1831 = vpack.c.b16 %v1535, %v1531
    %v1832 = vpack.c.b16 %v1536, %v1532
    %v1833 = vpack.c.b16 %v1537, %v1533
    %v1834 = vpack.c.b16 %v1538, %v1534
    %v1835 = vpack.c.b16 %v1543, %v1539
    %v1836 = vpack.c.b16 %v1544, %v1540
    %v1837 = vpack.c.b16 %v1545, %v1541
    %v1838 = vpack.c.b16 %v1546, %v1542
    %v1839 = vpack.c.b16 %v1551, %v1547
    %v1840 = vpack.c.b16 %v1552, %v1548
    %v1841 = vpack.c.b16 %v1553, %v1549
    %v1842 = vpack.c.b16 %v1554, %v1550
    %v1843 = vpack.c.b16 %v1559, %v1555
    %v1844 = vpack.c.b16 %v1560, %v1556
    %v1845 = vpack.c.b16 %v1561, %v1557
    %v1846 = vpack.c.b16 %v1562, %v1558
    %v1847 = vpack.c.b16 %v1567, %v1563
    %v1848 = vpack.c.b16 %v1568, %v1564
    %v1849 = vpack.c.b16 %v1569, %v1565
    %v1850 = vpack.c.b16 %v1570, %v1566
    %v1851 = vpack.c.b16 %v1575, %v1571
    %v1852 = vpack.c.b16 %v1576, %v1572
    %v1853 = vpack.c.b16 %v1577, %v1573
    %v1854 = vpack.c.b16 %v1578, %v1574
    %v1855 = vpack.c.b16 %v1583, %v1579
    %v1856 = vpack.c.b16 %v1584, %v1580
    %v1857 = vpack.c.b16 %v1585, %v1581
    %v1858 = vpack.c.b16 %v1586, %v1582
    %v1859 = vpack.c.b16 %v1591, %v1587
    %v1860 = vpack.c.b16 %v1592, %v1588
    %v1861 = vpack.c.b16 %v1593, %v1589
    %v1862 = vpack.c.b16 %v1594, %v1590
    %v1863 = vpack.c.b16 %v1599, %v1595
    %v1864 = vpack.c.b16 %v1600, %v1596
    %v1865 = vpack.c.b16 %v1601, %v1597
    %v1866 = vpack.c.b16 %v1602, %v1598
    %v1867 = vpack.c.b16 %v1607, %v1603
    %v1868 = vpack.c.b16 %v1608, %v1604
    %v1869 = vpack.c.b16 %v1609, %v1605
    %v1870 = vpack.c.b16 %v1610, %v1606
    %v1871 = vpack.c.b16 %v1615, %v1611
    %v1872 = vpack.c.b16 %v1616, %v1612
    %v1873 = vpack.c.b16 %v1617, %v1613
    %v1874 = vpack.c.b16 %v1618, %v1614
    %2131 = vmatprep.subr.bf16.mxu0 %v1648
    %2132 = vmatpush1.bf16.msra.mxu0 %v1647
    %2133 = vmatprep.subr.bf16.mxu0 %v1644
    %2134 = vmatpush1.bf16.msra.mxu0 %v1643
    %2135 = vmatprep.subr.bf16.mxu0 %v1640
    %2136 = vmatpush1.bf16.msra.mxu0 %v1639
    %2137 = vmatprep.subr.bf16.mxu0 %v1636
    %2138 = vmatpush1.bf16.msra.mxu0 %v1635
    %2139 = vmatprep.subr.bf16.mxu0 %v1632
    %2140 = vmatpush1.bf16.msra.mxu0 %v1631
    %2141 = vmatprep.subr.bf16.mxu0 %v1628
    %2142 = vmatpush1.bf16.msra.mxu0 %v1627
    %2143 = vmatprep.subr.bf16.mxu0 %v1624
    %2144 = vmatpush1.bf16.msra.mxu0 %v1623
    %2145 = vmatprep.subr.bf16.mxu0 %v1620
    %2146 = vmatpush1.bf16.msra.mxu0 %v1619
    %2147 = vmatprep.subr.bf16.mxu0 %v1680
    %2148 = vmatpush2.bf16.msra.mxu0 %v1679
    %2149 = vmatprep.subr.bf16.mxu0 %v1676
    %2150 = vmatpush2.bf16.msra.mxu0 %v1675
    %2151 = vmatprep.subr.bf16.mxu0 %v1672
    %2152 = vmatpush2.bf16.msra.mxu0 %v1671
    %2153 = vmatprep.subr.bf16.mxu0 %v1668
    %2154 = vmatpush2.bf16.msra.mxu0 %v1667
    %2155 = vmatprep.subr.bf16.mxu0 %v1664
    %2156 = vmatpush2.bf16.msra.mxu0 %v1663
    %2157 = vmatprep.subr.bf16.mxu0 %v1660
    %2158 = vmatpush2.bf16.msra.mxu0 %v1659
    %2159 = vmatprep.subr.bf16.mxu0 %v1656
    %2160 = vmatpush2.bf16.msra.mxu0 %v1655
    %2161 = vmatprep.subr.bf16.mxu0 %v1652
    %2162 = vmatpush2.bf16.msra.mxu0 %v1651
    %2163 = vmatprep.mubr.bf16.mxu0 %v821
    %2164 = vmatmul.mubr.bf16.gmra.mxu0 %v820
    %v2165 = vpop.f32.mrf.mxu0
    %v2166 = vadd.f32 %v834, %v2165
    %v2167 = vpop.f32.mrf.mxu0
    %v2168 = vadd.f32 %v838, %v2167
    %v2169 = vpop.f32.mrf.mxu0
    %v2170 = vpop.f32.mrf.mxu0
    %2171 = vdwg.mxu0
    %2172 = vmatprep.subr.bf16.mxu0 %v1712
    %2173 = vmatpush1.bf16.msra.mxu0 %v1711
    %2174 = vmatprep.subr.bf16.mxu0 %v1708
    %2175 = vmatpush1.bf16.msra.mxu0 %v1707
    %2176 = vmatprep.subr.bf16.mxu0 %v1704
    %2177 = vmatpush1.bf16.msra.mxu0 %v1703
    %2178 = vmatprep.subr.bf16.mxu0 %v1700
    %2179 = vmatpush1.bf16.msra.mxu0 %v1699
    %2180 = vmatprep.subr.bf16.mxu0 %v1696
    %2181 = vmatpush1.bf16.msra.mxu0 %v1695
    %2182 = vmatprep.subr.bf16.mxu0 %v1692
    %2183 = vmatpush1.bf16.msra.mxu0 %v1691
    %2184 = vmatprep.subr.bf16.mxu0 %v1688
    %2185 = vmatpush1.bf16.msra.mxu0 %v1687
    %2186 = vmatprep.subr.bf16.mxu0 %v1684
    %2187 = vmatpush1.bf16.msra.mxu0 %v1683
    %2188 = vmatprep.subr.bf16.mxu0 %v1744
    %2189 = vmatpush2.bf16.msra.mxu0 %v1743
    %2190 = vmatprep.subr.bf16.mxu0 %v1740
    %2191 = vmatpush2.bf16.msra.mxu0 %v1739
    %2192 = vmatprep.subr.bf16.mxu0 %v1736
    %2193 = vmatpush2.bf16.msra.mxu0 %v1735
    %2194 = vmatprep.subr.bf16.mxu0 %v1732
    %2195 = vmatpush2.bf16.msra.mxu0 %v1731
    %2196 = vmatprep.subr.bf16.mxu0 %v1728
    %2197 = vmatpush2.bf16.msra.mxu0 %v1727
    %2198 = vmatprep.subr.bf16.mxu0 %v1724
    %2199 = vmatpush2.bf16.msra.mxu0 %v1723
    %2200 = vmatprep.subr.bf16.mxu0 %v1720
    %2201 = vmatpush2.bf16.msra.mxu0 %v1719
    %2202 = vmatprep.subr.bf16.mxu0 %v1716
    %2203 = vmatpush2.bf16.msra.mxu0 %v1715
    %2204 = vmatprep.mubr.bf16.mxu0 %v823
    %2205 = vmatmul.mubr.bf16.gmra.mxu0 %v822
    %v2206 = vpop.f32.mrf.mxu0
    %v2207 = vadd.f32 %v2166, %v2206
    %v2208 = vpop.f32.mrf.mxu0
    %v2209 = vadd.f32 %v2168, %v2208
    %v2210 = vpop.f32.mrf.mxu0
    %v2211 = vpop.f32.mrf.mxu0
    %2212 = vdwg.mxu0
    %2213 = vmatprep.subr.bf16.mxu0 %v1776
    %2214 = vmatpush1.bf16.msra.mxu0 %v1775
    %2215 = vmatprep.subr.bf16.mxu0 %v1772
    %2216 = vmatpush1.bf16.msra.mxu0 %v1771
    %2217 = vmatprep.subr.bf16.mxu0 %v1768
    %2218 = vmatpush1.bf16.msra.mxu0 %v1767
    %2219 = vmatprep.subr.bf16.mxu0 %v1764
    %2220 = vmatpush1.bf16.msra.mxu0 %v1763
    %2221 = vmatprep.subr.bf16.mxu0 %v1760
    %2222 = vmatpush1.bf16.msra.mxu0 %v1759
    %2223 = vmatprep.subr.bf16.mxu0 %v1756
    %2224 = vmatpush1.bf16.msra.mxu0 %v1755
    %2225 = vmatprep.subr.bf16.mxu0 %v1752
    %2226 = vmatpush1.bf16.msra.mxu0 %v1751
    %2227 = vmatprep.subr.bf16.mxu0 %v1748
    %2228 = vmatpush1.bf16.msra.mxu0 %v1747
    %2229 = vmatprep.subr.bf16.mxu0 %v1808
    %2230 = vmatpush2.bf16.msra.mxu0 %v1807
    %2231 = vmatprep.subr.bf16.mxu0 %v1804
    %2232 = vmatpush2.bf16.msra.mxu0 %v1803
    %2233 = vmatprep.subr.bf16.mxu0 %v1800
    %2234 = vmatpush2.bf16.msra.mxu0 %v1799
    %2235 = vmatprep.subr.bf16.mxu0 %v1796
    %2236 = vmatpush2.bf16.msra.mxu0 %v1795
    %2237 = vmatprep.subr.bf16.mxu0 %v1792
    %2238 = vmatpush2.bf16.msra.mxu0 %v1791
    %2239 = vmatprep.subr.bf16.mxu0 %v1788
    %2240 = vmatpush2.bf16.msra.mxu0 %v1787
    %2241 = vmatprep.subr.bf16.mxu0 %v1784
    %2242 = vmatpush2.bf16.msra.mxu0 %v1783
    %2243 = vmatprep.subr.bf16.mxu0 %v1780
    %2244 = vmatpush2.bf16.msra.mxu0 %v1779
    %2245 = vmatprep.mubr.bf16.mxu0 %v825
    %2246 = vmatmul.mubr.bf16.gmra.mxu0 %v824
    %v2247 = vpop.f32.mrf.mxu0
    %v2248 = vadd.f32 %v2207, %v2247
    %v2249 = vpop.f32.mrf.mxu0
    %v2250 = vadd.f32 %v2209, %v2249
    %v2251 = vpop.f32.mrf.mxu0
    %v2252 = vpop.f32.mrf.mxu0
    %2253 = vdwg.mxu0
    %2254 = vmatprep.subr.bf16.mxu0 %v1840
    %2255 = vmatpush1.bf16.msra.mxu0 %v1839
    %2256 = vmatprep.subr.bf16.mxu0 %v1836
    %2257 = vmatpush1.bf16.msra.mxu0 %v1835
    %2258 = vmatprep.subr.bf16.mxu0 %v1832
    %2259 = vmatpush1.bf16.msra.mxu0 %v1831
    %2260 = vmatprep.subr.bf16.mxu0 %v1828
    %2261 = vmatpush1.bf16.msra.mxu0 %v1827
    %2262 = vmatprep.subr.bf16.mxu0 %v1824
    %2263 = vmatpush1.bf16.msra.mxu0 %v1823
    %2264 = vmatprep.subr.bf16.mxu0 %v1820
    %2265 = vmatpush1.bf16.msra.mxu0 %v1819
    %2266 = vmatprep.subr.bf16.mxu0 %v1816
    %2267 = vmatpush1.bf16.msra.mxu0 %v1815
    %2268 = vmatprep.subr.bf16.mxu0 %v1812
    %2269 = vmatpush1.bf16.msra.mxu0 %v1811
    %2270 = vmatprep.subr.bf16.mxu0 %v1872
    %2271 = vmatpush2.bf16.msra.mxu0 %v1871
    %2272 = vmatprep.subr.bf16.mxu0 %v1868
    %2273 = vmatpush2.bf16.msra.mxu0 %v1867
    %2274 = vmatprep.subr.bf16.mxu0 %v1864
    %2275 = vmatpush2.bf16.msra.mxu0 %v1863
    %2276 = vmatprep.subr.bf16.mxu0 %v1860
    %2277 = vmatpush2.bf16.msra.mxu0 %v1859
    %2278 = vmatprep.subr.bf16.mxu0 %v1856
    %2279 = vmatpush2.bf16.msra.mxu0 %v1855
    %2280 = vmatprep.subr.bf16.mxu0 %v1852
    %2281 = vmatpush2.bf16.msra.mxu0 %v1851
    %2282 = vmatprep.subr.bf16.mxu0 %v1848
    %2283 = vmatpush2.bf16.msra.mxu0 %v1847
    %2284 = vmatprep.subr.bf16.mxu0 %v1844
    %2285 = vmatpush2.bf16.msra.mxu0 %v1843
    %2286 = vmatprep.mubr.bf16.mxu0 %v827
    %2287 = vmatmul.mubr.bf16.gmra.mxu0 %v826
    %v2288 = vpop.f32.mrf.mxu0
    %v2289 = vadd.f32 %v2248, %v2288
    %v2290 = vpop.f32.mrf.mxu0
    %v2291 = vadd.f32 %v2250, %v2290
    %v2292 = vpop.f32.mrf.mxu0
    %v2293 = vpop.f32.mrf.mxu0
    %2294 = vdwg.mxu0
    %2295 = vmatprep.subr.bf16.mxu0 %v1650
    %2296 = vmatpush1.bf16.msra.mxu0 %v1649
    %2297 = vmatprep.subr.bf16.mxu0 %v1646
    %2298 = vmatpush1.bf16.msra.mxu0 %v1645
    %2299 = vmatprep.subr.bf16.mxu0 %v1642
    %2300 = vmatpush1.bf16.msra.mxu0 %v1641
    %2301 = vmatprep.subr.bf16.mxu0 %v1638
    %2302 = vmatpush1.bf16.msra.mxu0 %v1637
    %2303 = vmatprep.subr.bf16.mxu0 %v1634
    %2304 = vmatpush1.bf16.msra.mxu0 %v1633
    %2305 = vmatprep.subr.bf16.mxu0 %v1630
    %2306 = vmatpush1.bf16.msra.mxu0 %v1629
    %2307 = vmatprep.subr.bf16.mxu0 %v1626
    %2308 = vmatpush1.bf16.msra.mxu0 %v1625
    %2309 = vmatprep.subr.bf16.mxu0 %v1622
    %2310 = vmatpush1.bf16.msra.mxu0 %v1621
    %2311 = vmatprep.subr.bf16.mxu0 %v1682
    %2312 = vmatpush2.bf16.msra.mxu0 %v1681
    %2313 = vmatprep.subr.bf16.mxu0 %v1678
    %2314 = vmatpush2.bf16.msra.mxu0 %v1677
    %2315 = vmatprep.subr.bf16.mxu0 %v1674
    %2316 = vmatpush2.bf16.msra.mxu0 %v1673
    %2317 = vmatprep.subr.bf16.mxu0 %v1670
    %2318 = vmatpush2.bf16.msra.mxu0 %v1669
    %2319 = vmatprep.subr.bf16.mxu0 %v1666
    %2320 = vmatpush2.bf16.msra.mxu0 %v1665
    %2321 = vmatprep.subr.bf16.mxu0 %v1662
    %2322 = vmatpush2.bf16.msra.mxu0 %v1661
    %2323 = vmatprep.subr.bf16.mxu0 %v1658
    %2324 = vmatpush2.bf16.msra.mxu0 %v1657
    %2325 = vmatprep.subr.bf16.mxu0 %v1654
    %2326 = vmatpush2.bf16.msra.mxu0 %v1653
    %2327 = vmatprep.mubr.bf16.mxu0 %v821
    %2328 = vmatmul.mubr.bf16.gmra.mxu0 %v820
    %v2329 = vpop.f32.mrf.mxu0
    %v2330 = vadd.f32 %v842, %v2329
    %v2331 = vpop.f32.mrf.mxu0
    %v2332 = vadd.f32 %v846, %v2331
    %v2333 = vpop.f32.mrf.mxu0
    %v2334 = vpop.f32.mrf.mxu0
    %2335 = vdwg.mxu0
    %2336 = vmatprep.subr.bf16.mxu0 %v1714
    %2337 = vmatpush1.bf16.msra.mxu0 %v1713
    %2338 = vmatprep.subr.bf16.mxu0 %v1710
    %2339 = vmatpush1.bf16.msra.mxu0 %v1709
    %2340 = vmatprep.subr.bf16.mxu0 %v1706
    %2341 = vmatpush1.bf16.msra.mxu0 %v1705
    %2342 = vmatprep.subr.bf16.mxu0 %v1702
    %2343 = vmatpush1.bf16.msra.mxu0 %v1701
    %2344 = vmatprep.subr.bf16.mxu0 %v1698
    %2345 = vmatpush1.bf16.msra.mxu0 %v1697
    %2346 = vmatprep.subr.bf16.mxu0 %v1694
    %2347 = vmatpush1.bf16.msra.mxu0 %v1693
    %2348 = vmatprep.subr.bf16.mxu0 %v1690
    %2349 = vmatpush1.bf16.msra.mxu0 %v1689
    %2350 = vmatprep.subr.bf16.mxu0 %v1686
    %2351 = vmatpush1.bf16.msra.mxu0 %v1685
    %2352 = vmatprep.subr.bf16.mxu0 %v1746
    %2353 = vmatpush2.bf16.msra.mxu0 %v1745
    %2354 = vmatprep.subr.bf16.mxu0 %v1742
    %2355 = vmatpush2.bf16.msra.mxu0 %v1741
    %2356 = vmatprep.subr.bf16.mxu0 %v1738
    %2357 = vmatpush2.bf16.msra.mxu0 %v1737
    %2358 = vmatprep.subr.bf16.mxu0 %v1734
    %2359 = vmatpush2.bf16.msra.mxu0 %v1733
    %2360 = vmatprep.subr.bf16.mxu0 %v1730
    %2361 = vmatpush2.bf16.msra.mxu0 %v1729
    %2362 = vmatprep.subr.bf16.mxu0 %v1726
    %2363 = vmatpush2.bf16.msra.mxu0 %v1725
    %2364 = vmatprep.subr.bf16.mxu0 %v1722
    %2365 = vmatpush2.bf16.msra.mxu0 %v1721
    %2366 = vmatprep.subr.bf16.mxu0 %v1718
    %2367 = vmatpush2.bf16.msra.mxu0 %v1717
    %2368 = vmatprep.mubr.bf16.mxu0 %v823
    %2369 = vmatmul.mubr.bf16.gmra.mxu0 %v822
    %v2370 = vpop.f32.mrf.mxu0
    %v2371 = vadd.f32 %v2330, %v2370
    %v2372 = vpop.f32.mrf.mxu0
    %v2373 = vadd.f32 %v2332, %v2372
    %v2374 = vpop.f32.mrf.mxu0
    %v2375 = vpop.f32.mrf.mxu0
    %2376 = vdwg.mxu0
    %2377 = vmatprep.subr.bf16.mxu0 %v1778
    %2378 = vmatpush1.bf16.msra.mxu0 %v1777
    %2379 = vmatprep.subr.bf16.mxu0 %v1774
    %2380 = vmatpush1.bf16.msra.mxu0 %v1773
    %2381 = vmatprep.subr.bf16.mxu0 %v1770
    %2382 = vmatpush1.bf16.msra.mxu0 %v1769
    %2383 = vmatprep.subr.bf16.mxu0 %v1766
    %2384 = vmatpush1.bf16.msra.mxu0 %v1765
    %2385 = vmatprep.subr.bf16.mxu0 %v1762
    %2386 = vmatpush1.bf16.msra.mxu0 %v1761
    %2387 = vmatprep.subr.bf16.mxu0 %v1758
    %2388 = vmatpush1.bf16.msra.mxu0 %v1757
    %2389 = vmatprep.subr.bf16.mxu0 %v1754
    %2390 = vmatpush1.bf16.msra.mxu0 %v1753
    %2391 = vmatprep.subr.bf16.mxu0 %v1750
    %2392 = vmatpush1.bf16.msra.mxu0 %v1749
    %2393 = vmatprep.subr.bf16.mxu0 %v1810
    %2394 = vmatpush2.bf16.msra.mxu0 %v1809
    %2395 = vmatprep.subr.bf16.mxu0 %v1806
    %2396 = vmatpush2.bf16.msra.mxu0 %v1805
    %2397 = vmatprep.subr.bf16.mxu0 %v1802
    %2398 = vmatpush2.bf16.msra.mxu0 %v1801
    %2399 = vmatprep.subr.bf16.mxu0 %v1798
    %2400 = vmatpush2.bf16.msra.mxu0 %v1797
    %2401 = vmatprep.subr.bf16.mxu0 %v1794
    %2402 = vmatpush2.bf16.msra.mxu0 %v1793
    %2403 = vmatprep.subr.bf16.mxu0 %v1790
    %2404 = vmatpush2.bf16.msra.mxu0 %v1789
    %2405 = vmatprep.subr.bf16.mxu0 %v1786
    %2406 = vmatpush2.bf16.msra.mxu0 %v1785
    %2407 = vmatprep.subr.bf16.mxu0 %v1782
    %2408 = vmatpush2.bf16.msra.mxu0 %v1781
    %2409 = vmatprep.mubr.bf16.mxu0 %v825
    %2410 = vmatmul.mubr.bf16.gmra.mxu0 %v824
    %v2411 = vpop.f32.mrf.mxu0
    %v2412 = vadd.f32 %v2371, %v2411
    %v2413 = vpop.f32.mrf.mxu0
    %v2414 = vadd.f32 %v2373, %v2413
    %v2415 = vpop.f32.mrf.mxu0
    %v2416 = vpop.f32.mrf.mxu0
    %2417 = vdwg.mxu0
    %2418 = vmatprep.subr.bf16.mxu0 %v1842
    %2419 = vmatpush1.bf16.msra.mxu0 %v1841
    %2420 = vmatprep.subr.bf16.mxu0 %v1838
    %2421 = vmatpush1.bf16.msra.mxu0 %v1837
    %2422 = vmatprep.subr.bf16.mxu0 %v1834
    %2423 = vmatpush1.bf16.msra.mxu0 %v1833
    %2424 = vmatprep.subr.bf16.mxu0 %v1830
    %2425 = vmatpush1.bf16.msra.mxu0 %v1829
    %2426 = vmatprep.subr.bf16.mxu0 %v1826
    %2427 = vmatpush1.bf16.msra.mxu0 %v1825
    %2428 = vmatprep.subr.bf16.mxu0 %v1822
    %2429 = vmatpush1.bf16.msra.mxu0 %v1821
    %2430 = vmatprep.subr.bf16.mxu0 %v1818
    %2431 = vmatpush1.bf16.msra.mxu0 %v1817
    %2432 = vmatprep.subr.bf16.mxu0 %v1814
    %2433 = vmatpush1.bf16.msra.mxu0 %v1813
    %2434 = vmatprep.subr.bf16.mxu0 %v1874
    %2435 = vmatpush2.bf16.msra.mxu0 %v1873
    %2436 = vmatprep.subr.bf16.mxu0 %v1870
    %2437 = vmatpush2.bf16.msra.mxu0 %v1869
    %2438 = vmatprep.subr.bf16.mxu0 %v1866
    %2439 = vmatpush2.bf16.msra.mxu0 %v1865
    %2440 = vmatprep.subr.bf16.mxu0 %v1862
    %2441 = vmatpush2.bf16.msra.mxu0 %v1861
    %2442 = vmatprep.subr.bf16.mxu0 %v1858
    %2443 = vmatpush2.bf16.msra.mxu0 %v1857
    %2444 = vmatprep.subr.bf16.mxu0 %v1854
    %2445 = vmatpush2.bf16.msra.mxu0 %v1853
    %2446 = vmatprep.subr.bf16.mxu0 %v1850
    %2447 = vmatpush2.bf16.msra.mxu0 %v1849
    %2448 = vmatprep.subr.bf16.mxu0 %v1846
    %2449 = vmatpush2.bf16.msra.mxu0 %v1845
    %2450 = vmatprep.mubr.bf16.mxu0 %v827
    %2451 = vmatmul.mubr.bf16.gmra.mxu0 %v826
    %v2452 = vpop.f32.mrf.mxu0
    %v2453 = vadd.f32 %v2412, %v2452
    %v2454 = vpop.f32.mrf.mxu0
    %v2455 = vadd.f32 %v2414, %v2454
    %v2456 = vpop.f32.mrf.mxu0
    %v2457 = vpop.f32.mrf.mxu0
    %2458 = vdwg.mxu0
    %vm2459 = vcmp.gt.f32.partialorder %v2289, 0.0
    %vm2460 = vcmp.gt.f32.partialorder %v2291, 0.0
    %vm2461 = vcmp.gt.f32.partialorder %v2453, 0.0
    %vm2462 = vcmp.gt.f32.partialorder %v2455, 0.0
    %v2463 = vmul.f32 %v2289, 0.01
    %v2464 = vmul.f32 %v2291, 0.01
    %v2465 = vmul.f32 %v2453, 0.01
    %v2466 = vmul.f32 %v2455, 0.01
    %v2467 = vsel %vm2459, %v2289, %v2463
    %v2468 = vsel %vm2460, %v2291, %v2464
    %v2469 = vsel %vm2461, %v2453, %v2465
    %v2470 = vsel %vm2462, %v2455, %v2466
    %v2471 = vld [vmem:[#allocation8] sm:$0xff]
    %v2472 = vld [vmem:[#allocation8 + $0x8] sm:$0xff]
    %v2473 = vld [vmem:[#allocation8 + $0x10] sm:$0xff]
    %v2474 = vld [vmem:[#allocation8 + $0x18] sm:$0xff]
    %v2475 = vld [vmem:[#allocation8 + $0x20] sm:$0xff]
    %v2476 = vld [vmem:[#allocation8 + $0x28] sm:$0xff]
    %v2477 = vld [vmem:[#allocation8 + $0x30] sm:$0xff]
    %v2478 = vld [vmem:[#allocation8 + $0x38] sm:$0xff]
    %v2479 = vld [vmem:[#allocation8 + $0x40] sm:$0xff]
    %v2480 = vld [vmem:[#allocation8 + $0x48] sm:$0xff]
    %v2481 = vld [vmem:[#allocation8 + $0x50] sm:$0xff]
    %v2482 = vld [vmem:[#allocation8 + $0x58] sm:$0xff]
    %v2483 = vld [vmem:[#allocation8 + $0x60] sm:$0xff]
    %v2484 = vld [vmem:[#allocation8 + $0x68] sm:$0xff]
    %v2485 = vld [vmem:[#allocation8 + $0x70] sm:$0xff]
    %v2486 = vld [vmem:[#allocation8 + $0x78] sm:$0xff]
    %v2487 = vld [vmem:[#allocation8 + $0x80] sm:$0xff]
    %v2488 = vld [vmem:[#allocation8 + $0x88] sm:$0xff]
    %v2489 = vld [vmem:[#allocation8 + $0x90] sm:$0xff]
    %v2490 = vld [vmem:[#allocation8 + $0x98] sm:$0xff]
    %v2491 = vld [vmem:[#allocation8 + $0xa0] sm:$0xff]
    %v2492 = vld [vmem:[#allocation8 + $0xa8] sm:$0xff]
    %v2493 = vld [vmem:[#allocation8 + $0xb0] sm:$0xff]
    %v2494 = vld [vmem:[#allocation8 + $0xb8] sm:$0xff]
    %v2495 = vld [vmem:[#allocation8 + $0xc0] sm:$0xff]
    %v2496 = vld [vmem:[#allocation8 + $0xc8] sm:$0xff]
    %v2497 = vld [vmem:[#allocation8 + $0xd0] sm:$0xff]
    %v2498 = vld [vmem:[#allocation8 + $0xd8] sm:$0xff]
    %v2499 = vld [vmem:[#allocation8 + $0xe0] sm:$0xff]
    %v2500 = vld [vmem:[#allocation8 + $0xe8] sm:$0xff]
    %v2501 = vld [vmem:[#allocation8 + $0xf0] sm:$0xff]
    %v2502 = vld [vmem:[#allocation8 + $0xf8] sm:$0xff]
    %v2503 = vld [vmem:[#allocation8 + $0x100] sm:$0xff]
    %v2504 = vld [vmem:[#allocation8 + $0x108] sm:$0xff]
    %v2505 = vld [vmem:[#allocation8 + $0x110] sm:$0xff]
    %v2506 = vld [vmem:[#allocation8 + $0x118] sm:$0xff]
    %v2507 = vld [vmem:[#allocation8 + $0x120] sm:$0xff]
    %v2508 = vld [vmem:[#allocation8 + $0x128] sm:$0xff]
    %v2509 = vld [vmem:[#allocation8 + $0x130] sm:$0xff]
    %v2510 = vld [vmem:[#allocation8 + $0x138] sm:$0xff]
    %v2511 = vld [vmem:[#allocation8 + $0x140] sm:$0xff]
    %v2512 = vld [vmem:[#allocation8 + $0x148] sm:$0xff]
    %v2513 = vld [vmem:[#allocation8 + $0x150] sm:$0xff]
    %v2514 = vld [vmem:[#allocation8 + $0x158] sm:$0xff]
    %v2515 = vld [vmem:[#allocation8 + $0x160] sm:$0xff]
    %v2516 = vld [vmem:[#allocation8 + $0x168] sm:$0xff]
    %v2517 = vld [vmem:[#allocation8 + $0x170] sm:$0xff]
    %v2518 = vld [vmem:[#allocation8 + $0x178] sm:$0xff]
    %v2519 = vld [vmem:[#allocation8 + $0x180] sm:$0xff]
    %v2520 = vld [vmem:[#allocation8 + $0x188] sm:$0xff]
    %v2521 = vld [vmem:[#allocation8 + $0x190] sm:$0xff]
    %v2522 = vld [vmem:[#allocation8 + $0x198] sm:$0xff]
    %v2523 = vld [vmem:[#allocation8 + $0x1a0] sm:$0xff]
    %v2524 = vld [vmem:[#allocation8 + $0x1a8] sm:$0xff]
    %v2525 = vld [vmem:[#allocation8 + $0x1b0] sm:$0xff]
    %v2526 = vld [vmem:[#allocation8 + $0x1b8] sm:$0xff]
    %v2527 = vld [vmem:[#allocation8 + $0x1c0] sm:$0xff]
    %v2528 = vld [vmem:[#allocation8 + $0x1c8] sm:$0xff]
    %v2529 = vld [vmem:[#allocation8 + $0x1d0] sm:$0xff]
    %v2530 = vld [vmem:[#allocation8 + $0x1d8] sm:$0xff]
    %v2531 = vld [vmem:[#allocation8 + $0x1e0] sm:$0xff]
    %v2532 = vld [vmem:[#allocation8 + $0x1e8] sm:$0xff]
    %v2533 = vld [vmem:[#allocation8 + $0x1f0] sm:$0xff]
    %v2534 = vld [vmem:[#allocation8 + $0x1f8] sm:$0xff]
    %v2535 = vpack.c.bf16 %v2467, %v2467
    %v2536 = vpack.c.bf16 %v2468, %v2468
    %v2537 = vpack.c.bf16 %v2469, %v2469
    %v2538 = vpack.c.bf16 %v2470, %v2470
    %v2539 = vld [vmem:[#allocation14] ss:$8 sm:$0x3]
    %v2541 = vlaneseq
    %v2542 = vshrl.u32 %v2541, 7
    %v2543 = vsub.s32 0, %v2542
    %v2544 = vrot.slane %v2539, %v2543
    %v2545 = vlaneseq
    %v2546 = vshrl.u32 %v2545, 7
    %v2547 = vsub.s32 1, %v2546
    %v2548 = vrot.slane %v2539, %v2547
    %v2615 = vunpack.c.l.b16 %v2471
    %v2616 = vunpack.c.h.b16 %v2471
    %v2617 = vunpack.c.l.b16 %v2472
    %v2618 = vunpack.c.h.b16 %v2472
    %v2619 = vunpack.c.l.b16 %v2473
    %v2620 = vunpack.c.h.b16 %v2473
    %v2621 = vunpack.c.l.b16 %v2474
    %v2622 = vunpack.c.h.b16 %v2474
    %v2623 = vunpack.c.l.b16 %v2475
    %v2624 = vunpack.c.h.b16 %v2475
    %v2625 = vunpack.c.l.b16 %v2476
    %v2626 = vunpack.c.h.b16 %v2476
    %v2627 = vunpack.c.l.b16 %v2477
    %v2628 = vunpack.c.h.b16 %v2477
    %v2629 = vunpack.c.l.b16 %v2478
    %v2630 = vunpack.c.h.b16 %v2478
    %v2631 = vunpack.c.l.b16 %v2479
    %v2632 = vunpack.c.h.b16 %v2479
    %v2633 = vunpack.c.l.b16 %v2480
    %v2634 = vunpack.c.h.b16 %v2480
    %v2635 = vunpack.c.l.b16 %v2481
    %v2636 = vunpack.c.h.b16 %v2481
    %v2637 = vunpack.c.l.b16 %v2482
    %v2638 = vunpack.c.h.b16 %v2482
    %v2639 = vunpack.c.l.b16 %v2483
    %v2640 = vunpack.c.h.b16 %v2483
    %v2641 = vunpack.c.l.b16 %v2484
    %v2642 = vunpack.c.h.b16 %v2484
    %v2643 = vunpack.c.l.b16 %v2485
    %v2644 = vunpack.c.h.b16 %v2485
    %v2645 = vunpack.c.l.b16 %v2486
    %v2646 = vunpack.c.h.b16 %v2486
    %v2647 = vunpack.c.l.b16 %v2487
    %v2648 = vunpack.c.h.b16 %v2487
    %v2649 = vunpack.c.l.b16 %v2488
    %v2650 = vunpack.c.h.b16 %v2488
    %v2651 = vunpack.c.l.b16 %v2489
    %v2652 = vunpack.c.h.b16 %v2489
    %v2653 = vunpack.c.l.b16 %v2490
    %v2654 = vunpack.c.h.b16 %v2490
    %v2655 = vunpack.c.l.b16 %v2491
    %v2656 = vunpack.c.h.b16 %v2491
    %v2657 = vunpack.c.l.b16 %v2492
    %v2658 = vunpack.c.h.b16 %v2492
    %v2659 = vunpack.c.l.b16 %v2493
    %v2660 = vunpack.c.h.b16 %v2493
    %v2661 = vunpack.c.l.b16 %v2494
    %v2662 = vunpack.c.h.b16 %v2494
    %v2663 = vunpack.c.l.b16 %v2495
    %v2664 = vunpack.c.h.b16 %v2495
    %v2665 = vunpack.c.l.b16 %v2496
    %v2666 = vunpack.c.h.b16 %v2496
    %v2667 = vunpack.c.l.b16 %v2497
    %v2668 = vunpack.c.h.b16 %v2497
    %v2669 = vunpack.c.l.b16 %v2498
    %v2670 = vunpack.c.h.b16 %v2498
    %v2671 = vunpack.c.l.b16 %v2499
    %v2672 = vunpack.c.h.b16 %v2499
    %v2673 = vunpack.c.l.b16 %v2500
    %v2674 = vunpack.c.h.b16 %v2500
    %v2675 = vunpack.c.l.b16 %v2501
    %v2676 = vunpack.c.h.b16 %v2501
    %v2677 = vunpack.c.l.b16 %v2502
    %v2678 = vunpack.c.h.b16 %v2502
    %v2679 = vunpack.c.l.b16 %v2503
    %v2680 = vunpack.c.h.b16 %v2503
    %v2681 = vunpack.c.l.b16 %v2504
    %v2682 = vunpack.c.h.b16 %v2504
    %v2683 = vunpack.c.l.b16 %v2505
    %v2684 = vunpack.c.h.b16 %v2505
    %v2685 = vunpack.c.l.b16 %v2506
    %v2686 = vunpack.c.h.b16 %v2506
    %v2687 = vunpack.c.l.b16 %v2507
    %v2688 = vunpack.c.h.b16 %v2507
    %v2689 = vunpack.c.l.b16 %v2508
    %v2690 = vunpack.c.h.b16 %v2508
    %v2691 = vunpack.c.l.b16 %v2509
    %v2692 = vunpack.c.h.b16 %v2509
    %v2693 = vunpack.c.l.b16 %v2510
    %v2694 = vunpack.c.h.b16 %v2510
    %v2695 = vunpack.c.l.b16 %v2511
    %v2696 = vunpack.c.h.b16 %v2511
    %v2697 = vunpack.c.l.b16 %v2512
    %v2698 = vunpack.c.h.b16 %v2512
    %v2699 = vunpack.c.l.b16 %v2513
    %v2700 = vunpack.c.h.b16 %v2513
    %v2701 = vunpack.c.l.b16 %v2514
    %v2702 = vunpack.c.h.b16 %v2514
    %v2703 = vunpack.c.l.b16 %v2515
    %v2704 = vunpack.c.h.b16 %v2515
    %v2705 = vunpack.c.l.b16 %v2516
    %v2706 = vunpack.c.h.b16 %v2516
    %v2707 = vunpack.c.l.b16 %v2517
    %v2708 = vunpack.c.h.b16 %v2517
    %v2709 = vunpack.c.l.b16 %v2518
    %v2710 = vunpack.c.h.b16 %v2518
    %v2711 = vunpack.c.l.b16 %v2519
    %v2712 = vunpack.c.h.b16 %v2519
    %v2713 = vunpack.c.l.b16 %v2520
    %v2714 = vunpack.c.h.b16 %v2520
    %v2715 = vunpack.c.l.b16 %v2521
    %v2716 = vunpack.c.h.b16 %v2521
    %v2717 = vunpack.c.l.b16 %v2522
    %v2718 = vunpack.c.h.b16 %v2522
    %v2719 = vunpack.c.l.b16 %v2523
    %v2720 = vunpack.c.h.b16 %v2523
    %v2721 = vunpack.c.l.b16 %v2524
    %v2722 = vunpack.c.h.b16 %v2524
    %v2723 = vunpack.c.l.b16 %v2525
    %v2724 = vunpack.c.h.b16 %v2525
    %v2725 = vunpack.c.l.b16 %v2526
    %v2726 = vunpack.c.h.b16 %v2526
    %v2727 = vunpack.c.l.b16 %v2527
    %v2728 = vunpack.c.h.b16 %v2527
    %v2729 = vunpack.c.l.b16 %v2528
    %v2730 = vunpack.c.h.b16 %v2528
    %v2731 = vunpack.c.l.b16 %v2529
    %v2732 = vunpack.c.h.b16 %v2529
    %v2733 = vunpack.c.l.b16 %v2530
    %v2734 = vunpack.c.h.b16 %v2530
    %v2735 = vunpack.c.l.b16 %v2531
    %v2736 = vunpack.c.h.b16 %v2531
    %v2737 = vunpack.c.l.b16 %v2532
    %v2738 = vunpack.c.h.b16 %v2532
    %v2739 = vunpack.c.l.b16 %v2533
    %v2740 = vunpack.c.h.b16 %v2533
    %v2741 = vunpack.c.l.b16 %v2534
    %v2742 = vunpack.c.h.b16 %v2534
    %v2743 = vpack.c.b16 %v2617, %v2615
    %v2744 = vpack.c.b16 %v2618, %v2616
    %v2745 = vpack.c.b16 %v2621, %v2619
    %v2746 = vpack.c.b16 %v2622, %v2620
    %v2747 = vpack.c.b16 %v2625, %v2623
    %v2748 = vpack.c.b16 %v2626, %v2624
    %v2749 = vpack.c.b16 %v2629, %v2627
    %v2750 = vpack.c.b16 %v2630, %v2628
    %v2751 = vpack.c.b16 %v2633, %v2631
    %v2752 = vpack.c.b16 %v2634, %v2632
    %v2753 = vpack.c.b16 %v2637, %v2635
    %v2754 = vpack.c.b16 %v2638, %v2636
    %v2755 = vpack.c.b16 %v2641, %v2639
    %v2756 = vpack.c.b16 %v2642, %v2640
    %v2757 = vpack.c.b16 %v2645, %v2643
    %v2758 = vpack.c.b16 %v2646, %v2644
    %v2759 = vpack.c.b16 %v2649, %v2647
    %v2760 = vpack.c.b16 %v2650, %v2648
    %v2761 = vpack.c.b16 %v2653, %v2651
    %v2762 = vpack.c.b16 %v2654, %v2652
    %v2763 = vpack.c.b16 %v2657, %v2655
    %v2764 = vpack.c.b16 %v2658, %v2656
    %v2765 = vpack.c.b16 %v2661, %v2659
    %v2766 = vpack.c.b16 %v2662, %v2660
    %v2767 = vpack.c.b16 %v2665, %v2663
    %v2768 = vpack.c.b16 %v2666, %v2664
    %v2769 = vpack.c.b16 %v2669, %v2667
    %v2770 = vpack.c.b16 %v2670, %v2668
    %v2771 = vpack.c.b16 %v2673, %v2671
    %v2772 = vpack.c.b16 %v2674, %v2672
    %v2773 = vpack.c.b16 %v2677, %v2675
    %v2774 = vpack.c.b16 %v2678, %v2676
    %v2775 = vpack.c.b16 %v2681, %v2679
    %v2776 = vpack.c.b16 %v2682, %v2680
    %v2777 = vpack.c.b16 %v2685, %v2683
    %v2778 = vpack.c.b16 %v2686, %v2684
    %v2779 = vpack.c.b16 %v2689, %v2687
    %v2780 = vpack.c.b16 %v2690, %v2688
    %v2781 = vpack.c.b16 %v2693, %v2691
    %v2782 = vpack.c.b16 %v2694, %v2692
    %v2783 = vpack.c.b16 %v2697, %v2695
    %v2784 = vpack.c.b16 %v2698, %v2696
    %v2785 = vpack.c.b16 %v2701, %v2699
    %v2786 = vpack.c.b16 %v2702, %v2700
    %v2787 = vpack.c.b16 %v2705, %v2703
    %v2788 = vpack.c.b16 %v2706, %v2704
    %v2789 = vpack.c.b16 %v2709, %v2707
    %v2790 = vpack.c.b16 %v2710, %v2708
    %v2791 = vpack.c.b16 %v2713, %v2711
    %v2792 = vpack.c.b16 %v2714, %v2712
    %v2793 = vpack.c.b16 %v2717, %v2715
    %v2794 = vpack.c.b16 %v2718, %v2716
    %v2795 = vpack.c.b16 %v2721, %v2719
    %v2796 = vpack.c.b16 %v2722, %v2720
    %v2797 = vpack.c.b16 %v2725, %v2723
    %v2798 = vpack.c.b16 %v2726, %v2724
    %v2799 = vpack.c.b16 %v2729, %v2727
    %v2800 = vpack.c.b16 %v2730, %v2728
    %v2801 = vpack.c.b16 %v2733, %v2731
    %v2802 = vpack.c.b16 %v2734, %v2732
    %v2803 = vpack.c.b16 %v2737, %v2735
    %v2804 = vpack.c.b16 %v2738, %v2736
    %v2805 = vpack.c.b16 %v2741, %v2739
    %v2806 = vpack.c.b16 %v2742, %v2740
    %2871 = vmatprep.subr.bf16.mxu0 %v2758
    %2872 = vmatpush1.bf16.msra.mxu0 %v2757
    %2873 = vmatprep.subr.bf16.mxu0 %v2756
    %2874 = vmatpush1.bf16.msra.mxu0 %v2755
    %2875 = vmatprep.subr.bf16.mxu0 %v2754
    %2876 = vmatpush1.bf16.msra.mxu0 %v2753
    %2877 = vmatprep.subr.bf16.mxu0 %v2752
    %2878 = vmatpush1.bf16.msra.mxu0 %v2751
    %2879 = vmatprep.subr.bf16.mxu0 %v2750
    %2880 = vmatpush1.bf16.msra.mxu0 %v2749
    %2881 = vmatprep.subr.bf16.mxu0 %v2748
    %2882 = vmatpush1.bf16.msra.mxu0 %v2747
    %2883 = vmatprep.subr.bf16.mxu0 %v2746
    %2884 = vmatpush1.bf16.msra.mxu0 %v2745
    %2885 = vmatprep.subr.bf16.mxu0 %v2744
    %2886 = vmatpush1.bf16.msra.mxu0 %v2743
    %2887 = vmatprep.subr.bf16.mxu0 %v2774
    %2888 = vmatpush2.bf16.msra.mxu0 %v2773
    %2889 = vmatprep.subr.bf16.mxu0 %v2772
    %2890 = vmatpush2.bf16.msra.mxu0 %v2771
    %2891 = vmatprep.subr.bf16.mxu0 %v2770
    %2892 = vmatpush2.bf16.msra.mxu0 %v2769
    %2893 = vmatprep.subr.bf16.mxu0 %v2768
    %2894 = vmatpush2.bf16.msra.mxu0 %v2767
    %2895 = vmatprep.subr.bf16.mxu0 %v2766
    %2896 = vmatpush2.bf16.msra.mxu0 %v2765
    %2897 = vmatprep.subr.bf16.mxu0 %v2764
    %2898 = vmatpush2.bf16.msra.mxu0 %v2763
    %2899 = vmatprep.subr.bf16.mxu0 %v2762
    %2900 = vmatpush2.bf16.msra.mxu0 %v2761
    %2901 = vmatprep.subr.bf16.mxu0 %v2760
    %2902 = vmatpush2.bf16.msra.mxu0 %v2759
    %2903 = vmatprep.mubr.bf16.mxu0 %v2536
    %2904 = vmatmul.mubr.bf16.gmra.mxu0 %v2535
    %v2905 = vpop.f32.mrf.mxu0
    %v2906 = vadd.f32 %v2544, %v2905
    %v2907 = vpop.f32.mrf.mxu0
    %v2908 = vadd.f32 %v2548, %v2907
    %v2909 = vpop.f32.mrf.mxu0
    %v2910 = vpop.f32.mrf.mxu0
    %2911 = vdwg.mxu0
    %2912 = vmatprep.subr.bf16.mxu0 %v2790
    %2913 = vmatpush1.bf16.msra.mxu0 %v2789
    %2914 = vmatprep.subr.bf16.mxu0 %v2788
    %2915 = vmatpush1.bf16.msra.mxu0 %v2787
    %2916 = vmatprep.subr.bf16.mxu0 %v2786
    %2917 = vmatpush1.bf16.msra.mxu0 %v2785
    %2918 = vmatprep.subr.bf16.mxu0 %v2784
    %2919 = vmatpush1.bf16.msra.mxu0 %v2783
    %2920 = vmatprep.subr.bf16.mxu0 %v2782
    %2921 = vmatpush1.bf16.msra.mxu0 %v2781
    %2922 = vmatprep.subr.bf16.mxu0 %v2780
    %2923 = vmatpush1.bf16.msra.mxu0 %v2779
    %2924 = vmatprep.subr.bf16.mxu0 %v2778
    %2925 = vmatpush1.bf16.msra.mxu0 %v2777
    %2926 = vmatprep.subr.bf16.mxu0 %v2776
    %2927 = vmatpush1.bf16.msra.mxu0 %v2775
    %2928 = vmatprep.subr.bf16.mxu0 %v2806
    %2929 = vmatpush2.bf16.msra.mxu0 %v2805
    %2930 = vmatprep.subr.bf16.mxu0 %v2804
    %2931 = vmatpush2.bf16.msra.mxu0 %v2803
    %2932 = vmatprep.subr.bf16.mxu0 %v2802
    %2933 = vmatpush2.bf16.msra.mxu0 %v2801
    %2934 = vmatprep.subr.bf16.mxu0 %v2800
    %2935 = vmatpush2.bf16.msra.mxu0 %v2799
    %2936 = vmatprep.subr.bf16.mxu0 %v2798
    %2937 = vmatpush2.bf16.msra.mxu0 %v2797
    %2938 = vmatprep.subr.bf16.mxu0 %v2796
    %2939 = vmatpush2.bf16.msra.mxu0 %v2795
    %2940 = vmatprep.subr.bf16.mxu0 %v2794
    %2941 = vmatpush2.bf16.msra.mxu0 %v2793
    %2942 = vmatprep.subr.bf16.mxu0 %v2792
    %2943 = vmatpush2.bf16.msra.mxu0 %v2791
    %2944 = vmatprep.mubr.bf16.mxu0 %v2538
    %2945 = vmatmul.mubr.bf16.gmra.mxu0 %v2537
    %v2946 = vpop.f32.mrf.mxu0
    %v2947 = vadd.f32 %v2906, %v2946
    %v2948 = vpop.f32.mrf.mxu0
    %v2949 = vadd.f32 %v2908, %v2948
    %v2950 = vpop.f32.mrf.mxu0
    %v2951 = vpop.f32.mrf.mxu0
    %2952 = vdwg.mxu0
    %vm2953 = vcmp.gt.f32.partialorder %v2947, 0.0
    %vm2954 = vcmp.gt.f32.partialorder %v2949, 0.0
    %v2955 = vmul.f32 %v2947, 0.01
    %v2956 = vmul.f32 %v2949, 0.01
    %v2957 = vsel %vm2953, %v2947, %v2955
    %v2958 = vsel %vm2954, %v2949, %v2956
    %v2959 = vld [vmem:[#allocation11] sm:$0xf]
    %v2960 = vld [vmem:[#allocation11 + $0x4] sm:$0xf]
    %v2961 = vld [vmem:[#allocation11 + $0x8] sm:$0xf]
    %v2962 = vld [vmem:[#allocation11 + $0xc] sm:$0xf]
    %v2963 = vld [vmem:[#allocation11 + $0x10] sm:$0xf]
    %v2964 = vld [vmem:[#allocation11 + $0x14] sm:$0xf]
    %v2965 = vld [vmem:[#allocation11 + $0x18] sm:$0xf]
    %v2966 = vld [vmem:[#allocation11 + $0x1c] sm:$0xf]
    %v2967 = vld [vmem:[#allocation11 + $0x20] sm:$0xf]
    %v2968 = vld [vmem:[#allocation11 + $0x24] sm:$0xf]
    %v2969 = vld [vmem:[#allocation11 + $0x28] sm:$0xf]
    %v2970 = vld [vmem:[#allocation11 + $0x2c] sm:$0xf]
    %v2971 = vld [vmem:[#allocation11 + $0x30] sm:$0xf]
    %v2972 = vld [vmem:[#allocation11 + $0x34] sm:$0xf]
    %v2973 = vld [vmem:[#allocation11 + $0x38] sm:$0xf]
    %v2974 = vld [vmem:[#allocation11 + $0x3c] sm:$0xf]
    %v2975 = vld [vmem:[#allocation11 + $0x40] sm:$0xf]
    %v2976 = vld [vmem:[#allocation11 + $0x44] sm:$0xf]
    %v2977 = vld [vmem:[#allocation11 + $0x48] sm:$0xf]
    %v2978 = vld [vmem:[#allocation11 + $0x4c] sm:$0xf]
    %v2979 = vld [vmem:[#allocation11 + $0x50] sm:$0xf]
    %v2980 = vld [vmem:[#allocation11 + $0x54] sm:$0xf]
    %v2981 = vld [vmem:[#allocation11 + $0x58] sm:$0xf]
    %v2982 = vld [vmem:[#allocation11 + $0x5c] sm:$0xf]
    %v2983 = vld [vmem:[#allocation11 + $0x60] sm:$0xf]
    %v2984 = vld [vmem:[#allocation11 + $0x64] sm:$0xf]
    %v2985 = vld [vmem:[#allocation11 + $0x68] sm:$0xf]
    %v2986 = vld [vmem:[#allocation11 + $0x6c] sm:$0xf]
    %v2987 = vld [vmem:[#allocation11 + $0x70] sm:$0xf]
    %v2988 = vld [vmem:[#allocation11 + $0x74] sm:$0xf]
    %v2989 = vld [vmem:[#allocation11 + $0x78] sm:$0xf]
    %v2990 = vld [vmem:[#allocation11 + $0x7c] sm:$0xf]
    %v2991 = vpack.c.bf16 %v2957, %v2957
    %v2992 = vpack.c.bf16 %v2958, %v2958
    %v2993 = vld [vmem:[#allocation14 + $0x1] ss:$0 sm:$0xff]
    %v3026 = vunpack.c.l.b16 %v2959
    %v3027 = vunpack.c.l.b16 %v2960
    %v3028 = vunpack.c.l.b16 %v2961
    %v3029 = vunpack.c.l.b16 %v2962
    %v3030 = vunpack.c.l.b16 %v2963
    %v3031 = vunpack.c.l.b16 %v2964
    %v3032 = vunpack.c.l.b16 %v2965
    %v3033 = vunpack.c.l.b16 %v2966
    %v3034 = vunpack.c.l.b16 %v2967
    %v3035 = vunpack.c.l.b16 %v2968
    %v3036 = vunpack.c.l.b16 %v2969
    %v3037 = vunpack.c.l.b16 %v2970
    %v3038 = vunpack.c.l.b16 %v2971
    %v3039 = vunpack.c.l.b16 %v2972
    %v3040 = vunpack.c.l.b16 %v2973
    %v3041 = vunpack.c.l.b16 %v2974
    %v3042 = vunpack.c.l.b16 %v2975
    %v3043 = vunpack.c.l.b16 %v2976
    %v3044 = vunpack.c.l.b16 %v2977
    %v3045 = vunpack.c.l.b16 %v2978
    %v3046 = vunpack.c.l.b16 %v2979
    %v3047 = vunpack.c.l.b16 %v2980
    %v3048 = vunpack.c.l.b16 %v2981
    %v3049 = vunpack.c.l.b16 %v2982
    %v3050 = vunpack.c.l.b16 %v2983
    %v3051 = vunpack.c.l.b16 %v2984
    %v3052 = vunpack.c.l.b16 %v2985
    %v3053 = vunpack.c.l.b16 %v2986
    %v3054 = vunpack.c.l.b16 %v2987
    %v3055 = vunpack.c.l.b16 %v2988
    %v3056 = vunpack.c.l.b16 %v2989
    %v3057 = vunpack.c.l.b16 %v2990
    %v3058 = vpack.c.b16 %v3027, %v3026
    %v3059 = vpack.c.b16 %v3029, %v3028
    %v3060 = vpack.c.b16 %v3031, %v3030
    %v3061 = vpack.c.b16 %v3033, %v3032
    %v3062 = vpack.c.b16 %v3035, %v3034
    %v3063 = vpack.c.b16 %v3037, %v3036
    %v3064 = vpack.c.b16 %v3039, %v3038
    %v3065 = vpack.c.b16 %v3041, %v3040
    %v3066 = vpack.c.b16 %v3043, %v3042
    %v3067 = vpack.c.b16 %v3045, %v3044
    %v3068 = vpack.c.b16 %v3047, %v3046
    %v3069 = vpack.c.b16 %v3049, %v3048
    %v3070 = vpack.c.b16 %v3051, %v3050
    %v3071 = vpack.c.b16 %v3053, %v3052
    %v3072 = vpack.c.b16 %v3055, %v3054
    %v3073 = vpack.c.b16 %v3057, %v3056
    %3090 = vmatprep.subr.bf16.mxu0 0
    %3091 = vmatpush1.bf16.msra.mxu0 %v3065
    %3092 = vmatprep.subr.bf16.mxu0 0
    %3093 = vmatpush1.bf16.msra.mxu0 %v3064
    %3094 = vmatprep.subr.bf16.mxu0 0
    %3095 = vmatpush1.bf16.msra.mxu0 %v3063
    %3096 = vmatprep.subr.bf16.mxu0 0
    %3097 = vmatpush1.bf16.msra.mxu0 %v3062
    %3098 = vmatprep.subr.bf16.mxu0 0
    %3099 = vmatpush1.bf16.msra.mxu0 %v3061
    %3100 = vmatprep.subr.bf16.mxu0 0
    %3101 = vmatpush1.bf16.msra.mxu0 %v3060
    %3102 = vmatprep.subr.bf16.mxu0 0
    %3103 = vmatpush1.bf16.msra.mxu0 %v3059
    %3104 = vmatprep.subr.bf16.mxu0 0
    %3105 = vmatpush1.bf16.msra.mxu0 %v3058
    %3106 = vmatprep.subr.bf16.mxu0 0
    %3107 = vmatpush2.bf16.msra.mxu0 %v3073
    %3108 = vmatprep.subr.bf16.mxu0 0
    %3109 = vmatpush2.bf16.msra.mxu0 %v3072
    %3110 = vmatprep.subr.bf16.mxu0 0
    %3111 = vmatpush2.bf16.msra.mxu0 %v3071
    %3112 = vmatprep.subr.bf16.mxu0 0
    %3113 = vmatpush2.bf16.msra.mxu0 %v3070
    %3114 = vmatprep.subr.bf16.mxu0 0
    %3115 = vmatpush2.bf16.msra.mxu0 %v3069
    %3116 = vmatprep.subr.bf16.mxu0 0
    %3117 = vmatpush2.bf16.msra.mxu0 %v3068
    %3118 = vmatprep.subr.bf16.mxu0 0
    %3119 = vmatpush2.bf16.msra.mxu0 %v3067
    %3120 = vmatprep.subr.bf16.mxu0 0
    %3121 = vmatpush2.bf16.msra.mxu0 %v3066
    %3122 = vmatprep.mubr.bf16.mxu0 %v2992
    %3123 = vmatmul.mubr.bf16.gmra.mxu0 %v2991
    %v3124 = vpop.f32.mrf.mxu0
    %v3125 = vadd.f32 %v2993, %v3124
    %v3126 = vpop.f32.mrf.mxu0
    %v3127 = vpop.f32.mrf.mxu0
    %v3128 = vpop.f32.mrf.mxu0
    %3129 = vdwg.mxu0
    %vm3130 = vcmp.gt.f32.partialorder %v3125, 0.0
    %v3131 = vmul.f32 %v3125, 0.01
    %v3132 = vsel %vm3130, %v3125, %v3131
    %v3133 = vld [vmem:[#allocation11 + $0x80] sm:$0xf]
    %v3134 = vld [vmem:[#allocation11 + $0x84] sm:$0xf]
    %v3135 = vld [vmem:[#allocation11 + $0x88] sm:$0xf]
    %v3136 = vld [vmem:[#allocation11 + $0x8c] sm:$0xf]
    %v3137 = vld [vmem:[#allocation11 + $0x90] sm:$0xf]
    %v3138 = vld [vmem:[#allocation11 + $0x94] sm:$0xf]
    %v3139 = vld [vmem:[#allocation11 + $0x98] sm:$0xf]
    %v3140 = vld [vmem:[#allocation11 + $0x9c] sm:$0xf]
    %v3141 = vld [vmem:[#allocation11 + $0xa0] sm:$0xf]
    %v3142 = vld [vmem:[#allocation11 + $0xa4] sm:$0xf]
    %v3143 = vld [vmem:[#allocation11 + $0xa8] sm:$0xf]
    %v3144 = vld [vmem:[#allocation11 + $0xac] sm:$0xf]
    %v3145 = vld [vmem:[#allocation11 + $0xb0] sm:$0xf]
    %v3146 = vld [vmem:[#allocation11 + $0xb4] sm:$0xf]
    %v3147 = vld [vmem:[#allocation11 + $0xb8] sm:$0xf]
    %v3148 = vld [vmem:[#allocation11 + $0xbc] sm:$0xf]
    %v3149 = vpack.c.bf16 %v3132, %v3132
    %v3150 = vld [vmem:[#allocation14 + $0x2] ss:$0 sm:$0xff]
    %v3167 = vunpack.c.l.b16 %v3133
    %v3168 = vunpack.c.l.b16 %v3134
    %v3169 = vunpack.c.l.b16 %v3135
    %v3170 = vunpack.c.l.b16 %v3136
    %v3171 = vunpack.c.l.b16 %v3137
    %v3172 = vunpack.c.l.b16 %v3138
    %v3173 = vunpack.c.l.b16 %v3139
    %v3174 = vunpack.c.l.b16 %v3140
    %v3175 = vunpack.c.l.b16 %v3141
    %v3176 = vunpack.c.l.b16 %v3142
    %v3177 = vunpack.c.l.b16 %v3143
    %v3178 = vunpack.c.l.b16 %v3144
    %v3179 = vunpack.c.l.b16 %v3145
    %v3180 = vunpack.c.l.b16 %v3146
    %v3181 = vunpack.c.l.b16 %v3147
    %v3182 = vunpack.c.l.b16 %v3148
    %v3183 = vpack.c.b16 %v3168, %v3167
    %v3184 = vpack.c.b16 %v3170, %v3169
    %v3185 = vpack.c.b16 %v3172, %v3171
    %v3186 = vpack.c.b16 %v3174, %v3173
    %v3187 = vpack.c.b16 %v3176, %v3175
    %v3188 = vpack.c.b16 %v3178, %v3177
    %v3189 = vpack.c.b16 %v3180, %v3179
    %v3190 = vpack.c.b16 %v3182, %v3181
    %3199 = vmatprep.subr.bf16.mxu0 0
    %3200 = vmatpush1.bf16.msra.mxu0 %v3190
    %3201 = vmatprep.subr.bf16.mxu0 0
    %3202 = vmatpush1.bf16.msra.mxu0 %v3189
    %3203 = vmatprep.subr.bf16.mxu0 0
    %3204 = vmatpush1.bf16.msra.mxu0 %v3188
    %3205 = vmatprep.subr.bf16.mxu0 0
    %3206 = vmatpush1.bf16.msra.mxu0 %v3187
    %3207 = vmatprep.subr.bf16.mxu0 0
    %3208 = vmatpush1.bf16.msra.mxu0 %v3186
    %3209 = vmatprep.subr.bf16.mxu0 0
    %3210 = vmatpush1.bf16.msra.mxu0 %v3185
    %3211 = vmatprep.subr.bf16.mxu0 0
    %3212 = vmatpush1.bf16.msra.mxu0 %v3184
    %3213 = vmatprep.subr.bf16.mxu0 0
    %3214 = vmatpush1.bf16.msra.mxu0 %v3183
    %3215 = vmatprep.subr.bf16.mxu0 0
    %3216 = vmatpush2.bf16.msra.mxu0 0
    %3217 = vmatprep.subr.bf16.mxu0 0
    %3218 = vmatpush2.bf16.msra.mxu0 0
    %3219 = vmatprep.subr.bf16.mxu0 0
    %3220 = vmatpush2.bf16.msra.mxu0 0
    %3221 = vmatprep.subr.bf16.mxu0 0
    %3222 = vmatpush2.bf16.msra.mxu0 0
    %3223 = vmatprep.subr.bf16.mxu0 0
    %3224 = vmatpush2.bf16.msra.mxu0 0
    %3225 = vmatprep.subr.bf16.mxu0 0
    %3226 = vmatpush2.bf16.msra.mxu0 0
    %3227 = vmatprep.subr.bf16.mxu0 0
    %3228 = vmatpush2.bf16.msra.mxu0 0
    %3229 = vmatprep.subr.bf16.mxu0 0
    %3230 = vmatpush2.bf16.msra.mxu0 0
    %3231 = vmatprep.mubr.bf16.mxu0 0
    %3232 = vmatmul.mubr.bf16.gmra.mxu0 %v3149
    %v3233 = vpop.f32.mrf.mxu0
    %v3234 = vadd.f32 %v3150, %v3233
    %v3235 = vpop.f32.mrf.mxu0
    %v3236 = vpop.f32.mrf.mxu0
    %v3237 = vpop.f32.mrf.mxu0
    %3238 = vdwg.mxu0
    %vm3239 = vcmp.gt.f32.partialorder %v3234, 0.0
    %v3240 = vmul.f32 %v3234, 0.01
    %v3241 = vsel %vm3239, %v3234, %v3240
    %v3242 = vld [vmem:[#allocation10] sm:$0xff]
    %v3243 = vld [vmem:[#allocation10 + $0x8] sm:$0xff]
    %v3244 = vld [vmem:[#allocation10 + $0x10] sm:$0xff]
    %v3245 = vld [vmem:[#allocation10 + $0x18] sm:$0xff]
    %v3246 = vld [vmem:[#allocation10 + $0x20] sm:$0xff]
    %v3247 = vld [vmem:[#allocation10 + $0x28] sm:$0xff]
    %v3248 = vld [vmem:[#allocation10 + $0x30] sm:$0xff]
    %v3249 = vld [vmem:[#allocation10 + $0x38] sm:$0xff]
    %v3250 = vpack.c.bf16 %v3241, %v3241
    %v3251 = vld [vmem:[#allocation10 + $0x40] sm:$0xff]
    %v3252 = vld [vmem:[#allocation10 + $0x48] sm:$0xff]
    %v3253 = vld [vmem:[#allocation10 + $0x50] sm:$0xff]
    %v3254 = vld [vmem:[#allocation10 + $0x58] sm:$0xff]
    %v3255 = vld [vmem:[#allocation10 + $0x60] sm:$0xff]
    %v3256 = vld [vmem:[#allocation10 + $0x68] sm:$0xff]
    %v3257 = vld [vmem:[#allocation10 + $0x70] sm:$0xff]
    %v3258 = vld [vmem:[#allocation10 + $0x78] sm:$0xff]
    %v3259 = vld [vmem:[#allocation10 + $0x80] sm:$0xff]
    %v3260 = vld [vmem:[#allocation10 + $0x88] sm:$0xff]
    %v3261 = vld [vmem:[#allocation10 + $0x90] sm:$0xff]
    %v3262 = vld [vmem:[#allocation10 + $0x98] sm:$0xff]
    %v3263 = vld [vmem:[#allocation10 + $0xa0] sm:$0xff]
    %v3264 = vld [vmem:[#allocation10 + $0xa8] sm:$0xff]
    %v3265 = vld [vmem:[#allocation10 + $0xb0] sm:$0xff]
    %v3266 = vld [vmem:[#allocation10 + $0xb8] sm:$0xff]
    %v3267 = vld [vmem:[#allocation10 + $0xc0] sm:$0xff]
    %v3268 = vld [vmem:[#allocation10 + $0xc8] sm:$0xff]
    %v3269 = vld [vmem:[#allocation10 + $0xd0] sm:$0xff]
    %v3270 = vld [vmem:[#allocation10 + $0xd8] sm:$0xff]
    %v3271 = vld [vmem:[#allocation10 + $0xe0] sm:$0xff]
    %v3272 = vld [vmem:[#allocation10 + $0xe8] sm:$0xff]
    %v3273 = vld [vmem:[#allocation10 + $0xf0] sm:$0xff]
    %v3274 = vld [vmem:[#allocation10 + $0xf8] sm:$0xff]
    %v3275 = vld [vmem:[#allocation10 + $0x100] sm:$0xff]
    %v3276 = vld [vmem:[#allocation10 + $0x108] sm:$0xff]
    %v3277 = vld [vmem:[#allocation10 + $0x110] sm:$0xff]
    %v3278 = vld [vmem:[#allocation10 + $0x118] sm:$0xff]
    %v3307 = vunpack.c.l.b16 %v3251
    %v3308 = vunpack.c.h.b16 %v3251
    %v3309 = vunpack.c.l.b16 %v3252
    %v3310 = vunpack.c.h.b16 %v3252
    %v3311 = vunpack.c.l.b16 %v3253
    %v3312 = vunpack.c.h.b16 %v3253
    %v3313 = vunpack.c.l.b16 %v3254
    %v3314 = vunpack.c.h.b16 %v3254
    %v3315 = vunpack.c.l.b16 %v3255
    %v3316 = vunpack.c.h.b16 %v3255
    %v3317 = vunpack.c.l.b16 %v3256
    %v3318 = vunpack.c.h.b16 %v3256
    %v3319 = vunpack.c.l.b16 %v3257
    %v3320 = vunpack.c.h.b16 %v3257
    %v3321 = vunpack.c.l.b16 %v3258
    %v3322 = vunpack.c.h.b16 %v3258
    %v3323 = vunpack.c.l.b16 %v3259
    %v3324 = vunpack.c.h.b16 %v3259
    %v3325 = vunpack.c.l.b16 %v3260
    %v3326 = vunpack.c.h.b16 %v3260
    %v3327 = vunpack.c.l.b16 %v3261
    %v3328 = vunpack.c.h.b16 %v3261
    %v3329 = vunpack.c.l.b16 %v3262
    %v3330 = vunpack.c.h.b16 %v3262
    %v3331 = vunpack.c.l.b16 %v3263
    %v3332 = vunpack.c.h.b16 %v3263
    %v3333 = vunpack.c.l.b16 %v3264
    %v3334 = vunpack.c.h.b16 %v3264
    %v3335 = vunpack.c.l.b16 %v3265
    %v3336 = vunpack.c.h.b16 %v3265
    %v3337 = vunpack.c.l.b16 %v3266
    %v3338 = vunpack.c.h.b16 %v3266
    %v3339 = vunpack.c.l.b16 %v3267
    %v3340 = vunpack.c.h.b16 %v3267
    %v3341 = vunpack.c.l.b16 %v3268
    %v3342 = vunpack.c.h.b16 %v3268
    %v3343 = vunpack.c.l.b16 %v3269
    %v3344 = vunpack.c.h.b16 %v3269
    %v3345 = vunpack.c.l.b16 %v3270
    %v3346 = vunpack.c.h.b16 %v3270
    %v3347 = vunpack.c.l.b16 %v3271
    %v3348 = vunpack.c.h.b16 %v3271
    %v3349 = vunpack.c.l.b16 %v3272
    %v3350 = vunpack.c.h.b16 %v3272
    %v3351 = vunpack.c.l.b16 %v3273
    %v3352 = vunpack.c.h.b16 %v3273
    %v3353 = vunpack.c.l.b16 %v3274
    %v3354 = vunpack.c.h.b16 %v3274
    %v3355 = vunpack.c.l.b16 %v3275
    %v3356 = vunpack.c.h.b16 %v3275
    %v3357 = vunpack.c.l.b16 %v3276
    %v3358 = vunpack.c.h.b16 %v3276
    %v3359 = vunpack.c.l.b16 %v3277
    %v3360 = vunpack.c.h.b16 %v3277
    %v3361 = vunpack.c.l.b16 %v3278
    %v3362 = vunpack.c.h.b16 %v3278
    %v3363 = vpack.c.b16 %v3311, %v3307
    %v3364 = vpack.c.b16 %v3312, %v3308
    %v3365 = vpack.c.b16 %v3313, %v3309
    %v3366 = vpack.c.b16 %v3314, %v3310
    %v3367 = vpack.c.b16 %v3319, %v3315
    %v3368 = vpack.c.b16 %v3320, %v3316
    %v3369 = vpack.c.b16 %v3321, %v3317
    %v3370 = vpack.c.b16 %v3322, %v3318
    %v3371 = vpack.c.b16 %v3327, %v3323
    %v3372 = vpack.c.b16 %v3328, %v3324
    %v3373 = vpack.c.b16 %v3329, %v3325
    %v3374 = vpack.c.b16 %v3330, %v3326
    %v3375 = vpack.c.b16 %v3335, %v3331
    %v3376 = vpack.c.b16 %v3336, %v3332
    %v3377 = vpack.c.b16 %v3337, %v3333
    %v3378 = vpack.c.b16 %v3338, %v3334
    %v3379 = vpack.c.b16 %v3343, %v3339
    %v3380 = vpack.c.b16 %v3344, %v3340
    %v3381 = vpack.c.b16 %v3345, %v3341
    %v3382 = vpack.c.b16 %v3346, %v3342
    %v3383 = vpack.c.b16 %v3351, %v3347
    %v3384 = vpack.c.b16 %v3352, %v3348
    %v3385 = vpack.c.b16 %v3353, %v3349
    %v3386 = vpack.c.b16 %v3354, %v3350
    %v3387 = vpack.c.b16 %v3359, %v3355
    %v3388 = vpack.c.b16 %v3360, %v3356
    %v3389 = vpack.c.b16 %v3361, %v3357
    %v3390 = vpack.c.b16 %v3362, %v3358
    %vm3419 = vcmask 916480
    %v3420 = vsel %vm3419, %v169, 0
    %3422 = vmatprep.subr.bf16.mxu0 0
    %3423 = vmatpush1.bf16.msra.mxu0 0
    %3424 = vmatprep.subr.bf16.mxu0 %v3388
    %3425 = vmatpush1.bf16.msra.mxu0 %v3387
    %3426 = vmatprep.subr.bf16.mxu0 %v3384
    %3427 = vmatpush1.bf16.msra.mxu0 %v3383
    %3428 = vmatprep.subr.bf16.mxu0 %v3380
    %3429 = vmatpush1.bf16.msra.mxu0 %v3379
    %3430 = vmatprep.subr.bf16.mxu0 %v3376
    %3431 = vmatpush1.bf16.msra.mxu0 %v3375
    %3432 = vmatprep.subr.bf16.mxu0 %v3372
    %3433 = vmatpush1.bf16.msra.mxu0 %v3371
    %3434 = vmatprep.subr.bf16.mxu0 %v3368
    %3435 = vmatpush1.bf16.msra.mxu0 %v3367
    %3436 = vmatprep.subr.bf16.mxu0 %v3364
    %3437 = vmatpush1.bf16.msra.mxu0 %v3363
    %3438 = vmatprep.subr.bf16.mxu0 0
    %3439 = vmatpush2.bf16.msra.mxu0 0
    %3440 = vmatprep.subr.bf16.mxu0 0
    %3441 = vmatpush2.bf16.msra.mxu0 0
    %3442 = vmatprep.subr.bf16.mxu0 0
    %3443 = vmatpush2.bf16.msra.mxu0 0
    %3444 = vmatprep.subr.bf16.mxu0 0
    %3445 = vmatpush2.bf16.msra.mxu0 0
    %3446 = vmatprep.subr.bf16.mxu0 0
    %3447 = vmatpush2.bf16.msra.mxu0 0
    %3448 = vmatprep.subr.bf16.mxu0 0
    %3449 = vmatpush2.bf16.msra.mxu0 0
    %3450 = vmatprep.subr.bf16.mxu0 0
    %3451 = vmatpush2.bf16.msra.mxu0 0
    %3452 = vmatprep.subr.bf16.mxu0 0
    %3453 = vmatpush2.bf16.msra.mxu0 0
    %3454 = vmatprep.mubr.bf16.mxu0 0
    %3455 = vmatmul.mubr.bf16.gmra.mxu0 %v3420
    %v3456 = vpop.f32.mrf.mxu0
    %v3457 = vadd.f32 0.0, %v3456
    %v3458 = vpop.f32.mrf.mxu0
    %v3459 = vadd.f32 0.0, %v3458
    %v3460 = vpop.f32.mrf.mxu0
    %v3461 = vpop.f32.mrf.mxu0
    %3462 = vdwg.mxu0
    %3463 = vmatprep.subr.bf16.mxu0 0
    %3464 = vmatpush1.bf16.msra.mxu0 0
    %3465 = vmatprep.subr.bf16.mxu0 %v3390
    %3466 = vmatpush1.bf16.msra.mxu0 %v3389
    %3467 = vmatprep.subr.bf16.mxu0 %v3386
    %3468 = vmatpush1.bf16.msra.mxu0 %v3385
    %3469 = vmatprep.subr.bf16.mxu0 %v3382
    %3470 = vmatpush1.bf16.msra.mxu0 %v3381
    %3471 = vmatprep.subr.bf16.mxu0 %v3378
    %3472 = vmatpush1.bf16.msra.mxu0 %v3377
    %3473 = vmatprep.subr.bf16.mxu0 %v3374
    %3474 = vmatpush1.bf16.msra.mxu0 %v3373
    %3475 = vmatprep.subr.bf16.mxu0 %v3370
    %3476 = vmatpush1.bf16.msra.mxu0 %v3369
    %3477 = vmatprep.subr.bf16.mxu0 %v3366
    %3478 = vmatpush1.bf16.msra.mxu0 %v3365
    %3479 = vmatprep.subr.bf16.mxu0 0
    %3480 = vmatpush2.bf16.msra.mxu0 0
    %3481 = vmatprep.subr.bf16.mxu0 0
    %3482 = vmatpush2.bf16.msra.mxu0 0
    %3483 = vmatprep.subr.bf16.mxu0 0
    %3484 = vmatpush2.bf16.msra.mxu0 0
    %3485 = vmatprep.subr.bf16.mxu0 0
    %3486 = vmatpush2.bf16.msra.mxu0 0
    %3487 = vmatprep.subr.bf16.mxu0 0
    %3488 = vmatpush2.bf16.msra.mxu0 0
    %3489 = vmatprep.subr.bf16.mxu0 0
    %3490 = vmatpush2.bf16.msra.mxu0 0
    %3491 = vmatprep.subr.bf16.mxu0 0
    %3492 = vmatpush2.bf16.msra.mxu0 0
    %3493 = vmatprep.subr.bf16.mxu0 0
    %3494 = vmatpush2.bf16.msra.mxu0 0
    %3495 = vmatprep.mubr.bf16.mxu0 0
    %3496 = vmatmul.mubr.bf16.gmra.mxu0 %v3420
    %v3497 = vpop.f32.mrf.mxu0
    %v3498 = vadd.f32 0.0, %v3497
    %v3499 = vpop.f32.mrf.mxu0
    %v3500 = vadd.f32 0.0, %v3499
    %v3501 = vpop.f32.mrf.mxu0
    %v3502 = vpop.f32.mrf.mxu0
    %3503 = vdwg.mxu0
    %v3512 = vunpack.c.l.b16 %v3242
    %v3513 = vunpack.c.h.b16 %v3242
    %v3514 = vunpack.c.l.b16 %v3243
    %v3515 = vunpack.c.h.b16 %v3243
    %v3516 = vunpack.c.l.b16 %v3244
    %v3517 = vunpack.c.h.b16 %v3244
    %v3518 = vunpack.c.l.b16 %v3245
    %v3519 = vunpack.c.h.b16 %v3245
    %v3520 = vunpack.c.l.b16 %v3246
    %v3521 = vunpack.c.h.b16 %v3246
    %v3522 = vunpack.c.l.b16 %v3247
    %v3523 = vunpack.c.h.b16 %v3247
    %v3524 = vunpack.c.l.b16 %v3248
    %v3525 = vunpack.c.h.b16 %v3248
    %v3526 = vunpack.c.l.b16 %v3249
    %v3527 = vunpack.c.h.b16 %v3249
    %v3528 = vpack.c.b16 %v3516, %v3512
    %v3529 = vpack.c.b16 %v3517, %v3513
    %v3530 = vpack.c.b16 %v3518, %v3514
    %v3531 = vpack.c.b16 %v3519, %v3515
    %v3532 = vpack.c.b16 %v3524, %v3520
    %v3533 = vpack.c.b16 %v3525, %v3521
    %v3534 = vpack.c.b16 %v3526, %v3522
    %v3535 = vpack.c.b16 %v3527, %v3523
    %vm3544 = vcmask 261120
    %v3546 = vsel %vm3544, %v3250, 0
    %3548 = vmatprep.subr.bf16.mxu0 0
    %3549 = vmatpush1.bf16.msra.mxu0 0
    %3550 = vmatprep.subr.bf16.mxu0 0
    %3551 = vmatpush1.bf16.msra.mxu0 0
    %3552 = vmatprep.subr.bf16.mxu0 0
    %3553 = vmatpush1.bf16.msra.mxu0 0
    %3554 = vmatprep.subr.bf16.mxu0 0
    %3555 = vmatpush1.bf16.msra.mxu0 0
    %3556 = vmatprep.subr.bf16.mxu0 0
    %3557 = vmatpush1.bf16.msra.mxu0 0
    %3558 = vmatprep.subr.bf16.mxu0 0
    %3559 = vmatpush1.bf16.msra.mxu0 0
    %3560 = vmatprep.subr.bf16.mxu0 %v3533
    %3561 = vmatpush1.bf16.msra.mxu0 %v3532
    %3562 = vmatprep.subr.bf16.mxu0 %v3529
    %3563 = vmatpush1.bf16.msra.mxu0 %v3528
    %3564 = vmatprep.subr.bf16.mxu0 0
    %3565 = vmatpush2.bf16.msra.mxu0 0
    %3566 = vmatprep.subr.bf16.mxu0 0
    %3567 = vmatpush2.bf16.msra.mxu0 0
    %3568 = vmatprep.subr.bf16.mxu0 0
    %3569 = vmatpush2.bf16.msra.mxu0 0
    %3570 = vmatprep.subr.bf16.mxu0 0
    %3571 = vmatpush2.bf16.msra.mxu0 0
    %3572 = vmatprep.subr.bf16.mxu0 0
    %3573 = vmatpush2.bf16.msra.mxu0 0
    %3574 = vmatprep.subr.bf16.mxu0 0
    %3575 = vmatpush2.bf16.msra.mxu0 0
    %3576 = vmatprep.subr.bf16.mxu0 0
    %3577 = vmatpush2.bf16.msra.mxu0 0
    %3578 = vmatprep.subr.bf16.mxu0 0
    %3579 = vmatpush2.bf16.msra.mxu0 0
    %3580 = vmatprep.mubr.bf16.mxu0 0
    %3581 = vmatmul.mubr.bf16.gmra.mxu0 %v3546
    %v3582 = vpop.f32.mrf.mxu0
    %v3583 = vadd.f32 %v3457, %v3582
    %v3584 = vpop.f32.mrf.mxu0
    %v3585 = vadd.f32 %v3459, %v3584
    %v3586 = vpop.f32.mrf.mxu0
    %v3587 = vpop.f32.mrf.mxu0
    %3588 = vdwg.mxu0
    %3589 = vmatprep.subr.bf16.mxu0 0
    %3590 = vmatpush1.bf16.msra.mxu0 0
    %3591 = vmatprep.subr.bf16.mxu0 0
    %3592 = vmatpush1.bf16.msra.mxu0 0
    %3593 = vmatprep.subr.bf16.mxu0 0
    %3594 = vmatpush1.bf16.msra.mxu0 0
    %3595 = vmatprep.subr.bf16.mxu0 0
    %3596 = vmatpush1.bf16.msra.mxu0 0
    %3597 = vmatprep.subr.bf16.mxu0 0
    %3598 = vmatpush1.bf16.msra.mxu0 0
    %3599 = vmatprep.subr.bf16.mxu0 0
    %3600 = vmatpush1.bf16.msra.mxu0 0
    %3601 = vmatprep.subr.bf16.mxu0 %v3535
    %3602 = vmatpush1.bf16.msra.mxu0 %v3534
    %3603 = vmatprep.subr.bf16.mxu0 %v3531
    %3604 = vmatpush1.bf16.msra.mxu0 %v3530
    %3605 = vmatprep.subr.bf16.mxu0 0
    %3606 = vmatpush2.bf16.msra.mxu0 0
    %3607 = vmatprep.subr.bf16.mxu0 0
    %3608 = vmatpush2.bf16.msra.mxu0 0
    %3609 = vmatprep.subr.bf16.mxu0 0
    %3610 = vmatpush2.bf16.msra.mxu0 0
    %3611 = vmatprep.subr.bf16.mxu0 0
    %3612 = vmatpush2.bf16.msra.mxu0 0
    %3613 = vmatprep.subr.bf16.mxu0 0
    %3614 = vmatpush2.bf16.msra.mxu0 0
    %3615 = vmatprep.subr.bf16.mxu0 0
    %3616 = vmatpush2.bf16.msra.mxu0 0
    %3617 = vmatprep.subr.bf16.mxu0 0
    %3618 = vmatpush2.bf16.msra.mxu0 0
    %3619 = vmatprep.subr.bf16.mxu0 0
    %3620 = vmatpush2.bf16.msra.mxu0 0
    %3621 = vmatprep.mubr.bf16.mxu0 0
    %3622 = vmatmul.mubr.bf16.gmra.mxu0 %v3546
    %v3623 = vpop.f32.mrf.mxu0
    %v3624 = vadd.f32 %v3498, %v3623
    %v3625 = vpop.f32.mrf.mxu0
    %v3626 = vadd.f32 %v3500, %v3625
    %v3627 = vpop.f32.mrf.mxu0
    %v3628 = vpop.f32.mrf.mxu0
    %3629 = vdwg.mxu0
    %s3630 = scalar_lea.vmem [#allocation14], 3
    %v3631 = vld [vmem:[%s3630] ss:$8 sm:$0xf]
    %v3633 = vlaneseq
    %v3634 = vshrl.u32 %v3633, 7
    %v3635 = vsub.s32 0, %v3634
    %v3636 = vrot.slane %v3631, %v3635
    %v3637 = vlaneseq
    %v3638 = vshrl.u32 %v3637, 7
    %v3639 = vsub.s32 1, %v3638
    %v3640 = vrot.slane %v3631, %v3639
    %v3641 = vlaneseq
    %v3642 = vshrl.u32 %v3641, 7
    %v3643 = vsub.s32 2, %v3642
    %v3644 = vrot.slane %v3631, %v3643
    %v3645 = vlaneseq
    %v3646 = vshrl.u32 %v3645, 7
    %v3647 = vsub.s32 3, %v3646
    %v3648 = vrot.slane %v3631, %v3647
    %v3653 = vadd.f32 %v3583, %v3636
    %v3654 = vadd.f32 %v3585, %v3640
    %v3655 = vadd.f32 %v3624, %v3644
    %v3656 = vadd.f32 %v3626, %v3648
    %v3657 = vld [vmem:[#allocation11 + $0xc0] sm:$0xf]
    %v3658 = vld [vmem:[#allocation11 + $0xc4] sm:$0xf]
    %v3659 = vld [vmem:[#allocation11 + $0xc8] sm:$0xf]
    %v3660 = vld [vmem:[#allocation11 + $0xcc] sm:$0xf]
    %v3661 = vld [vmem:[#allocation11 + $0xd0] sm:$0xf]
    %v3662 = vld [vmem:[#allocation11 + $0xd4] sm:$0xf]
    %v3663 = vld [vmem:[#allocation11 + $0xd8] sm:$0xf]
    %v3664 = vld [vmem:[#allocation11 + $0xdc] sm:$0xf]
    %v3665 = vld [vmem:[#allocation11 + $0xe0] sm:$0xf]
    %v3666 = vld [vmem:[#allocation11 + $0xe4] sm:$0xf]
    %v3667 = vld [vmem:[#allocation11 + $0xe8] sm:$0xf]
    %v3668 = vld [vmem:[#allocation11 + $0xec] sm:$0xf]
    %v3669 = vld [vmem:[#allocation11 + $0xf0] sm:$0xf]
    %v3670 = vld [vmem:[#allocation11 + $0xf4] sm:$0xf]
    %v3671 = vld [vmem:[#allocation11 + $0xf8] sm:$0xf]
    %v3672 = vld [vmem:[#allocation11 + $0xfc] sm:$0xf]
    %v3673 = vld [vmem:[#allocation11 + $0x100] sm:$0xf]
    %v3674 = vld [vmem:[#allocation11 + $0x104] sm:$0xf]
    %v3675 = vld [vmem:[#allocation11 + $0x108] sm:$0xf]
    %v3676 = vld [vmem:[#allocation11 + $0x10c] sm:$0xf]
    %v3677 = vld [vmem:[#allocation11 + $0x110] sm:$0xf]
    %v3678 = vld [vmem:[#allocation11 + $0x114] sm:$0xf]
    %v3679 = vld [vmem:[#allocation11 + $0x118] sm:$0xf]
    %v3680 = vld [vmem:[#allocation11 + $0x11c] sm:$0xf]
    %v3681 = vld [vmem:[#allocation11 + $0x120] sm:$0xf]
    %v3682 = vld [vmem:[#allocation11 + $0x124] sm:$0xf]
    %v3683 = vld [vmem:[#allocation11 + $0x128] sm:$0xf]
    %v3684 = vld [vmem:[#allocation11 + $0x12c] sm:$0xf]
    %v3685 = vld [vmem:[#allocation11 + $0x130] sm:$0xf]
    %v3686 = vld [vmem:[#allocation11 + $0x134] sm:$0xf]
    %v3687 = vld [vmem:[#allocation11 + $0x138] sm:$0xf]
    %v3688 = vld [vmem:[#allocation11 + $0x13c] sm:$0xf]
    %v3689 = vld [vmem:[#allocation11 + $0x140] sm:$0xf]
    %v3690 = vld [vmem:[#allocation11 + $0x144] sm:$0xf]
    %v3691 = vld [vmem:[#allocation11 + $0x148] sm:$0xf]
    %v3692 = vld [vmem:[#allocation11 + $0x14c] sm:$0xf]
    %v3693 = vld [vmem:[#allocation11 + $0x150] sm:$0xf]
    %v3694 = vld [vmem:[#allocation11 + $0x154] sm:$0xf]
    %v3695 = vld [vmem:[#allocation11 + $0x158] sm:$0xf]
    %v3696 = vld [vmem:[#allocation11 + $0x15c] sm:$0xf]
    %v3697 = vld [vmem:[#allocation11 + $0x160] sm:$0xf]
    %v3698 = vld [vmem:[#allocation11 + $0x164] sm:$0xf]
    %v3699 = vld [vmem:[#allocation11 + $0x168] sm:$0xf]
    %v3700 = vld [vmem:[#allocation11 + $0x16c] sm:$0xf]
    %v3701 = vld [vmem:[#allocation11 + $0x170] sm:$0xf]
    %v3702 = vld [vmem:[#allocation11 + $0x174] sm:$0xf]
    %v3703 = vld [vmem:[#allocation11 + $0x178] sm:$0xf]
    %v3704 = vld [vmem:[#allocation11 + $0x17c] sm:$0xf]
    %v3705 = vld [vmem:[#allocation11 + $0x180] sm:$0xf]
    %v3706 = vld [vmem:[#allocation11 + $0x184] sm:$0xf]
    %v3707 = vld [vmem:[#allocation11 + $0x188] sm:$0xf]
    %v3708 = vld [vmem:[#allocation11 + $0x18c] sm:$0xf]
    %v3709 = vld [vmem:[#allocation11 + $0x190] sm:$0xf]
    %v3710 = vld [vmem:[#allocation11 + $0x194] sm:$0xf]
    %v3711 = vld [vmem:[#allocation11 + $0x198] sm:$0xf]
    %v3712 = vld [vmem:[#allocation11 + $0x19c] sm:$0xf]
    %v3713 = vld [vmem:[#allocation11 + $0x1a0] sm:$0xf]
    %v3714 = vld [vmem:[#allocation11 + $0x1a4] sm:$0xf]
    %v3715 = vld [vmem:[#allocation11 + $0x1a8] sm:$0xf]
    %v3716 = vld [vmem:[#allocation11 + $0x1ac] sm:$0xf]
    %v3717 = vld [vmem:[#allocation11 + $0x1b0] sm:$0xf]
    %v3718 = vld [vmem:[#allocation11 + $0x1b4] sm:$0xf]
    %v3719 = vld [vmem:[#allocation11 + $0x1b8] sm:$0xf]
    %v3720 = vld [vmem:[#allocation11 + $0x1bc] sm:$0xf]
    %v3721 = vpack.c.bf16 %v3653, %v3653
    %v3722 = vpack.c.bf16 %v3654, %v3654
    %v3723 = vpack.c.bf16 %v3655, %v3655
    %v3724 = vpack.c.bf16 %v3656, %v3656
    %v3725 = vld [vmem:[#allocation14 + $0x4] ss:$0 sm:$0xff]
    %v3790 = vunpack.c.l.b16 %v3657
    %v3791 = vunpack.c.l.b16 %v3658
    %v3792 = vunpack.c.l.b16 %v3659
    %v3793 = vunpack.c.l.b16 %v3660
    %v3794 = vunpack.c.l.b16 %v3661
    %v3795 = vunpack.c.l.b16 %v3662
    %v3796 = vunpack.c.l.b16 %v3663
    %v3797 = vunpack.c.l.b16 %v3664
    %v3798 = vunpack.c.l.b16 %v3665
    %v3799 = vunpack.c.l.b16 %v3666
    %v3800 = vunpack.c.l.b16 %v3667
    %v3801 = vunpack.c.l.b16 %v3668
    %v3802 = vunpack.c.l.b16 %v3669
    %v3803 = vunpack.c.l.b16 %v3670
    %v3804 = vunpack.c.l.b16 %v3671
    %v3805 = vunpack.c.l.b16 %v3672
    %v3806 = vunpack.c.l.b16 %v3673
    %v3807 = vunpack.c.l.b16 %v3674
    %v3808 = vunpack.c.l.b16 %v3675
    %v3809 = vunpack.c.l.b16 %v3676
    %v3810 = vunpack.c.l.b16 %v3677
    %v3811 = vunpack.c.l.b16 %v3678
    %v3812 = vunpack.c.l.b16 %v3679
    %v3813 = vunpack.c.l.b16 %v3680
    %v3814 = vunpack.c.l.b16 %v3681
    %v3815 = vunpack.c.l.b16 %v3682
    %v3816 = vunpack.c.l.b16 %v3683
    %v3817 = vunpack.c.l.b16 %v3684
    %v3818 = vunpack.c.l.b16 %v3685
    %v3819 = vunpack.c.l.b16 %v3686
    %v3820 = vunpack.c.l.b16 %v3687
    %v3821 = vunpack.c.l.b16 %v3688
    %v3822 = vunpack.c.l.b16 %v3689
    %v3823 = vunpack.c.l.b16 %v3690
    %v3824 = vunpack.c.l.b16 %v3691
    %v3825 = vunpack.c.l.b16 %v3692
    %v3826 = vunpack.c.l.b16 %v3693
    %v3827 = vunpack.c.l.b16 %v3694
    %v3828 = vunpack.c.l.b16 %v3695
    %v3829 = vunpack.c.l.b16 %v3696
    %v3830 = vunpack.c.l.b16 %v3697
    %v3831 = vunpack.c.l.b16 %v3698
    %v3832 = vunpack.c.l.b16 %v3699
    %v3833 = vunpack.c.l.b16 %v3700
    %v3834 = vunpack.c.l.b16 %v3701
    %v3835 = vunpack.c.l.b16 %v3702
    %v3836 = vunpack.c.l.b16 %v3703
    %v3837 = vunpack.c.l.b16 %v3704
    %v3838 = vunpack.c.l.b16 %v3705
    %v3839 = vunpack.c.l.b16 %v3706
    %v3840 = vunpack.c.l.b16 %v3707
    %v3841 = vunpack.c.l.b16 %v3708
    %v3842 = vunpack.c.l.b16 %v3709
    %v3843 = vunpack.c.l.b16 %v3710
    %v3844 = vunpack.c.l.b16 %v3711
    %v3845 = vunpack.c.l.b16 %v3712
    %v3846 = vunpack.c.l.b16 %v3713
    %v3847 = vunpack.c.l.b16 %v3714
    %v3848 = vunpack.c.l.b16 %v3715
    %v3849 = vunpack.c.l.b16 %v3716
    %v3850 = vunpack.c.l.b16 %v3717
    %v3851 = vunpack.c.l.b16 %v3718
    %v3852 = vunpack.c.l.b16 %v3719
    %v3853 = vunpack.c.l.b16 %v3720
    %v3854 = vpack.c.b16 %v3791, %v3790
    %v3855 = vpack.c.b16 %v3793, %v3792
    %v3856 = vpack.c.b16 %v3795, %v3794
    %v3857 = vpack.c.b16 %v3797, %v3796
    %v3858 = vpack.c.b16 %v3799, %v3798
    %v3859 = vpack.c.b16 %v3801, %v3800
    %v3860 = vpack.c.b16 %v3803, %v3802
    %v3861 = vpack.c.b16 %v3805, %v3804
    %v3862 = vpack.c.b16 %v3807, %v3806
    %v3863 = vpack.c.b16 %v3809, %v3808
    %v3864 = vpack.c.b16 %v3811, %v3810
    %v3865 = vpack.c.b16 %v3813, %v3812
    %v3866 = vpack.c.b16 %v3815, %v3814
    %v3867 = vpack.c.b16 %v3817, %v3816
    %v3868 = vpack.c.b16 %v3819, %v3818
    %v3869 = vpack.c.b16 %v3821, %v3820
    %v3870 = vpack.c.b16 %v3823, %v3822
    %v3871 = vpack.c.b16 %v3825, %v3824
    %v3872 = vpack.c.b16 %v3827, %v3826
    %v3873 = vpack.c.b16 %v3829, %v3828
    %v3874 = vpack.c.b16 %v3831, %v3830
    %v3875 = vpack.c.b16 %v3833, %v3832
    %v3876 = vpack.c.b16 %v3835, %v3834
    %v3877 = vpack.c.b16 %v3837, %v3836
    %v3878 = vpack.c.b16 %v3839, %v3838
    %v3879 = vpack.c.b16 %v3841, %v3840
    %v3880 = vpack.c.b16 %v3843, %v3842
    %v3881 = vpack.c.b16 %v3845, %v3844
    %v3882 = vpack.c.b16 %v3847, %v3846
    %v3883 = vpack.c.b16 %v3849, %v3848
    %v3884 = vpack.c.b16 %v3851, %v3850
    %v3885 = vpack.c.b16 %v3853, %v3852
    %3918 = vmatprep.subr.bf16.mxu0 0
    %3919 = vmatpush1.bf16.msra.mxu0 %v3861
    %3920 = vmatprep.subr.bf16.mxu0 0
    %3921 = vmatpush1.bf16.msra.mxu0 %v3860
    %3922 = vmatprep.subr.bf16.mxu0 0
    %3923 = vmatpush1.bf16.msra.mxu0 %v3859
    %3924 = vmatprep.subr.bf16.mxu0 0
    %3925 = vmatpush1.bf16.msra.mxu0 %v3858
    %3926 = vmatprep.subr.bf16.mxu0 0
    %3927 = vmatpush1.bf16.msra.mxu0 %v3857
    %3928 = vmatprep.subr.bf16.mxu0 0
    %3929 = vmatpush1.bf16.msra.mxu0 %v3856
    %3930 = vmatprep.subr.bf16.mxu0 0
    %3931 = vmatpush1.bf16.msra.mxu0 %v3855
    %3932 = vmatprep.subr.bf16.mxu0 0
    %3933 = vmatpush1.bf16.msra.mxu0 %v3854
    %3934 = vmatprep.subr.bf16.mxu0 0
    %3935 = vmatpush2.bf16.msra.mxu0 %v3869
    %3936 = vmatprep.subr.bf16.mxu0 0
    %3937 = vmatpush2.bf16.msra.mxu0 %v3868
    %3938 = vmatprep.subr.bf16.mxu0 0
    %3939 = vmatpush2.bf16.msra.mxu0 %v3867
    %3940 = vmatprep.subr.bf16.mxu0 0
    %3941 = vmatpush2.bf16.msra.mxu0 %v3866
    %3942 = vmatprep.subr.bf16.mxu0 0
    %3943 = vmatpush2.bf16.msra.mxu0 %v3865
    %3944 = vmatprep.subr.bf16.mxu0 0
    %3945 = vmatpush2.bf16.msra.mxu0 %v3864
    %3946 = vmatprep.subr.bf16.mxu0 0
    %3947 = vmatpush2.bf16.msra.mxu0 %v3863
    %3948 = vmatprep.subr.bf16.mxu0 0
    %3949 = vmatpush2.bf16.msra.mxu0 %v3862
    %3950 = vmatprep.mubr.bf16.mxu0 %v3722
    %3951 = vmatmul.mubr.bf16.gmra.mxu0 %v3721
    %v3952 = vpop.f32.mrf.mxu0
    %v3953 = vadd.f32 %v3725, %v3952
    %v3954 = vpop.f32.mrf.mxu0
    %v3955 = vpop.f32.mrf.mxu0
    %v3956 = vpop.f32.mrf.mxu0
    %3957 = vdwg.mxu0
    %3958 = vmatprep.subr.bf16.mxu0 0
    %3959 = vmatpush1.bf16.msra.mxu0 %v3877
    %3960 = vmatprep.subr.bf16.mxu0 0
    %3961 = vmatpush1.bf16.msra.mxu0 %v3876
    %3962 = vmatprep.subr.bf16.mxu0 0
    %3963 = vmatpush1.bf16.msra.mxu0 %v3875
    %3964 = vmatprep.subr.bf16.mxu0 0
    %3965 = vmatpush1.bf16.msra.mxu0 %v3874
    %3966 = vmatprep.subr.bf16.mxu0 0
    %3967 = vmatpush1.bf16.msra.mxu0 %v3873
    %3968 = vmatprep.subr.bf16.mxu0 0
    %3969 = vmatpush1.bf16.msra.mxu0 %v3872
    %3970 = vmatprep.subr.bf16.mxu0 0
    %3971 = vmatpush1.bf16.msra.mxu0 %v3871
    %3972 = vmatprep.subr.bf16.mxu0 0
    %3973 = vmatpush1.bf16.msra.mxu0 %v3870
    %3974 = vmatprep.subr.bf16.mxu0 0
    %3975 = vmatpush2.bf16.msra.mxu0 %v3885
    %3976 = vmatprep.subr.bf16.mxu0 0
    %3977 = vmatpush2.bf16.msra.mxu0 %v3884
    %3978 = vmatprep.subr.bf16.mxu0 0
    %3979 = vmatpush2.bf16.msra.mxu0 %v3883
    %3980 = vmatprep.subr.bf16.mxu0 0
    %3981 = vmatpush2.bf16.msra.mxu0 %v3882
    %3982 = vmatprep.subr.bf16.mxu0 0
    %3983 = vmatpush2.bf16.msra.mxu0 %v3881
    %3984 = vmatprep.subr.bf16.mxu0 0
    %3985 = vmatpush2.bf16.msra.mxu0 %v3880
    %3986 = vmatprep.subr.bf16.mxu0 0
    %3987 = vmatpush2.bf16.msra.mxu0 %v3879
    %3988 = vmatprep.subr.bf16.mxu0 0
    %3989 = vmatpush2.bf16.msra.mxu0 %v3878
    %3990 = vmatprep.mubr.bf16.mxu0 %v3724
    %3991 = vmatmul.mubr.bf16.gmra.mxu0 %v3723
    %v3992 = vpop.f32.mrf.mxu0
    %v3993 = vadd.f32 %v3953, %v3992
    %v3994 = vpop.f32.mrf.mxu0
    %v3995 = vpop.f32.mrf.mxu0
    %v3996 = vpop.f32.mrf.mxu0
    %3997 = vdwg.mxu0
    %v3998 = vld [vmem:[#allocation11 + $0x1c0] sm:$0xf]
    %v3999 = vld [vmem:[#allocation11 + $0x1c4] sm:$0xf]
    %v4000 = vld [vmem:[#allocation11 + $0x1c8] sm:$0xf]
    %v4001 = vld [vmem:[#allocation11 + $0x1cc] sm:$0xf]
    %v4002 = vld [vmem:[#allocation11 + $0x1d0] sm:$0xf]
    %v4003 = vld [vmem:[#allocation11 + $0x1d4] sm:$0xf]
    %v4004 = vld [vmem:[#allocation11 + $0x1d8] sm:$0xf]
    %v4005 = vld [vmem:[#allocation11 + $0x1dc] sm:$0xf]
    %v4006 = vld [vmem:[#allocation11 + $0x1e0] sm:$0xf]
    %v4007 = vld [vmem:[#allocation11 + $0x1e4] sm:$0xf]
    %v4008 = vld [vmem:[#allocation11 + $0x1e8] sm:$0xf]
    %v4009 = vld [vmem:[#allocation11 + $0x1ec] sm:$0xf]
    %v4010 = vpack.c.bf16 %v3993, %v3993
    %v4019 = vunpack.c.l.b16 %v4002
    %v4020 = vunpack.c.l.b16 %v4003
    %v4021 = vunpack.c.l.b16 %v4004
    %v4022 = vunpack.c.l.b16 %v4005
    %v4023 = vunpack.c.l.b16 %v4006
    %v4024 = vunpack.c.l.b16 %v4007
    %v4025 = vunpack.c.l.b16 %v4008
    %v4026 = vunpack.c.l.b16 %v4009
    %v4027 = vpack.c.b16 %v4020, %v4019
    %v4028 = vpack.c.b16 %v4022, %v4021
    %v4029 = vpack.c.b16 %v4024, %v4023
    %v4030 = vpack.c.b16 %v4026, %v4025
    %v4036 = vsel %vm372, %v4010, 0
    %4038 = vmatprep.subr.bf16.mxu0 0
    %4039 = vmatpush1.bf16.msra.mxu0 0
    %4040 = vmatprep.subr.bf16.mxu0 0
    %4041 = vmatpush1.bf16.msra.mxu0 0
    %4042 = vmatprep.subr.bf16.mxu0 0
    %4043 = vmatpush1.bf16.msra.mxu0 0
    %4044 = vmatprep.subr.bf16.mxu0 0
    %4045 = vmatpush1.bf16.msra.mxu0 0
    %4046 = vmatprep.subr.bf16.mxu0 0
    %4047 = vmatpush1.bf16.msra.mxu0 %v4030
    %4048 = vmatprep.subr.bf16.mxu0 0
    %4049 = vmatpush1.bf16.msra.mxu0 %v4029
    %4050 = vmatprep.subr.bf16.mxu0 0
    %4051 = vmatpush1.bf16.msra.mxu0 %v4028
    %4052 = vmatprep.subr.bf16.mxu0 0
    %4053 = vmatpush1.bf16.msra.mxu0 %v4027
    %4054 = vmatprep.subr.bf16.mxu0 0
    %4055 = vmatpush2.bf16.msra.mxu0 0
    %4056 = vmatprep.subr.bf16.mxu0 0
    %4057 = vmatpush2.bf16.msra.mxu0 0
    %4058 = vmatprep.subr.bf16.mxu0 0
    %4059 = vmatpush2.bf16.msra.mxu0 0
    %4060 = vmatprep.subr.bf16.mxu0 0
    %4061 = vmatpush2.bf16.msra.mxu0 0
    %4062 = vmatprep.subr.bf16.mxu0 0
    %4063 = vmatpush2.bf16.msra.mxu0 0
    %4064 = vmatprep.subr.bf16.mxu0 0
    %4065 = vmatpush2.bf16.msra.mxu0 0
    %4066 = vmatprep.subr.bf16.mxu0 0
    %4067 = vmatpush2.bf16.msra.mxu0 0
    %4068 = vmatprep.subr.bf16.mxu0 0
    %4069 = vmatpush2.bf16.msra.mxu0 0
    %4070 = vmatprep.mubr.bf16.mxu0 0
    %4071 = vmatmul.mubr.bf16.gmra.mxu0 %v4036
    %v4072 = vpop.f32.mrf.mxu0
    %v4073 = vadd.f32 0.0, %v4072
    %v4074 = vpop.f32.mrf.mxu0
    %v4075 = vpop.f32.mrf.mxu0
    %v4076 = vpop.f32.mrf.mxu0
    %4077 = vdwg.mxu0
    %v4082 = vunpack.c.l.b16 %v3998
    %v4083 = vunpack.c.l.b16 %v3999
    %v4084 = vunpack.c.l.b16 %v4000
    %v4085 = vunpack.c.l.b16 %v4001
    %v4086 = vpack.c.b16 %v4083, %v4082
    %v4087 = vpack.c.b16 %v4085, %v4084
    %4090 = vmatprep.subr.bf16.mxu0 0
    %4091 = vmatpush1.bf16.msra.mxu0 0
    %4092 = vmatprep.subr.bf16.mxu0 0
    %4093 = vmatpush1.bf16.msra.mxu0 0
    %4094 = vmatprep.subr.bf16.mxu0 0
    %4095 = vmatpush1.bf16.msra.mxu0 0
    %4096 = vmatprep.subr.bf16.mxu0 0
    %4097 = vmatpush1.bf16.msra.mxu0 0
    %4098 = vmatprep.subr.bf16.mxu0 0
    %4099 = vmatpush1.bf16.msra.mxu0 0
    %4100 = vmatprep.subr.bf16.mxu0 0
    %4101 = vmatpush1.bf16.msra.mxu0 0
    %4102 = vmatprep.subr.bf16.mxu0 0
    %4103 = vmatpush1.bf16.msra.mxu0 %v4087
    %4104 = vmatprep.subr.bf16.mxu0 0
    %4105 = vmatpush1.bf16.msra.mxu0 %v4086
    %4106 = vmatprep.subr.bf16.mxu0 0
    %4107 = vmatpush2.bf16.msra.mxu0 0
    %4108 = vmatprep.subr.bf16.mxu0 0
    %4109 = vmatpush2.bf16.msra.mxu0 0
    %4110 = vmatprep.subr.bf16.mxu0 0
    %4111 = vmatpush2.bf16.msra.mxu0 0
    %4112 = vmatprep.subr.bf16.mxu0 0
    %4113 = vmatpush2.bf16.msra.mxu0 0
    %4114 = vmatprep.subr.bf16.mxu0 0
    %4115 = vmatpush2.bf16.msra.mxu0 0
    %4116 = vmatprep.subr.bf16.mxu0 0
    %4117 = vmatpush2.bf16.msra.mxu0 0
    %4118 = vmatprep.subr.bf16.mxu0 0
    %4119 = vmatpush2.bf16.msra.mxu0 0
    %4120 = vmatprep.subr.bf16.mxu0 0
    %4121 = vmatpush2.bf16.msra.mxu0 0
    %4122 = vmatprep.mubr.bf16.mxu0 0
    %4123 = vmatmul.mubr.bf16.gmra.mxu0 %v3546
    %v4124 = vpop.f32.mrf.mxu0
    %v4125 = vadd.f32 %v4073, %v4124
    %v4126 = vpop.f32.mrf.mxu0
    %v4127 = vpop.f32.mrf.mxu0
    %v4128 = vpop.f32.mrf.mxu0
    %4129 = vdwg.mxu0
    %v4130 = vld [vmem:[#allocation14 + $0x5] ss:$0 sm:$0xff]
    %v4131 = vadd.f32 %v4125, %v4130
    %vm4132 = vcmp.gt.f32.partialorder %v4131, 0.0
    %v4133 = vmul.f32 %v4131, 0.01
    %v4134 = vsel %vm4132, %v4131, %v4133
    %v4135 = vld [vmem:[#allocation11 + $0x1f0] sm:$0xf]
    %v4136 = vld [vmem:[#allocation11 + $0x1f4] sm:$0xf]
    %v4137 = vld [vmem:[#allocation11 + $0x1f8] sm:$0xf]
    %v4138 = vld [vmem:[#allocation11 + $0x1fc] sm:$0xf]
    %v4139 = vld [vmem:[#allocation11 + $0x200] sm:$0xf]
    %v4140 = vld [vmem:[#allocation11 + $0x204] sm:$0xf]
    %v4141 = vld [vmem:[#allocation11 + $0x208] sm:$0xf]
    %v4142 = vld [vmem:[#allocation11 + $0x20c] sm:$0xf]
    %v4143 = vld [vmem:[#allocation11 + $0x210] sm:$0xf]
    %v4144 = vld [vmem:[#allocation11 + $0x214] sm:$0xf]
    %v4145 = vld [vmem:[#allocation11 + $0x218] sm:$0xf]
    %v4146 = vld [vmem:[#allocation11 + $0x21c] sm:$0xf]
    %v4147 = vld [vmem:[#allocation11 + $0x220] sm:$0xf]
    %v4148 = vld [vmem:[#allocation11 + $0x224] sm:$0xf]
    %v4149 = vld [vmem:[#allocation11 + $0x228] sm:$0xf]
    %v4150 = vld [vmem:[#allocation11 + $0x22c] sm:$0xf]
    %v4151 = vpack.c.bf16 %v4134, %v4134
    %v4152 = vld [vmem:[#allocation14 + $0x6] ss:$0 sm:$0xff]
    %v4169 = vunpack.c.l.b16 %v4135
    %v4170 = vunpack.c.l.b16 %v4136
    %v4171 = vunpack.c.l.b16 %v4137
    %v4172 = vunpack.c.l.b16 %v4138
    %v4173 = vunpack.c.l.b16 %v4139
    %v4174 = vunpack.c.l.b16 %v4140
    %v4175 = vunpack.c.l.b16 %v4141
    %v4176 = vunpack.c.l.b16 %v4142
    %v4177 = vunpack.c.l.b16 %v4143
    %v4178 = vunpack.c.l.b16 %v4144
    %v4179 = vunpack.c.l.b16 %v4145
    %v4180 = vunpack.c.l.b16 %v4146
    %v4181 = vunpack.c.l.b16 %v4147
    %v4182 = vunpack.c.l.b16 %v4148
    %v4183 = vunpack.c.l.b16 %v4149
    %v4184 = vunpack.c.l.b16 %v4150
    %v4185 = vpack.c.b16 %v4170, %v4169
    %v4186 = vpack.c.b16 %v4172, %v4171
    %v4187 = vpack.c.b16 %v4174, %v4173
    %v4188 = vpack.c.b16 %v4176, %v4175
    %v4189 = vpack.c.b16 %v4178, %v4177
    %v4190 = vpack.c.b16 %v4180, %v4179
    %v4191 = vpack.c.b16 %v4182, %v4181
    %v4192 = vpack.c.b16 %v4184, %v4183
    %4201 = vmatprep.subr.bf16.mxu0 0
    %4202 = vmatpush1.bf16.msra.mxu0 %v4192
    %4203 = vmatprep.subr.bf16.mxu0 0
    %4204 = vmatpush1.bf16.msra.mxu0 %v4191
    %4205 = vmatprep.subr.bf16.mxu0 0
    %4206 = vmatpush1.bf16.msra.mxu0 %v4190
    %4207 = vmatprep.subr.bf16.mxu0 0
    %4208 = vmatpush1.bf16.msra.mxu0 %v4189
    %4209 = vmatprep.subr.bf16.mxu0 0
    %4210 = vmatpush1.bf16.msra.mxu0 %v4188
    %4211 = vmatprep.subr.bf16.mxu0 0
    %4212 = vmatpush1.bf16.msra.mxu0 %v4187
    %4213 = vmatprep.subr.bf16.mxu0 0
    %4214 = vmatpush1.bf16.msra.mxu0 %v4186
    %4215 = vmatprep.subr.bf16.mxu0 0
    %4216 = vmatpush1.bf16.msra.mxu0 %v4185
    %4217 = vmatprep.subr.bf16.mxu0 0
    %4218 = vmatpush2.bf16.msra.mxu0 0
    %4219 = vmatprep.subr.bf16.mxu0 0
    %4220 = vmatpush2.bf16.msra.mxu0 0
    %4221 = vmatprep.subr.bf16.mxu0 0
    %4222 = vmatpush2.bf16.msra.mxu0 0
    %4223 = vmatprep.subr.bf16.mxu0 0
    %4224 = vmatpush2.bf16.msra.mxu0 0
    %4225 = vmatprep.subr.bf16.mxu0 0
    %4226 = vmatpush2.bf16.msra.mxu0 0
    %4227 = vmatprep.subr.bf16.mxu0 0
    %4228 = vmatpush2.bf16.msra.mxu0 0
    %4229 = vmatprep.subr.bf16.mxu0 0
    %4230 = vmatpush2.bf16.msra.mxu0 0
    %4231 = vmatprep.subr.bf16.mxu0 0
    %4232 = vmatpush2.bf16.msra.mxu0 0
    %4233 = vmatprep.mubr.bf16.mxu0 0
    %4234 = vmatmul.mubr.bf16.gmra.mxu0 %v4151
    %v4235 = vpop.f32.mrf.mxu0
    %v4236 = vadd.f32 %v4152, %v4235
    %v4237 = vpop.f32.mrf.mxu0
    %v4238 = vpop.f32.mrf.mxu0
    %v4239 = vpop.f32.mrf.mxu0
    %4240 = vdwg.mxu0
    %vm4241 = vcmp.gt.f32.partialorder %v4236, 0.0
    %v4242 = vmul.f32 %v4236, 0.01
    %v4243 = vsel %vm4241, %v4236, %v4242
    %v4244 = vld [vmem:[#allocation11 + $0x230] sm:$0xf]
    %v4245 = vld [vmem:[#allocation11 + $0x234] sm:$0xf]
    %v4246 = vld [vmem:[#allocation11 + $0x238] sm:$0xf]
    %v4247 = vld [vmem:[#allocation11 + $0x23c] sm:$0xf]
    %v4248 = vld [vmem:[#allocation11 + $0x240] sm:$0xf]
    %v4249 = vld [vmem:[#allocation11 + $0x244] sm:$0xf]
    %v4250 = vld [vmem:[#allocation11 + $0x248] sm:$0xf]
    %v4251 = vld [vmem:[#allocation11 + $0x24c] sm:$0xf]
    %v4252 = vpack.c.bf16 %v4243, %v4243
    %v4253 = vld [vmem:[#allocation14 + $0x7] ss:$0 sm:$0xff]
    %v4262 = vunpack.c.l.b16 %v4244
    %v4263 = vunpack.c.l.b16 %v4245
    %v4264 = vunpack.c.l.b16 %v4246
    %v4265 = vunpack.c.l.b16 %v4247
    %v4266 = vunpack.c.l.b16 %v4248
    %v4267 = vunpack.c.l.b16 %v4249
    %v4268 = vunpack.c.l.b16 %v4250
    %v4269 = vunpack.c.l.b16 %v4251
    %v4270 = vpack.c.b16 %v4263, %v4262
    %v4271 = vpack.c.b16 %v4265, %v4264
    %v4272 = vpack.c.b16 %v4267, %v4266
    %v4273 = vpack.c.b16 %v4269, %v4268
    %v4279 = vsel %vm372, %v4252, 0
    %4281 = vmatprep.subr.bf16.mxu0 0
    %4282 = vmatpush1.bf16.msra.mxu0 0
    %4283 = vmatprep.subr.bf16.mxu0 0
    %4284 = vmatpush1.bf16.msra.mxu0 0
    %4285 = vmatprep.subr.bf16.mxu0 0
    %4286 = vmatpush1.bf16.msra.mxu0 0
    %4287 = vmatprep.subr.bf16.mxu0 0
    %4288 = vmatpush1.bf16.msra.mxu0 0
    %4289 = vmatprep.subr.bf16.mxu0 0
    %4290 = vmatpush1.bf16.msra.mxu0 %v4273
    %4291 = vmatprep.subr.bf16.mxu0 0
    %4292 = vmatpush1.bf16.msra.mxu0 %v4272
    %4293 = vmatprep.subr.bf16.mxu0 0
    %4294 = vmatpush1.bf16.msra.mxu0 %v4271
    %4295 = vmatprep.subr.bf16.mxu0 0
    %4296 = vmatpush1.bf16.msra.mxu0 %v4270
    %4297 = vmatprep.subr.bf16.mxu0 0
    %4298 = vmatpush2.bf16.msra.mxu0 0
    %4299 = vmatprep.subr.bf16.mxu0 0
    %4300 = vmatpush2.bf16.msra.mxu0 0
    %4301 = vmatprep.subr.bf16.mxu0 0
    %4302 = vmatpush2.bf16.msra.mxu0 0
    %4303 = vmatprep.subr.bf16.mxu0 0
    %4304 = vmatpush2.bf16.msra.mxu0 0
    %4305 = vmatprep.subr.bf16.mxu0 0
    %4306 = vmatpush2.bf16.msra.mxu0 0
    %4307 = vmatprep.subr.bf16.mxu0 0
    %4308 = vmatpush2.bf16.msra.mxu0 0
    %4309 = vmatprep.subr.bf16.mxu0 0
    %4310 = vmatpush2.bf16.msra.mxu0 0
    %4311 = vmatprep.subr.bf16.mxu0 0
    %4312 = vmatpush2.bf16.msra.mxu0 0
    %4313 = vmatprep.mubr.bf16.mxu0 0
    %4314 = vmatmul.mubr.bf16.gmra.mxu0 %v4279
    %v4315 = vpop.f32.mrf.mxu0
    %v4316 = vadd.f32 %v4253, %v4315
    %v4317 = vpop.f32.mrf.mxu0
    %v4318 = vpop.f32.mrf.mxu0
    %v4319 = vpop.f32.mrf.mxu0
    %4320 = vdwg.mxu0
    %vm4321 = vcmp.gt.f32.partialorder %v4316, 0.0
    %v4322 = vmul.f32 %v4316, 0.01
    %v4323 = vsel %vm4321, %v4316, %v4322
    %v4324 = vld [vmem:[#allocation11 + $0x250] sm:$0xf]
    %v4325 = vld [vmem:[#allocation11 + $0x254] sm:$0xf]
    %v4326 = vld [vmem:[#allocation11 + $0x258] sm:$0xf]
    %v4327 = vld [vmem:[#allocation11 + $0x25c] sm:$0xf]
    %v4328 = vpack.c.bf16 %v4323, %v4323
    %v4329 = vld [vmem:[#allocation14 + $0x20] ss:$0 sm:$0xff]
    %v4334 = vunpack.c.l.b16 %v4324
    %v4335 = vunpack.c.l.b16 %v4325
    %v4336 = vunpack.c.l.b16 %v4326
    %v4337 = vunpack.c.l.b16 %v4327
    %v4338 = vpack.c.b16 %v4335, %v4334
    %v4339 = vpack.c.b16 %v4337, %v4336
    %v4343 = vsel %vm3544, %v4328, 0
    %4345 = vmatprep.subr.bf16.mxu0 0
    %4346 = vmatpush1.bf16.msra.mxu0 0
    %4347 = vmatprep.subr.bf16.mxu0 0
    %4348 = vmatpush1.bf16.msra.mxu0 0
    %4349 = vmatprep.subr.bf16.mxu0 0
    %4350 = vmatpush1.bf16.msra.mxu0 0
    %4351 = vmatprep.subr.bf16.mxu0 0
    %4352 = vmatpush1.bf16.msra.mxu0 0
    %4353 = vmatprep.subr.bf16.mxu0 0
    %4354 = vmatpush1.bf16.msra.mxu0 0
    %4355 = vmatprep.subr.bf16.mxu0 0
    %4356 = vmatpush1.bf16.msra.mxu0 0
    %4357 = vmatprep.subr.bf16.mxu0 0
    %4358 = vmatpush1.bf16.msra.mxu0 %v4339
    %4359 = vmatprep.subr.bf16.mxu0 0
    %4360 = vmatpush1.bf16.msra.mxu0 %v4338
    %4361 = vmatprep.subr.bf16.mxu0 0
    %4362 = vmatpush2.bf16.msra.mxu0 0
    %4363 = vmatprep.subr.bf16.mxu0 0
    %4364 = vmatpush2.bf16.msra.mxu0 0
    %4365 = vmatprep.subr.bf16.mxu0 0
    %4366 = vmatpush2.bf16.msra.mxu0 0
    %4367 = vmatprep.subr.bf16.mxu0 0
    %4368 = vmatpush2.bf16.msra.mxu0 0
    %4369 = vmatprep.subr.bf16.mxu0 0
    %4370 = vmatpush2.bf16.msra.mxu0 0
    %4371 = vmatprep.subr.bf16.mxu0 0
    %4372 = vmatpush2.bf16.msra.mxu0 0
    %4373 = vmatprep.subr.bf16.mxu0 0
    %4374 = vmatpush2.bf16.msra.mxu0 0
    %4375 = vmatprep.subr.bf16.mxu0 0
    %4376 = vmatpush2.bf16.msra.mxu0 0
    %4377 = vmatprep.mubr.bf16.mxu0 0
    %4378 = vmatmul.mubr.bf16.gmra.mxu0 %v4343
    %v4379 = vpop.f32.mrf.mxu0
    %v4380 = vadd.f32 %v4329, %v4379
    %v4381 = vpop.f32.mrf.mxu0
    %v4382 = vpop.f32.mrf.mxu0
    %v4383 = vpop.f32.mrf.mxu0
    %4384 = vdwg.mxu0
    %vm4385 = vcmp.gt.f32.partialorder %v4380, 0.0
    %v4386 = vmul.f32 %v4380, 0.01
    %v4387 = vsel %vm4385, %v4380, %v4386
    %v4388 = vld [vmem:[#allocation11 + $0x260] sm:$0xf]
    %v4389 = vld [vmem:[#allocation11 + $0x264] sm:$0xf]
    %v4390 = vpack.c.bf16 %v4387, %v4387
    %v4391 = vld [vmem:[#allocation14 + $0x21] ss:$0 sm:$0xff]
    %v4394 = vunpack.c.l.b16 %v4388
    %v4395 = vunpack.c.l.b16 %v4389
    %v4396 = vpack.c.b16 %v4395, %v4394
    %vm4398 = vcmask 130048
    %v4400 = vsel %vm4398, %v4390, 0
    %4402 = vmatprep.subr.bf16.mxu0 0
    %4403 = vmatpush1.bf16.msra.mxu0 0
    %4404 = vmatprep.subr.bf16.mxu0 0
    %4405 = vmatpush1.bf16.msra.mxu0 0
    %4406 = vmatprep.subr.bf16.mxu0 0
    %4407 = vmatpush1.bf16.msra.mxu0 0
    %4408 = vmatprep.subr.bf16.mxu0 0
    %4409 = vmatpush1.bf16.msra.mxu0 0
    %4410 = vmatprep.subr.bf16.mxu0 0
    %4411 = vmatpush1.bf16.msra.mxu0 0
    %4412 = vmatprep.subr.bf16.mxu0 0
    %4413 = vmatpush1.bf16.msra.mxu0 0
    %4414 = vmatprep.subr.bf16.mxu0 0
    %4415 = vmatpush1.bf16.msra.mxu0 0
    %4416 = vmatprep.subr.bf16.mxu0 0
    %4417 = vmatpush1.bf16.msra.mxu0 %v4396
    %4418 = vmatprep.subr.bf16.mxu0 0
    %4419 = vmatpush2.bf16.msra.mxu0 0
    %4420 = vmatprep.subr.bf16.mxu0 0
    %4421 = vmatpush2.bf16.msra.mxu0 0
    %4422 = vmatprep.subr.bf16.mxu0 0
    %4423 = vmatpush2.bf16.msra.mxu0 0
    %4424 = vmatprep.subr.bf16.mxu0 0
    %4425 = vmatpush2.bf16.msra.mxu0 0
    %4426 = vmatprep.subr.bf16.mxu0 0
    %4427 = vmatpush2.bf16.msra.mxu0 0
    %4428 = vmatprep.subr.bf16.mxu0 0
    %4429 = vmatpush2.bf16.msra.mxu0 0
    %4430 = vmatprep.subr.bf16.mxu0 0
    %4431 = vmatpush2.bf16.msra.mxu0 0
    %4432 = vmatprep.subr.bf16.mxu0 0
    %4433 = vmatpush2.bf16.msra.mxu0 0
    %4434 = vmatprep.mubr.bf16.mxu0 0
    %4435 = vmatmul.mubr.bf16.gmra.mxu0 %v4400
    %v4436 = vpop.f32.mrf.mxu0
    %v4437 = vadd.f32 %v4391, %v4436
    %v4438 = vpop.f32.mrf.mxu0
    %v4439 = vpop.f32.mrf.mxu0
    %v4440 = vpop.f32.mrf.mxu0
    %4441 = vdwg.mxu0
    %vm4442 = vcmp.gt.f32.partialorder %v4437, 0.0
    %v4443 = vmul.f32 %v4437, 0.01
    %v4444 = vsel %vm4442, %v4437, %v4443
    %vm4445 = vcmask 254976
    %v4446 = vsel %vm4445, %v4444, -inf
    %4447 = vmax.xlane.f32.xlu0 %v4446
    %v4448 = vpop.xlane.xlu0 %4447
    %v4449 = vsub.f32 %v4444, %v4448
    %v4450 = vmul.f32 %v4449, 1.442695
    %v4451 = vpow.pop %v4450
    %v4452 = vsel %vm4445, %v4451, 0.0
    %4453 = vadd.xlane.f32.xlu0 %v4452
    %v4454 = vpop.xlane.xlu0 %4453
    %v4455 = vrcp.pop %v4454
    %v4456 = vmul.f32 %v4451, %v4455
    %4457 = vst.msk [vmem:[#allocation16] sm:$0x3] %vm4445, %v4456
    // Predicated region
    $region66: #{tpu_custom_call.1} parent=1 // pred_check
      _
    $region67: #{tpu_custom_call.1} parent=1 // pred_check_branch
      %4459 = sbr.rel (0) target = $region69
    $region68: #{tpu_custom_call.1} parent=1 // pred_region
      %s4461 = ssub.s32 32, 32
      %4462 = vsyncadd [#allocation4], %s4461
      %s4464 = sshll.u32 [#allocation16], 4
      %s4465 = int_to_ptr.vmem [resolvable:$true] %s4464
      %4467 = dma.vmem_to_hbm [thread:$0]  %s4465, 32, %s8, [#allocation4]
    $region69: #{tpu_custom_call.1} parent=1 // pred_fallthru
      _
    // Predicated region
    $region70: #{tpu_custom_call.1} parent=1 // pred_check
      _
    $region71: #{tpu_custom_call.1} parent=1 // pred_check_branch
      %4469 = sbr.rel (0) target = $region73
    $region72: #{tpu_custom_call.1} parent=1 // pred_region
      %4470 = dma.done [#allocation4], 32
    $region73: #{tpu_custom_call.1} parent=1 // pred_fallthru
      _
    %4471 = vsyncpa [#allocation3], 1
    %4472 = vsyncpa [#allocation6], 1
    %4473 = vsyncpa [#allocation9], 1
    %4474 = vsyncpa [#allocation12], 1
    %4475 = vsyncpa [#allocation15], 1
    %4476 = vsyncpa [#allocation4], 1

</llo_original>
